<compile_context>
chip_gen: v5e
topology: v5e:2x2
jax: 0.10.0
libtpu: 0.0.40
codegen_flags: <defaults>
</compile_context>

<pallas_src>
import math
import functools

import jax
import jax.numpy as jnp
from jax.experimental import pallas as pl
from jax.experimental.pallas import tpu as pltpu

_VMEM_LIMIT = 48 * 1024 * 1024   # safe on v5e/v6e (128 MiB) and v7x (64 MiB)


def _round_up(x, m):
    return ((x + m - 1) // m) * m


def _layernorm(x, g, b, eps=1e-5):
    mu = jnp.mean(x, axis=-1, keepdims=True)
    var = jnp.mean(jnp.square(x - mu), axis=-1, keepdims=True)
    return (x - mu) * jax.lax.rsqrt(var + eps) * g + b


# ----------------------------------------------------------------------------
# Row-tiled linear (lane-dense N, bf16 MXU, f32 accumulate)
# ----------------------------------------------------------------------------
def _linear_kernel(x_ref, w_ref, b_ref, o_ref):
    o_ref[...] = (jnp.dot(x_ref[...].astype(jnp.bfloat16), w_ref[...],
                          preferred_element_type=jnp.float32)
                  + b_ref[...]).astype(o_ref.dtype)


def linear_tiled(x2d, w_kn, b_1n, n_out, *, tm=512, out_dtype=jnp.float32):
    """y = x2d @ w_kn + b.  Weight is bf16 [K, Np] (Np padded to 128 at init).

    Rows tiled over a 'parallel' grid; ragged last row tile is masked by
    Pallas (no activation pad copy).  K is left at the full array dim.
    """
    M, K = x2d.shape
    Kw, Np = w_kn.shape
    assert Kw == K
    tm = max(8, min(tm, _round_up(M, 8)))
    grid_m = pl.cdiv(M, tm)

    cost = pl.CostEstimate(
        flops=int(2 * M * K * Np), transcendentals=0,
        bytes_accessed=int(M * K * x2d.dtype.itemsize + K * Np * 2
                           + M * Np * jnp.dtype(out_dtype).itemsize))

    out = pl.pallas_call(
        _linear_kernel,
        out_shape=jax.ShapeDtypeStruct((M, Np), out_dtype),
        grid=(grid_m,),
        in_specs=[pl.BlockSpec((tm, K), lambda i: (i, 0)),
                  pl.BlockSpec((K, Np), lambda i: (0, 0)),
                  pl.BlockSpec((1, Np), lambda i: (0, 0))],
        out_specs=pl.BlockSpec((tm, Np), lambda i: (i, 0)),
        compiler_params=pltpu.CompilerParams(
            dimension_semantics=("parallel",),
            vmem_limit_bytes=_VMEM_LIMIT),
        cost_estimate=cost,
    )(x2d, w_kn, b_1n)
    return out if n_out == Np else out[:, :n_out]


# ----------------------------------------------------------------------------
# Fused transformer encoder STACK (post-LN, eval mode: dropout = identity)
# ----------------------------------------------------------------------------
def _tf_layer_kernel(x_ref, wqkv_ref, bqkv_ref, wo_ref, bo_ref,
                     w1_ref, b1_ref, w2_ref, b2_ref,
                     g1_ref, be1_ref, g2_ref, be2_ref,
                     o_ref, *, num_heads):
    layer = pl.program_id(1)

    # Layer 0: load the (bf16) input block into the resident f32 output block.
    @pl.when(layer == 0)
    def _():
        o_ref[...] = x_ref[...].astype(o_ref.dtype)

    bb, S, D = o_ref.shape
    H = num_heads
    hd = D // H
    M = bb * S

    x = o_ref[...].reshape(M, D)                      # f32 inter-layer carry
    x_bf = x.astype(jnp.bfloat16)

    # --- fused QKV projection (scale folded into Q weights at init) ---------
    qkv = jnp.dot(x_bf, wqkv_ref[...],
                  preferred_element_type=jnp.float32) + bqkv_ref[...]   # (M, 3D)

    def split_heads(base):                            # -> (H*bb, S, hd) bf16
        t = jnp.stack([qkv[:, base + h * hd: base + (h + 1) * hd]
                       for h in range(H)], axis=0)    # (H, M, hd)
        return t.astype(jnp.bfloat16).reshape(H * bb, S, hd)

    qh = split_heads(0)
    kh = split_heads(D)
    vh = split_heads(2 * D)

    # --- batched multi-head attention (one score + one PV einsum) -----------
    s = jnp.einsum('gqd,gkd->gqk', qh, kh,
                   preferred_element_type=jnp.float32)                  # (G,S,S)
    s = s - jnp.max(s, axis=-1, keepdims=True)
    p = jnp.exp(s)
    p = p * pl.reciprocal(jnp.sum(p, axis=-1, keepdims=True), approx=True)
    a = jnp.einsum('gqk,gkd->gqd', p.astype(jnp.bfloat16), vh,
                   preferred_element_type=jnp.float32)                  # (G,S,hd)

    # --- head merge folded into the output projection (Wo is [H, hd, D]) ----
    attn = None
    for h in range(H):
        ph = a[h * bb:(h + 1) * bb].reshape(M, hd).astype(jnp.bfloat16)
        d = jnp.dot(ph, wo_ref[h], preferred_element_type=jnp.float32)
        attn = d if attn is None else attn + d
    attn = attn + bo_ref[...]

    # --- residual + norm1 ----------------------------------------------------
    y = _layernorm(x + attn, g1_ref[...], be1_ref[...])

    # --- feed-forward ---------------------------------------------------------
    # TODO(synk): PyTorch activation='gelu' is the exact erf GELU; the tanh
    # approximation is used for a guaranteed Mosaic lowering.
    h1 = jax.nn.gelu(jnp.dot(y.astype(jnp.bfloat16), w1_ref[...],
                             preferred_element_type=jnp.float32) + b1_ref[...],
                     approximate=True)
    h2 = jnp.dot(h1.astype(jnp.bfloat16), w2_ref[...],
                 preferred_element_type=jnp.float32) + b2_ref[...]

    # --- residual + norm2  -> write back into the resident activation -------
    o_ref[...] = _layernorm(y + h2, g2_ref[...], be2_ref[...]).reshape(bb, S, D)


def _pick_bb(B, S, D, ff, H):
    """Batch elements per grid step: fill the MXU (bb*S >= 256) when VMEM
    allows, keep >= 2 batch steps for megacore, always divide B exactly."""
    budget = 24 * 1024 * 1024          # activation-side budget (weights streamed)
    def est(bb):
        m = bb * S
        return 4 * (7 * m * D + 2 * bb * H * S * S + m * ff)
    divs = [d for d in range(1, B + 1) if B % d == 0]
    fit = [d for d in divs if est(d) <= budget] or [1]
    for bb in fit:
        if bb * S >= 256:
            return bb
    multi = [d for d in fit if B // d >= 2]
    return max(multi) if multi else max(fit)


def _wspec(w):
    nd = w.ndim
    return pl.BlockSpec((None,) + w.shape[1:],
                        lambda b, l, _n=nd: (l,) + (0,) * (_n - 1))


def transformer_stack(x_bsd, stack, num_heads):
    """Run a whole nn.TransformerEncoder stack in one pallas_call.

    x_bsd: [B, S, D] (bf16 or f32)  ->  [B, S, D] f32.
    grid = (B//bb batch blocks ['parallel'], L layers ['arbitrary']); the
    activation stays VMEM-resident across the layer axis; per-layer weights
    stream (double-buffered) over the layer axis.
    """
    B, S, D = x_bsd.shape
    L = stack['wqkv'].shape[0]
    ff = stack['w1'].shape[-1]
    bb = _pick_bb(B, S, D, ff, num_heads)

    weights = (stack['wqkv'], stack['bqkv'], stack['wo'], stack['bo'],
               stack['w1'], stack['b1'], stack['w2'], stack['b2'],
               stack['g1'], stack['be1'], stack['g2'], stack['be2'])
    in_specs = ([pl.BlockSpec((bb, S, D), lambda b, l: (b, 0, 0))]
                + [_wspec(w) for w in weights])

    wbytes = sum(int(w.size) * w.dtype.itemsize for w in weights)
    cost = pl.CostEstimate(
        flops=int(2 * L * B * S * D * (4 * D + 2 * ff + 2 * S)),
        transcendentals=int(L * B * (num_heads * S * S + S * ff)),
        bytes_accessed=int(B * S * D * (x_bsd.dtype.itemsize + 4)
                           + (B // bb) * wbytes))

    kern = functools.partial(_tf_layer_kernel, num_heads=num_heads)
    return pl.pallas_call(
        kern,
        out_shape=jax.ShapeDtypeStruct((B, S, D), jnp.float32),
        grid=(B // bb, L),
        in_specs=in_specs,
        out_specs=pl.BlockSpec((bb, S, D), lambda b, l: (b, 0, 0)),
        compiler_params=pltpu.CompilerParams(
            dimension_semantics=("parallel", "arbitrary"),
            vmem_limit_bytes=_VMEM_LIMIT),
        cost_estimate=cost,
    )(x_bsd, *weights)


# ----------------------------------------------------------------------------
# Parameter construction (deterministic synthetic init, kernel-ready layouts)
# ----------------------------------------------------------------------------
def _w(key, shape, scale=0.02):
    return scale * jax.random.normal(key, shape, dtype=jnp.float32)


def make_positional_encoding(d_model, max_len=64):
    position = jnp.arange(max_len, dtype=jnp.float32)[:, None]
    div_term = jnp.exp(jnp.arange(0, d_model, 2, dtype=jnp.float32)
                       * (-math.log(10000.0) / d_model))
    pe = jnp.zeros((max_len, d_model), dtype=jnp.float32)
    pe = pe.at[:, 0::2].set(jnp.sin(position * div_term))
    pe = pe.at[:, 1::2].set(jnp.cos(position * div_term))
    return pe                                           # [max_len, d_model]


def _pad_linear(w, b):
    """[K,N] f32 -> bf16 [K, Np] with N lane-padded to 128; bias f32 [1, Np]."""
    K, N = w.shape
    Np = _round_up(N, 128)
    wp = jnp.pad(w, ((0, 0), (0, Np - N))).astype(jnp.bfloat16)
    bp = jnp.pad(b.reshape(1, N), ((0, 0), (0, Np - N))).astype(jnp.float32)
    return wp, bp


def init_tf_stack(key, num_layers, d, ff, num_heads):
    """Layer-stacked, matmul-ready weights.

    * matmul weights bf16 in [K, N] layout, stacked on a leading layer axis.
    * 1/sqrt(head_dim) attention scale folded into the Q columns of wqkv
      (and would be folded into the Q bias, which is zero here).
    * wo stored head-major [H, hd, D] so the head merge is H plain 2-D dots.
    """
    assert d % num_heads == 0
    hd = d // num_heads
    qscale = 1.0 / math.sqrt(hd)
    keys = jax.random.split(key, num_layers)

    def one(k):
        ks = jax.random.split(k, 4)
        wqkv = _w(ks[0], (d, 3 * d)).at[:, :d].multiply(qscale)
        return dict(
            wqkv=wqkv.astype(jnp.bfloat16),
            bqkv=jnp.zeros((1, 3 * d), jnp.float32),
            wo=_w(ks[1], (d, d)).reshape(num_heads, hd, d).astype(jnp.bfloat16),
            bo=jnp.zeros((1, d), jnp.float32),
            w1=_w(ks[2], (d, ff)).astype(jnp.bfloat16),
            b1=jnp.zeros((1, ff), jnp.float32),
            w2=_w(ks[3], (ff, d)).astype(jnp.bfloat16),
            b2=jnp.zeros((1, d), jnp.float32),
            g1=jnp.ones((1, d), jnp.float32), be1=jnp.zeros((1, d), jnp.float32),
            g2=jnp.ones((1, d), jnp.float32), be2=jnp.zeros((1, d), jnp.float32))

    layers = [one(k) for k in keys]
    return {name: jnp.stack([lyr[name] for lyr in layers], axis=0)
            for name in layers[0]}


def init_params(key, *, njoints, nfeats, latent_dim, ff_size, num_layers,
                num_heads, seq_len, max_len=64):
    input_feats = njoints * nfeats
    keys = jax.random.split(key, 8)
    in_w, in_b = _pad_linear(_w(keys[2], (input_feats, latent_dim)),
                             jnp.zeros((latent_dim,), jnp.float32))
    cond_w, cond_b = _pad_linear(_w(keys[3], (input_feats, latent_dim)),
                                 jnp.zeros((latent_dim,), jnp.float32))
    out_w, out_b = _pad_linear(_w(keys[5], (latent_dim, input_feats)),
                               jnp.zeros((input_feats,), jnp.float32))
    params = dict(
        pe=make_positional_encoding(latent_dim, max_len),
        # TimestepEmbedder MLP + embed_motion are tiny -> left to XLA.
        time_w1=_w(keys[0], (latent_dim, latent_dim)),
        time_b1=jnp.zeros((latent_dim,), jnp.float32),
        time_w2=_w(keys[1], (latent_dim, latent_dim)),
        time_b2=jnp.zeros((latent_dim,), jnp.float32),
        in_w=in_w, in_b=in_b,                    # InputProcess
        cond_w=cond_w, cond_b=cond_b,            # CondProjection
        motion_w=_w(keys[4], (latent_dim, latent_dim)),   # embed_motion
        motion_b=jnp.zeros((latent_dim,), jnp.float32),
        out_w=out_w, out_b=out_b,                # OutputProcess
        null_cond_embed=jax.random.normal(keys[6], (seq_len, 1, latent_dim),
                                          dtype=jnp.float32),
    )
    k_cond, k_enc = jax.random.split(keys[7])
    params['cond_stack'] = init_tf_stack(k_cond, 2, latent_dim, ff_size,
                                         num_heads)
    params['enc_stack'] = init_tf_stack(k_enc, num_layers, latent_dim, ff_size,
                                        num_heads)
    return params


# ----------------------------------------------------------------------------
# Forward pass (eval mode: all dropout layers are identity), batch-major.
# ----------------------------------------------------------------------------
def null_cond_encoder_m2mdm_forward(params, x, timesteps, y_motion,
                                    cond_mask_prob, *, num_heads):
    """
    x:         [B, njoints, nfeats, T]       (x_t in the paper)
    timesteps: [B] int32
    y_motion:  [B, njoints, nfeats, seq_len] (y['motion'])
    returns:   [B, njoints, nfeats, T]
    """
    B, nj, nf, T = x.shape
    F = nj * nf
    D = params['time_w1'].shape[0]
    pe = params['pe']                                              # [max_len, D]

    # ---- embed_timestep: pe[t] -> Linear -> SiLU -> Linear (tiny, XLA) ------
    t_emb = jnp.take(pe, timesteps, axis=0)                        # [B, D]
    h = jax.nn.silu(jnp.dot(t_emb, params['time_w1']) + params['time_b1'])
    emb = jnp.dot(h, params['time_w2']) + params['time_b2']        # [B, D]

    # ---- cond_projection + pos-enc + cond_encoder (2 fused layers) ----------
    Tc = y_motion.shape[-1]
    cond2d = jnp.transpose(y_motion, (0, 3, 1, 2)).reshape(B * Tc, F)
    cond = linear_tiled(cond2d, params['cond_w'], params['cond_b'], D,
                        out_dtype=jnp.bfloat16).reshape(B, Tc, D)
    cond = cond + pe[:Tc][None].astype(jnp.bfloat16)
    cond_tokens = transformer_stack(cond, params['cond_stack'], num_heads)  # f32

    # ---- null-cond masking + mean pool + embed_motion -----------------------
    null_b = jnp.transpose(params['null_cond_embed'], (1, 0, 2))   # [1, Tc, D]
    if cond_mask_prob == 1.0:
        keep = jnp.zeros((B, 1, 1), dtype=bool)
    elif cond_mask_prob == 0.0:
        keep = jnp.ones((B, 1, 1), dtype=bool)
    else:
        # TODO(synk): torch .uniform_(0,1) RNG not reproducible in JAX; a fixed
        # deterministic key is used (only 0.0 / 1.0 are exact).
        keep = (jax.random.uniform(jax.random.PRNGKey(123), (B,))
                > cond_mask_prob)[:, None, None]
    cond_mask = jnp.where(keep, cond_tokens, null_b)               # [B, Tc, D]
    pooled = jnp.mean(cond_mask, axis=1)                           # [B, D]
    emb = emb + jnp.dot(pooled, params['motion_w']) + params['motion_b']

    # ---- input_process -------------------------------------------------------
    x2d = jnp.transpose(x, (0, 3, 1, 2)).reshape(B * T, F)
    xp = linear_tiled(x2d, params['in_w'], params['in_b'], D,
                      out_dtype=jnp.bfloat16).reshape(B, T, D)

    # ---- concat time token, pos-enc, main transformer encoder (fused) -------
    xseq = jnp.concatenate([emb.astype(jnp.bfloat16)[:, None, :], xp], axis=1)
    xseq = xseq + pe[:T + 1][None].astype(jnp.bfloat16)            # [B, T+1, D]
    enc = transformer_stack(xseq, params['enc_stack'], num_heads)  # [B,T+1,D]
    out = enc[:, 1:, :]                                            # [B, T, D]

    # ---- output_process ------------------------------------------------------
    out = linear_tiled(out.reshape(B * T, D), params['out_w'], params['out_b'],
                       F).reshape(B, T, nj, nf)
    out = jnp.transpose(out, (0, 2, 3, 1))                         # [B,nj,nf,T]
    # TODO(synk): Rot2xyz (self.smpl) is constructed in __init__ but never used
    # in forward(), so it is not implemented here.
    return out


# ----------------------------------------------------------------------------
# Example / smoke test
# ----------------------------------------------------------------------------
if __name__ == "__main__":
    NJOINTS, NFEATS = 4, 3
    LATENT_DIM, FF_SIZE = 32, 64
    NUM_HEADS, NUM_LAYERS = 4, 2
    SEQ_LEN = 8          # cond sequence length (== null_cond_embed seq_len)
    T_FRAMES = 8         # motion frames of x
    BATCH = 2

    key = jax.random.PRNGKey(0)
    kp, kx, ky, kt = jax.random.split(key, 4)

    params = init_params(kp, njoints=NJOINTS, nfeats=NFEATS,
                         latent_dim=LATENT_DIM, ff_size=FF_SIZE,
                         num_layers=NUM_LAYERS, num_heads=NUM_HEADS,
                         seq_len=SEQ_LEN)

    x = jax.random.normal(kx, (BATCH, NJOINTS, NFEATS, T_FRAMES),
                          dtype=jnp.float32)
    y_motion = jax.random.normal(ky, (BATCH, NJOINTS, NFEATS, SEQ_LEN),
                                 dtype=jnp.float32)
    timesteps = jax.random.randint(kt, (BATCH,), 0, 50, dtype=jnp.int32)

    fwd = jax.jit(functools.partial(null_cond_encoder_m2mdm_forward,
                                    cond_mask_prob=0.0, num_heads=NUM_HEADS))
    out = fwd(params, x, timesteps, y_motion)
    out = jax.block_until_ready(out)

    assert out.shape == (BATCH, NJOINTS, NFEATS, T_FRAMES), out.shape
    assert out.dtype == jnp.float32
    assert bool(jnp.all(jnp.isfinite(out)))
    print("KERNEL_OK")
</pallas_src>

<mosaic_0001>
module attributes {stable_mosaic.version = 11 : i64} {
  func.func @_linear_kernel(%arg0: i32, %arg1: memref<16x12xf32, #tpu.memory_space<vmem>>, %arg2: memref<12x128xbf16, #tpu.memory_space<vmem>>, %arg3: memref<1x128xf32, #tpu.memory_space<vmem>>, %arg4: memref<16x128xbf16, #tpu.memory_space<vmem>>) attributes {dimension_semantics = [#tpu.dimension_semantics<parallel>], iteration_bounds = array<i64: 1>, scalar_prefetch = 0 : i64, scratch_operands = 0 : i64, tpu.core_type = #tpu.core_type<tc>, window_params = [{transform_indices = @transform_0, window_bounds = array<i64: 16, 12>}, {pipeline_mode = #tpu.pipeline_mode<synchronous>, transform_indices = @transform_1, window_bounds = array<i64: 12, 128>}, {pipeline_mode = #tpu.pipeline_mode<synchronous>, transform_indices = @transform_2, window_bounds = array<i64: 1, 128>}, {transform_indices = @transform_3, window_bounds = array<i64: 16, 128>}]} {
    %c0 = arith.constant 0 : index
    %c0_0 = arith.constant 0 : index
    %0 = vector.load %arg1[%c0, %c0_0] : memref<16x12xf32, #tpu.memory_space<vmem>>, vector<16x12xf32>
    %1 = arith.truncf %0 : vector<16x12xf32> to vector<16x12xbf16>
    %c0_1 = arith.constant 0 : index
    %c0_2 = arith.constant 0 : index
    %2 = vector.load %arg2[%c0_1, %c0_2] : memref<12x128xbf16, #tpu.memory_space<vmem>>, vector<12x128xbf16>
    %cst = arith.constant dense<0.000000e+00> : vector<16x128xf32>
    %3 = tpu.matmul %1, %2, %cst {dimension_numbers = #tpu.dot_dimension_numbers<[1], [0], [0], [1], [0, 0, 1, 1], [], []>} : vector<16x12xbf16>, vector<12x128xbf16>, vector<16x128xf32> -> vector<16x128xf32>
    %c0_3 = arith.constant 0 : index
    %c0_4 = arith.constant 0 : index
    %4 = vector.load %arg3[%c0_3, %c0_4] : memref<1x128xf32, #tpu.memory_space<vmem>>, vector<1x128xf32>
    %5 = vector.broadcast %4 : vector<1x128xf32> to vector<16x128xf32>
    %6 = arith.addf %3, %5 : vector<16x128xf32>
    %7 = arith.truncf %6 : vector<16x128xf32> to vector<16x128xbf16>
    %c0_5 = arith.constant 0 : index
    %c0_6 = arith.constant 0 : index
    %8 = vector.load %arg4[%c0_5, %c0_6] : memref<16x128xbf16, #tpu.memory_space<vmem>>, vector<16x128xbf16>
    tpu.vector_store %arg4[%c0_5, %c0_6], %7 {strides = array<i32>} : memref<16x128xbf16, #tpu.memory_space<vmem>>, vector<16x128xbf16>,
    return
  }
  func.func @transform_0(%arg0: i32) -> (i32, i32) {
    %c0_i32 = arith.constant 0 : i32
    %c0_i32_0 = arith.constant 0 : i32
    return %arg0, %c0_i32 : i32, i32
  }
  func.func @transform_1(%arg0: i32) -> (i32, i32) {
    %c0_i32 = arith.constant 0 : i32
    %c0_i32_0 = arith.constant 0 : i32
    %c0_i32_1 = arith.constant 0 : i32
    return %c0_i32, %c0_i32_0 : i32, i32
  }
  func.func @transform_2(%arg0: i32) -> (i32, i32) {
    %c0_i32 = arith.constant 0 : i32
    %c0_i32_0 = arith.constant 0 : i32
    %c0_i32_1 = arith.constant 0 : i32
    return %c0_i32, %c0_i32_0 : i32, i32
  }
  func.func @transform_3(%arg0: i32) -> (i32, i32) {
    %c0_i32 = arith.constant 0 : i32
    %c0_i32_0 = arith.constant 0 : i32
    return %arg0, %c0_i32 : i32, i32
  }
}

module attributes {stable_mosaic.version = 11 : i64} {
  func.func @_tf_layer_kernel(%arg0: i32, %arg1: i32, %arg2: memref<1x8x32xbf16, #tpu.memory_space<vmem>>, %arg3: memref<1x32x96xbf16, #tpu.memory_space<vmem>>, %arg4: memref<1x1x96xf32, #tpu.memory_space<vmem>>, %arg5: memref<1x4x8x32xbf16, #tpu.memory_space<vmem>>, %arg6: memref<1x1x32xf32, #tpu.memory_space<vmem>>, %arg7: memref<1x32x64xbf16, #tpu.memory_space<vmem>>, %arg8: memref<1x1x64xf32, #tpu.memory_space<vmem>>, %arg9: memref<1x64x32xbf16, #tpu.memory_space<vmem>>, %arg10: memref<1x1x32xf32, #tpu.memory_space<vmem>>, %arg11: memref<1x1x32xf32, #tpu.memory_space<vmem>>, %arg12: memref<1x1x32xf32, #tpu.memory_space<vmem>>, %arg13: memref<1x1x32xf32, #tpu.memory_space<vmem>>, %arg14: memref<1x1x32xf32, #tpu.memory_space<vmem>>, %arg15: memref<1x8x32xf32, #tpu.memory_space<vmem>>) attributes {dimension_semantics = [#tpu.dimension_semantics<parallel>, #tpu.dimension_semantics<arbitrary>], iteration_bounds = array<i64: 2, 2>, scalar_prefetch = 0 : i64, scratch_operands = 0 : i64, tpu.core_type = #tpu.core_type<tc>, window_params = [{transform_indices = @transform_0, window_bounds = array<i64: 1, 8, 32>}, {transform_indices = @transform_1, window_bounds = array<i64: 1, 32, 96>}, {transform_indices = @transform_2, window_bounds = array<i64: 1, 1, 96>}, {transform_indices = @transform_3, window_bounds = array<i64: 1, 4, 8, 32>}, {transform_indices = @transform_4, window_bounds = array<i64: 1, 1, 32>}, {transform_indices = @transform_5, window_bounds = array<i64: 1, 32, 64>}, {transform_indices = @transform_6, window_bounds = array<i64: 1, 1, 64>}, {transform_indices = @transform_7, window_bounds = array<i64: 1, 64, 32>}, {transform_indices = @transform_8, window_bounds = array<i64: 1, 1, 32>}, {transform_indices = @transform_9, window_bounds = array<i64: 1, 1, 32>}, {transform_indices = @transform_10, window_bounds = array<i64: 1, 1, 32>}, {transform_indices = @transform_11, window_bounds = array<i64: 1, 1, 32>}, {transform_indices = @transform_12, window_bounds = array<i64: 1, 1, 32>}, {transform_indices = @transform_13, window_bounds = array<i64: 1, 8, 32>}]} {
    %c0_i32 = arith.constant 0 : i32
    %0 = arith.cmpi eq, %arg1, %c0_i32 : i32
    %1 = arith.extui %0 : i1 to i32
    %c0_i32_0 = arith.constant 0 : i32
    %2 = arith.cmpi ne, %1, %c0_i32_0 : i32
    scf.if %2 {
      %c0_76 = arith.constant 0 : index
      %c0_77 = arith.constant 0 : index
      %c0_78 = arith.constant 0 : index
      %172 = vector.load %arg2[%c0_76, %c0_77, %c0_78] : memref<1x8x32xbf16, #tpu.memory_space<vmem>>, vector<1x8x32xbf16>
      %173 = arith.extf %172 : vector<1x8x32xbf16> to vector<1x8x32xf32>
      %c0_79 = arith.constant 0 : index
      %c0_80 = arith.constant 0 : index
      %c0_81 = arith.constant 0 : index
      %174 = vector.load %arg15[%c0_79, %c0_80, %c0_81] : memref<1x8x32xf32, #tpu.memory_space<vmem>>, vector<1x8x32xf32>
      tpu.vector_store %arg15[%c0_79, %c0_80, %c0_81], %173 {strides = array<i32>} : memref<1x8x32xf32, #tpu.memory_space<vmem>>, vector<1x8x32xf32>,
    } else {
    }
    %c0 = arith.constant 0 : index
    %c0_1 = arith.constant 0 : index
    %c0_2 = arith.constant 0 : index
    %3 = vector.load %arg15[%c0, %c0_1, %c0_2] : memref<1x8x32xf32, #tpu.memory_space<vmem>>, vector<1x8x32xf32>
    %4 = vector.shape_cast %3 : vector<1x8x32xf32> to vector<8x32xf32>
    %5 = arith.truncf %4 : vector<8x32xf32> to vector<8x32xbf16>
    %c0_3 = arith.constant 0 : index
    %c0_4 = arith.constant 0 : index
    %c0_5 = arith.constant 0 : index
    %6 = vector.load %arg3[%c0_3, %c0_4, %c0_5] : memref<1x32x96xbf16, #tpu.memory_space<vmem>>, vector<1x32x96xbf16>
    %7 = vector.shape_cast %6 : vector<1x32x96xbf16> to vector<32x96xbf16>
    %cst = arith.constant dense<0.000000e+00> : vector<8x96xf32>
    %8 = tpu.matmul %5, %7, %cst {dimension_numbers = #tpu.dot_dimension_numbers<[1], [0], [0], [1], [0, 0, 1, 1], [], []>} : vector<8x32xbf16>, vector<32x96xbf16>, vector<8x96xf32> -> vector<8x96xf32>
    %c0_6 = arith.constant 0 : index
    %c0_7 = arith.constant 0 : index
    %c0_8 = arith.constant 0 : index
    %9 = vector.load %arg4[%c0_6, %c0_7, %c0_8] : memref<1x1x96xf32, #tpu.memory_space<vmem>>, vector<1x1x96xf32>
    %10 = vector.shape_cast %9 : vector<1x1x96xf32> to vector<1x96xf32>
    %11 = vector.broadcast %10 : vector<1x96xf32> to vector<8x96xf32>
    %12 = arith.addf %8, %11 : vector<8x96xf32>
    %13 = vector.extract_strided_slice %12 {offsets = [0, 0], sizes = [8, 8], strides = [1, 1]} : vector<8x96xf32> to vector<8x8xf32>
    %14 = vector.extract_strided_slice %12 {offsets = [0, 8], sizes = [8, 8], strides = [1, 1]} : vector<8x96xf32> to vector<8x8xf32>
    %15 = vector.extract_strided_slice %12 {offsets = [0, 16], sizes = [8, 8], strides = [1, 1]} : vector<8x96xf32> to vector<8x8xf32>
    %16 = vector.extract_strided_slice %12 {offsets = [0, 24], sizes = [8, 8], strides = [1, 1]} : vector<8x96xf32> to vector<8x8xf32>
    %17 = vector.shape_cast %13 : vector<8x8xf32> to vector<1x8x8xf32>
    %18 = vector.shape_cast %14 : vector<8x8xf32> to vector<1x8x8xf32>
    %19 = vector.shape_cast %15 : vector<8x8xf32> to vector<1x8x8xf32>
    %20 = vector.shape_cast %16 : vector<8x8xf32> to vector<1x8x8xf32>
    %21 = tpu.concatenate %17, %18, %19, %20 in 0 : vector<1x8x8xf32>, vector<1x8x8xf32>, vector<1x8x8xf32>, vector<1x8x8xf32> -> vector<4x8x8xf32>
    %22 = arith.truncf %21 : vector<4x8x8xf32> to vector<4x8x8xbf16>
    %23 = vector.extract_strided_slice %12 {offsets = [0, 32], sizes = [8, 8], strides = [1, 1]} : vector<8x96xf32> to vector<8x8xf32>
    %24 = vector.extract_strided_slice %12 {offsets = [0, 40], sizes = [8, 8], strides = [1, 1]} : vector<8x96xf32> to vector<8x8xf32>
    %25 = vector.extract_strided_slice %12 {offsets = [0, 48], sizes = [8, 8], strides = [1, 1]} : vector<8x96xf32> to vector<8x8xf32>
    %26 = vector.extract_strided_slice %12 {offsets = [0, 56], sizes = [8, 8], strides = [1, 1]} : vector<8x96xf32> to vector<8x8xf32>
    %27 = vector.shape_cast %23 : vector<8x8xf32> to vector<1x8x8xf32>
    %28 = vector.shape_cast %24 : vector<8x8xf32> to vector<1x8x8xf32>
    %29 = vector.shape_cast %25 : vector<8x8xf32> to vector<1x8x8xf32>
    %30 = vector.shape_cast %26 : vector<8x8xf32> to vector<1x8x8xf32>
    %31 = tpu.concatenate %27, %28, %29, %30 in 0 : vector<1x8x8xf32>, vector<1x8x8xf32>, vector<1x8x8xf32>, vector<1x8x8xf32> -> vector<4x8x8xf32>
    %32 = arith.truncf %31 : vector<4x8x8xf32> to vector<4x8x8xbf16>
    %33 = vector.extract_strided_slice %12 {offsets = [0, 64], sizes = [8, 8], strides = [1, 1]} : vector<8x96xf32> to vector<8x8xf32>
    %34 = vector.extract_strided_slice %12 {offsets = [0, 72], sizes = [8, 8], strides = [1, 1]} : vector<8x96xf32> to vector<8x8xf32>
    %35 = vector.extract_strided_slice %12 {offsets = [0, 80], sizes = [8, 8], strides = [1, 1]} : vector<8x96xf32> to vector<8x8xf32>
    %36 = vector.extract_strided_slice %12 {offsets = [0, 88], sizes = [8, 8], strides = [1, 1]} : vector<8x96xf32> to vector<8x8xf32>
    %37 = vector.shape_cast %33 : vector<8x8xf32> to vector<1x8x8xf32>
    %38 = vector.shape_cast %34 : vector<8x8xf32> to vector<1x8x8xf32>
    %39 = vector.shape_cast %35 : vector<8x8xf32> to vector<1x8x8xf32>
    %40 = vector.shape_cast %36 : vector<8x8xf32> to vector<1x8x8xf32>
    %41 = tpu.concatenate %37, %38, %39, %40 in 0 : vector<1x8x8xf32>, vector<1x8x8xf32>, vector<1x8x8xf32>, vector<1x8x8xf32> -> vector<4x8x8xf32>
    %42 = arith.truncf %41 : vector<4x8x8xf32> to vector<4x8x8xbf16>
    "tpu.trace_start"() <{level = 10 : i32, message = "gqd,gkd->gqk"}> : () -> ()
    %cst_9 = arith.constant dense<0.000000e+00> : vector<4x8x8xf32>
    %43 = tpu.matmul %22, %32, %cst_9 {dimension_numbers = #tpu.dot_dimension_numbers<[2], [2], [1], [1], [0, 0, 0, 1, 1, 1], [0], [0]>} : vector<4x8x8xbf16>, vector<4x8x8xbf16>, vector<4x8x8xf32> -> vector<4x8x8xf32>
    "tpu.trace_stop"() : () -> ()
    %cst_10 = arith.constant dense<0xFF800000> : vector<4x8xf32>
    %44 = vector.multi_reduction <maximumf>, %43, %cst_10 [2] : vector<4x8x8xf32> to vector<4x8xf32>
    %45 = vector.shape_cast %44 : vector<4x8xf32> to vector<4x8x1xf32>
    %46 = vector.broadcast %45 : vector<4x8x1xf32> to vector<4x8x8xf32>
    %47 = arith.subf %43, %46 : vector<4x8x8xf32>
    %48 = math.exp %47 : vector<4x8x8xf32>
    %cst_11 = arith.constant dense<0.000000e+00> : vector<4x8xf32>
    %49 = vector.multi_reduction <add>, %48, %cst_11 [2] : vector<4x8x8xf32> to vector<4x8xf32>
    %50 = vector.shape_cast %49 : vector<4x8xf32> to vector<4x8x1xf32>
    %51 = tpu.reciprocal %50 {approx = true} : vector<4x8x1xf32> -> vector<4x8x1xf32>
    %52 = vector.broadcast %51 : vector<4x8x1xf32> to vector<4x8x8xf32>
    %53 = arith.mulf %48, %52 : vector<4x8x8xf32>
    %54 = arith.truncf %53 : vector<4x8x8xf32> to vector<4x8x8xbf16>
    "tpu.trace_start"() <{level = 10 : i32, message = "gqk,gkd->gqd"}> : () -> ()
    %cst_12 = arith.constant dense<0.000000e+00> : vector<4x8x8xf32>
    %55 = tpu.matmul %54, %42, %cst_12 {dimension_numbers = #tpu.dot_dimension_numbers<[2], [1], [1], [2], [0, 0, 0, 1, 1, 2], [0], [0]>} : vector<4x8x8xbf16>, vector<4x8x8xbf16>, vector<4x8x8xf32> -> vector<4x8x8xf32>
    "tpu.trace_stop"() : () -> ()
    %56 = vector.extract_strided_slice %55 {offsets = [0, 0, 0], sizes = [1, 8, 8], strides = [1, 1, 1]} : vector<4x8x8xf32> to vector<1x8x8xf32>
    %57 = vector.shape_cast %56 : vector<1x8x8xf32> to vector<8x8xf32>
    %58 = arith.truncf %57 : vector<8x8xf32> to vector<8x8xbf16>
    %c0_13 = arith.constant 0 : index
    %c0_14 = arith.constant 0 : index
    %c0_15 = arith.constant 0 : index
    %c0_16 = arith.constant 0 : index
    %59 = vector.load %arg5[%c0_13, %c0_14, %c0_15, %c0_16] : memref<1x4x8x32xbf16, #tpu.memory_space<vmem>>, vector<1x1x8x32xbf16>
    %60 = vector.shape_cast %59 : vector<1x1x8x32xbf16> to vector<8x32xbf16>
    %cst_17 = arith.constant dense<0.000000e+00> : vector<8x32xf32>
    %61 = tpu.matmul %58, %60, %cst_17 {dimension_numbers = #tpu.dot_dimension_numbers<[1], [0], [0], [1], [0, 0, 1, 1], [], []>} : vector<8x8xbf16>, vector<8x32xbf16>, vector<8x32xf32> -> vector<8x32xf32>
    %62 = vector.extract_strided_slice %55 {offsets = [1, 0, 0], sizes = [1, 8, 8], strides = [1, 1, 1]} : vector<4x8x8xf32> to vector<1x8x8xf32>
    %63 = vector.shape_cast %62 : vector<1x8x8xf32> to vector<8x8xf32>
    %64 = arith.truncf %63 : vector<8x8xf32> to vector<8x8xbf16>
    %c0_18 = arith.constant 0 : index
    %c1 = arith.constant 1 : index
    %c0_19 = arith.constant 0 : index
    %c0_20 = arith.constant 0 : index
    %65 = vector.load %arg5[%c0_18, %c1, %c0_19, %c0_20] : memref<1x4x8x32xbf16, #tpu.memory_space<vmem>>, vector<1x1x8x32xbf16>
    %66 = vector.shape_cast %65 : vector<1x1x8x32xbf16> to vector<8x32xbf16>
    %cst_21 = arith.constant dense<0.000000e+00> : vector<8x32xf32>
    %67 = tpu.matmul %64, %66, %cst_21 {dimension_numbers = #tpu.dot_dimension_numbers<[1], [0], [0], [1], [0, 0, 1, 1], [], []>} : vector<8x8xbf16>, vector<8x32xbf16>, vector<8x32xf32> -> vector<8x32xf32>
    %68 = arith.addf %61, %67 : vector<8x32xf32>
    %69 = vector.extract_strided_slice %55 {offsets = [2, 0, 0], sizes = [1, 8, 8], strides = [1, 1, 1]} : vector<4x8x8xf32> to vector<1x8x8xf32>
    %70 = vector.shape_cast %69 : vector<1x8x8xf32> to vector<8x8xf32>
    %71 = arith.truncf %70 : vector<8x8xf32> to vector<8x8xbf16>
    %c0_22 = arith.constant 0 : index
    %c2 = arith.constant 2 : index
    %c0_23 = arith.constant 0 : index
    %c0_24 = arith.constant 0 : index
    %72 = vector.load %arg5[%c0_22, %c2, %c0_23, %c0_24] : memref<1x4x8x32xbf16, #tpu.memory_space<vmem>>, vector<1x1x8x32xbf16>
    %73 = vector.shape_cast %72 : vector<1x1x8x32xbf16> to vector<8x32xbf16>
    %cst_25 = arith.constant dense<0.000000e+00> : vector<8x32xf32>
    %74 = tpu.matmul %71, %73, %cst_25 {dimension_numbers = #tpu.dot_dimension_numbers<[1], [0], [0], [1], [0, 0, 1, 1], [], []>} : vector<8x8xbf16>, vector<8x32xbf16>, vector<8x32xf32> -> vector<8x32xf32>
    %75 = arith.addf %68, %74 : vector<8x32xf32>
    %76 = vector.extract_strided_slice %55 {offsets = [3, 0, 0], sizes = [1, 8, 8], strides = [1, 1, 1]} : vector<4x8x8xf32> to vector<1x8x8xf32>
    %77 = vector.shape_cast %76 : vector<1x8x8xf32> to vector<8x8xf32>
    %78 = arith.truncf %77 : vector<8x8xf32> to vector<8x8xbf16>
    %c0_26 = arith.constant 0 : index
    %c3 = arith.constant 3 : index
    %c0_27 = arith.constant 0 : index
    %c0_28 = arith.constant 0 : index
    %79 = vector.load %arg5[%c0_26, %c3, %c0_27, %c0_28] : memref<1x4x8x32xbf16, #tpu.memory_space<vmem>>, vector<1x1x8x32xbf16>
    %80 = vector.shape_cast %79 : vector<1x1x8x32xbf16> to vector<8x32xbf16>
    %cst_29 = arith.constant dense<0.000000e+00> : vector<8x32xf32>
    %81 = tpu.matmul %78, %80, %cst_29 {dimension_numbers = #tpu.dot_dimension_numbers<[1], [0], [0], [1], [0, 0, 1, 1], [], []>} : vector<8x8xbf16>, vector<8x32xbf16>, vector<8x32xf32> -> vector<8x32xf32>
    %82 = arith.addf %75, %81 : vector<8x32xf32>
    %c0_30 = arith.constant 0 : index
    %c0_31 = arith.constant 0 : index
    %c0_32 = arith.constant 0 : index
    %83 = vector.load %arg6[%c0_30, %c0_31, %c0_32] : memref<1x1x32xf32, #tpu.memory_space<vmem>>, vector<1x1x32xf32>
    %84 = vector.shape_cast %83 : vector<1x1x32xf32> to vector<1x32xf32>
    %85 = vector.broadcast %84 : vector<1x32xf32> to vector<8x32xf32>
    %86 = arith.addf %82, %85 : vector<8x32xf32>
    %87 = arith.addf %4, %86 : vector<8x32xf32>
    %c0_33 = arith.constant 0 : index
    %c0_34 = arith.constant 0 : index
    %c0_35 = arith.constant 0 : index
    %88 = vector.load %arg11[%c0_33, %c0_34, %c0_35] : memref<1x1x32xf32, #tpu.memory_space<vmem>>, vector<1x1x32xf32>
    %89 = vector.shape_cast %88 : vector<1x1x32xf32> to vector<1x32xf32>
    %c0_36 = arith.constant 0 : index
    %c0_37 = arith.constant 0 : index
    %c0_38 = arith.constant 0 : index
    %90 = vector.load %arg12[%c0_36, %c0_37, %c0_38] : memref<1x1x32xf32, #tpu.memory_space<vmem>>, vector<1x1x32xf32>
    %91 = vector.shape_cast %90 : vector<1x1x32xf32> to vector<1x32xf32>
    %cst_39 = arith.constant dense<0.000000e+00> : vector<8xf32>
    %92 = vector.multi_reduction <add>, %87, %cst_39 [1] : vector<8x32xf32> to vector<8xf32>
    %93 = vector.shape_cast %92 : vector<8xf32> to vector<8x1xf32>
    %cst_40 = arith.constant 3.200000e+01 : f32
    %94 = vector.broadcast %cst_40 : f32 to vector<8x1xf32>
    %95 = arith.divf %93, %94 : vector<8x1xf32>
    %96 = vector.broadcast %95 : vector<8x1xf32> to vector<8x32xf32>
    %97 = arith.subf %87, %96 : vector<8x32xf32>
    %98 = arith.mulf %97, %97 : vector<8x32xf32>
    %cst_41 = arith.constant dense<0.000000e+00> : vector<8xf32>
    %99 = vector.multi_reduction <add>, %98, %cst_41 [1] : vector<8x32xf32> to vector<8xf32>
    %100 = vector.shape_cast %99 : vector<8xf32> to vector<8x1xf32>
    %cst_42 = arith.constant 3.200000e+01 : f32
    %101 = vector.broadcast %cst_42 : f32 to vector<8x1xf32>
    %102 = arith.divf %100, %101 : vector<8x1xf32>
    %103 = vector.broadcast %95 : vector<8x1xf32> to vector<8x32xf32>
    %104 = arith.subf %87, %103 : vector<8x32xf32>
    %cst_43 = arith.constant 9.99999974E-6 : f32
    %105 = vector.broadcast %cst_43 : f32 to vector<8x1xf32>
    %106 = arith.addf %102, %105 : vector<8x1xf32>
    %107 = math.rsqrt %106 : vector<8x1xf32>
    %108 = vector.broadcast %107 : vector<8x1xf32> to vector<8x32xf32>
    %109 = arith.mulf %104, %108 : vector<8x32xf32>
    %110 = vector.broadcast %89 : vector<1x32xf32> to vector<8x32xf32>
    %111 = arith.mulf %109, %110 : vector<8x32xf32>
    %112 = vector.broadcast %91 : vector<1x32xf32> to vector<8x32xf32>
    %113 = arith.addf %111, %112 : vector<8x32xf32>
    %114 = arith.truncf %113 : vector<8x32xf32> to vector<8x32xbf16>
    %c0_44 = arith.constant 0 : index
    %c0_45 = arith.constant 0 : index
    %c0_46 = arith.constant 0 : index
    %115 = vector.load %arg7[%c0_44, %c0_45, %c0_46] : memref<1x32x64xbf16, #tpu.memory_space<vmem>>, vector<1x32x64xbf16>
    %116 = vector.shape_cast %115 : vector<1x32x64xbf16> to vector<32x64xbf16>
    %cst_47 = arith.constant dense<0.000000e+00> : vector<8x64xf32>
    %117 = tpu.matmul %114, %116, %cst_47 {dimension_numbers = #tpu.dot_dimension_numbers<[1], [0], [0], [1], [0, 0, 1, 1], [], []>} : vector<8x32xbf16>, vector<32x64xbf16>, vector<8x64xf32> -> vector<8x64xf32>
    %c0_48 = arith.constant 0 : index
    %c0_49 = arith.constant 0 : index
    %c0_50 = arith.constant 0 : index
    %118 = vector.load %arg8[%c0_48, %c0_49, %c0_50] : memref<1x1x64xf32, #tpu.memory_space<vmem>>, vector<1x1x64xf32>
    %119 = vector.shape_cast %118 : vector<1x1x64xf32> to vector<1x64xf32>
    %120 = vector.broadcast %119 : vector<1x64xf32> to vector<8x64xf32>
    %121 = arith.addf %117, %120 : vector<8x64xf32>
    %122 = arith.mulf %121, %121 : vector<8x64xf32>
    %123 = arith.mulf %121, %122 : vector<8x64xf32>
    %cst_51 = arith.constant 4.471500e-02 : f32
    %124 = vector.broadcast %cst_51 : f32 to vector<8x64xf32>
    %125 = arith.mulf %124, %123 : vector<8x64xf32>
    %126 = arith.addf %121, %125 : vector<8x64xf32>
    %cst_52 = arith.constant 0.797884583 : f32
    %127 = vector.broadcast %cst_52 : f32 to vector<8x64xf32>
    %128 = arith.mulf %127, %126 : vector<8x64xf32>
    %129 = math.tanh %128 : vector<8x64xf32>
    %cst_53 = arith.constant 1.000000e+00 : f32
    %130 = vector.broadcast %cst_53 : f32 to vector<8x64xf32>
    %131 = arith.addf %130, %129 : vector<8x64xf32>
    %cst_54 = arith.constant 5.000000e-01 : f32
    %132 = vector.broadcast %cst_54 : f32 to vector<8x64xf32>
    %133 = arith.mulf %132, %131 : vector<8x64xf32>
    %134 = arith.mulf %121, %133 : vector<8x64xf32>
    %135 = arith.truncf %134 : vector<8x64xf32> to vector<8x64xbf16>
    %c0_55 = arith.constant 0 : index
    %c0_56 = arith.constant 0 : index
    %c0_57 = arith.constant 0 : index
    %136 = vector.load %arg9[%c0_55, %c0_56, %c0_57] : memref<1x64x32xbf16, #tpu.memory_space<vmem>>, vector<1x64x32xbf16>
    %137 = vector.shape_cast %136 : vector<1x64x32xbf16> to vector<64x32xbf16>
    %cst_58 = arith.constant dense<0.000000e+00> : vector<8x32xf32>
    %138 = tpu.matmul %135, %137, %cst_58 {dimension_numbers = #tpu.dot_dimension_numbers<[1], [0], [0], [1], [0, 0, 1, 1], [], []>} : vector<8x64xbf16>, vector<64x32xbf16>, vector<8x32xf32> -> vector<8x32xf32>
    %c0_59 = arith.constant 0 : index
    %c0_60 = arith.constant 0 : index
    %c0_61 = arith.constant 0 : index
    %139 = vector.load %arg10[%c0_59, %c0_60, %c0_61] : memref<1x1x32xf32, #tpu.memory_space<vmem>>, vector<1x1x32xf32>
    %140 = vector.shape_cast %139 : vector<1x1x32xf32> to vector<1x32xf32>
    %141 = vector.broadcast %140 : vector<1x32xf32> to vector<8x32xf32>
    %142 = arith.addf %138, %141 : vector<8x32xf32>
    %143 = arith.addf %113, %142 : vector<8x32xf32>
    %c0_62 = arith.constant 0 : index
    %c0_63 = arith.constant 0 : index
    %c0_64 = arith.constant 0 : index
    %144 = vector.load %arg13[%c0_62, %c0_63, %c0_64] : memref<1x1x32xf32, #tpu.memory_space<vmem>>, vector<1x1x32xf32>
    %145 = vector.shape_cast %144 : vector<1x1x32xf32> to vector<1x32xf32>
    %c0_65 = arith.constant 0 : index
    %c0_66 = arith.constant 0 : index
    %c0_67 = arith.constant 0 : index
    %146 = vector.load %arg14[%c0_65, %c0_66, %c0_67] : memref<1x1x32xf32, #tpu.memory_space<vmem>>, vector<1x1x32xf32>
    %147 = vector.shape_cast %146 : vector<1x1x32xf32> to vector<1x32xf32>
    %cst_68 = arith.constant dense<0.000000e+00> : vector<8xf32>
    %148 = vector.multi_reduction <add>, %143, %cst_68 [1] : vector<8x32xf32> to vector<8xf32>
    %149 = vector.shape_cast %148 : vector<8xf32> to vector<8x1xf32>
    %cst_69 = arith.constant 3.200000e+01 : f32
    %150 = vector.broadcast %cst_69 : f32 to vector<8x1xf32>
    %151 = arith.divf %149, %150 : vector<8x1xf32>
    %152 = vector.broadcast %151 : vector<8x1xf32> to vector<8x32xf32>
    %153 = arith.subf %143, %152 : vector<8x32xf32>
    %154 = arith.mulf %153, %153 : vector<8x32xf32>
    %cst_70 = arith.constant dense<0.000000e+00> : vector<8xf32>
    %155 = vector.multi_reduction <add>, %154, %cst_70 [1] : vector<8x32xf32> to vector<8xf32>
    %156 = vector.shape_cast %155 : vector<8xf32> to vector<8x1xf32>
    %cst_71 = arith.constant 3.200000e+01 : f32
    %157 = vector.broadcast %cst_71 : f32 to vector<8x1xf32>
    %158 = arith.divf %156, %157 : vector<8x1xf32>
    %159 = vector.broadcast %151 : vector<8x1xf32> to vector<8x32xf32>
    %160 = arith.subf %143, %159 : vector<8x32xf32>
    %cst_72 = arith.constant 9.99999974E-6 : f32
    %161 = vector.broadcast %cst_72 : f32 to vector<8x1xf32>
    %162 = arith.addf %158, %161 : vector<8x1xf32>
    %163 = math.rsqrt %162 : vector<8x1xf32>
    %164 = vector.broadcast %163 : vector<8x1xf32> to vector<8x32xf32>
    %165 = arith.mulf %160, %164 : vector<8x32xf32>
    %166 = vector.broadcast %145 : vector<1x32xf32> to vector<8x32xf32>
    %167 = arith.mulf %165, %166 : vector<8x32xf32>
    %168 = vector.broadcast %147 : vector<1x32xf32> to vector<8x32xf32>
    %169 = arith.addf %167, %168 : vector<8x32xf32>
    %170 = vector.shape_cast %169 : vector<8x32xf32> to vector<1x8x32xf32>
    %c0_73 = arith.constant 0 : index
    %c0_74 = arith.constant 0 : index
    %c0_75 = arith.constant 0 : index
    %171 = vector.load %arg15[%c0_73, %c0_74, %c0_75] : memref<1x8x32xf32, #tpu.memory_space<vmem>>, vector<1x8x32xf32>
    tpu.vector_store %arg15[%c0_73, %c0_74, %c0_75], %170 {strides = array<i32>} : memref<1x8x32xf32, #tpu.memory_space<vmem>>, vector<1x8x32xf32>,
    return
  }
  func.func @transform_0(%arg0: i32, %arg1: i32) -> (i32, i32, i32) {
    %c0_i32 = arith.constant 0 : i32
    %c0_i32_0 = arith.constant 0 : i32
    %c0_i32_1 = arith.constant 0 : i32
    return %arg0, %c0_i32, %c0_i32_0 : i32, i32, i32
  }
  func.func @transform_1(%arg0: i32, %arg1: i32) -> (i32, i32, i32) {
    %c0_i32 = arith.constant 0 : i32
    %c0_i32_0 = arith.constant 0 : i32
    %c0_i32_1 = arith.constant 0 : i32
    return %arg1, %c0_i32, %c0_i32_0 : i32, i32, i32
  }
  func.func @transform_2(%arg0: i32, %arg1: i32) -> (i32, i32, i32) {
    %c0_i32 = arith.constant 0 : i32
    %c0_i32_0 = arith.constant 0 : i32
    %c0_i32_1 = arith.constant 0 : i32
    return %arg1, %c0_i32, %c0_i32_0 : i32, i32, i32
  }
  func.func @transform_3(%arg0: i32, %arg1: i32) -> (i32, i32, i32, i32) {
    %c0_i32 = arith.constant 0 : i32
    %c0_i32_0 = arith.constant 0 : i32
    %c0_i32_1 = arith.constant 0 : i32
    %c0_i32_2 = arith.constant 0 : i32
    return %arg1, %c0_i32, %c0_i32_0, %c0_i32_1 : i32, i32, i32, i32
  }
  func.func @transform_4(%arg0: i32, %arg1: i32) -> (i32, i32, i32) {
    %c0_i32 = arith.constant 0 : i32
    %c0_i32_0 = arith.constant 0 : i32
    %c0_i32_1 = arith.constant 0 : i32
    return %arg1, %c0_i32, %c0_i32_0 : i32, i32, i32
  }
  func.func @transform_5(%arg0: i32, %arg1: i32) -> (i32, i32, i32) {
    %c0_i32 = arith.constant 0 : i32
    %c0_i32_0 = arith.constant 0 : i32
    %c0_i32_1 = arith.constant 0 : i32
    return %arg1, %c0_i32, %c0_i32_0 : i32, i32, i32
  }
  func.func @transform_6(%arg0: i32, %arg1: i32) -> (i32, i32, i32) {
    %c0_i32 = arith.constant 0 : i32
    %c0_i32_0 = arith.constant 0 : i32
    %c0_i32_1 = arith.constant 0 : i32
    return %arg1, %c0_i32, %c0_i32_0 : i32, i32, i32
  }
  func.func @transform_7(%arg0: i32, %arg1: i32) -> (i32, i32, i32) {
    %c0_i32 = arith.constant 0 : i32
    %c0_i32_0 = arith.constant 0 : i32
    %c0_i32_1 = arith.constant 0 : i32
    return %arg1, %c0_i32, %c0_i32_0 : i32, i32, i32
  }
  func.func @transform_8(%arg0: i32, %arg1: i32) -> (i32, i32, i32) {
    %c0_i32 = arith.constant 0 : i32
    %c0_i32_0 = arith.constant 0 : i32
    %c0_i32_1 = arith.constant 0 : i32
    return %arg1, %c0_i32, %c0_i32_0 : i32, i32, i32
  }
  func.func @transform_9(%arg0: i32, %arg1: i32) -> (i32, i32, i32) {
    %c0_i32 = arith.constant 0 : i32
    %c0_i32_0 = arith.constant 0 : i32
    %c0_i32_1 = arith.constant 0 : i32
    return %arg1, %c0_i32, %c0_i32_0 : i32, i32, i32
  }
  func.func @transform_10(%arg0: i32, %arg1: i32) -> (i32, i32, i32) {
    %c0_i32 = arith.constant 0 : i32
    %c0_i32_0 = arith.constant 0 : i32
    %c0_i32_1 = arith.constant 0 : i32
    return %arg1, %c0_i32, %c0_i32_0 : i32, i32, i32
  }
  func.func @transform_11(%arg0: i32, %arg1: i32) -> (i32, i32, i32) {
    %c0_i32 = arith.constant 0 : i32
    %c0_i32_0 = arith.constant 0 : i32
    %c0_i32_1 = arith.constant 0 : i32
    return %arg1, %c0_i32, %c0_i32_0 : i32, i32, i32
  }
  func.func @transform_12(%arg0: i32, %arg1: i32) -> (i32, i32, i32) {
    %c0_i32 = arith.constant 0 : i32
    %c0_i32_0 = arith.constant 0 : i32
    %c0_i32_1 = arith.constant 0 : i32
    return %arg1, %c0_i32, %c0_i32_0 : i32, i32, i32
  }
  func.func @transform_13(%arg0: i32, %arg1: i32) -> (i32, i32, i32) {
    %c0_i32 = arith.constant 0 : i32
    %c0_i32_0 = arith.constant 0 : i32
    %c0_i32_1 = arith.constant 0 : i32
    return %arg0, %c0_i32, %c0_i32_0 : i32, i32, i32
  }
}

module attributes {stable_mosaic.version = 11 : i64} {
  func.func @_linear_kernel(%arg0: i32, %arg1: memref<16x32xf32, #tpu.memory_space<vmem>>, %arg2: memref<32x128xbf16, #tpu.memory_space<vmem>>, %arg3: memref<1x128xf32, #tpu.memory_space<vmem>>, %arg4: memref<16x128xf32, #tpu.memory_space<vmem>>) attributes {dimension_semantics = [#tpu.dimension_semantics<parallel>], iteration_bounds = array<i64: 1>, scalar_prefetch = 0 : i64, scratch_operands = 0 : i64, tpu.core_type = #tpu.core_type<tc>, window_params = [{transform_indices = @transform_0, window_bounds = array<i64: 16, 32>}, {pipeline_mode = #tpu.pipeline_mode<synchronous>, transform_indices = @transform_1, window_bounds = array<i64: 32, 128>}, {pipeline_mode = #tpu.pipeline_mode<synchronous>, transform_indices = @transform_2, window_bounds = array<i64: 1, 128>}, {transform_indices = @transform_3, window_bounds = array<i64: 16, 128>}]} {
    %c0 = arith.constant 0 : index
    %c0_0 = arith.constant 0 : index
    %0 = vector.load %arg1[%c0, %c0_0] : memref<16x32xf32, #tpu.memory_space<vmem>>, vector<16x32xf32>
    %1 = arith.truncf %0 : vector<16x32xf32> to vector<16x32xbf16>
    %c0_1 = arith.constant 0 : index
    %c0_2 = arith.constant 0 : index
    %2 = vector.load %arg2[%c0_1, %c0_2] : memref<32x128xbf16, #tpu.memory_space<vmem>>, vector<32x128xbf16>
    %cst = arith.constant dense<0.000000e+00> : vector<16x128xf32>
    %3 = tpu.matmul %1, %2, %cst {dimension_numbers = #tpu.dot_dimension_numbers<[1], [0], [0], [1], [0, 0, 1, 1], [], []>} : vector<16x32xbf16>, vector<32x128xbf16>, vector<16x128xf32> -> vector<16x128xf32>
    %c0_3 = arith.constant 0 : index
    %c0_4 = arith.constant 0 : index
    %4 = vector.load %arg3[%c0_3, %c0_4] : memref<1x128xf32, #tpu.memory_space<vmem>>, vector<1x128xf32>
    %5 = vector.broadcast %4 : vector<1x128xf32> to vector<16x128xf32>
    %6 = arith.addf %3, %5 : vector<16x128xf32>
    %c0_5 = arith.constant 0 : index
    %c0_6 = arith.constant 0 : index
    %7 = vector.load %arg4[%c0_5, %c0_6] : memref<16x128xf32, #tpu.memory_space<vmem>>, vector<16x128xf32>
    tpu.vector_store %arg4[%c0_5, %c0_6], %6 {strides = array<i32>} : memref<16x128xf32, #tpu.memory_space<vmem>>, vector<16x128xf32>,
    return
  }
  func.func @transform_0(%arg0: i32) -> (i32, i32) {
    %c0_i32 = arith.constant 0 : i32
    %c0_i32_0 = arith.constant 0 : i32
    return %arg0, %c0_i32 : i32, i32
  }
  func.func @transform_1(%arg0: i32) -> (i32, i32) {
    %c0_i32 = arith.constant 0 : i32
    %c0_i32_0 = arith.constant 0 : i32
    %c0_i32_1 = arith.constant 0 : i32
    return %c0_i32, %c0_i32_0 : i32, i32
  }
  func.func @transform_2(%arg0: i32) -> (i32, i32) {
    %c0_i32 = arith.constant 0 : i32
    %c0_i32_0 = arith.constant 0 : i32
    %c0_i32_1 = arith.constant 0 : i32
    return %c0_i32, %c0_i32_0 : i32, i32
  }
  func.func @transform_3(%arg0: i32) -> (i32, i32) {
    %c0_i32 = arith.constant 0 : i32
    %c0_i32_0 = arith.constant 0 : i32
    return %arg0, %c0_i32 : i32, i32
  }
}

module attributes {stable_mosaic.version = 11 : i64} {
  func.func @_tf_layer_kernel(%arg0: i32, %arg1: i32, %arg2: memref<1x9x32xbf16, #tpu.memory_space<vmem>>, %arg3: memref<1x32x96xbf16, #tpu.memory_space<vmem>>, %arg4: memref<1x1x96xf32, #tpu.memory_space<vmem>>, %arg5: memref<1x4x8x32xbf16, #tpu.memory_space<vmem>>, %arg6: memref<1x1x32xf32, #tpu.memory_space<vmem>>, %arg7: memref<1x32x64xbf16, #tpu.memory_space<vmem>>, %arg8: memref<1x1x64xf32, #tpu.memory_space<vmem>>, %arg9: memref<1x64x32xbf16, #tpu.memory_space<vmem>>, %arg10: memref<1x1x32xf32, #tpu.memory_space<vmem>>, %arg11: memref<1x1x32xf32, #tpu.memory_space<vmem>>, %arg12: memref<1x1x32xf32, #tpu.memory_space<vmem>>, %arg13: memref<1x1x32xf32, #tpu.memory_space<vmem>>, %arg14: memref<1x1x32xf32, #tpu.memory_space<vmem>>, %arg15: memref<1x9x32xf32, #tpu.memory_space<vmem>>) attributes {dimension_semantics = [#tpu.dimension_semantics<parallel>, #tpu.dimension_semantics<arbitrary>], iteration_bounds = array<i64: 2, 2>, scalar_prefetch = 0 : i64, scratch_operands = 0 : i64, tpu.core_type = #tpu.core_type<tc>, window_params = [{transform_indices = @transform_0, window_bounds = array<i64: 1, 9, 32>}, {transform_indices = @transform_1, window_bounds = array<i64: 1, 32, 96>}, {transform_indices = @transform_2, window_bounds = array<i64: 1, 1, 96>}, {transform_indices = @transform_3, window_bounds = array<i64: 1, 4, 8, 32>}, {transform_indices = @transform_4, window_bounds = array<i64: 1, 1, 32>}, {transform_indices = @transform_5, window_bounds = array<i64: 1, 32, 64>}, {transform_indices = @transform_6, window_bounds = array<i64: 1, 1, 64>}, {transform_indices = @transform_7, window_bounds = array<i64: 1, 64, 32>}, {transform_indices = @transform_8, window_bounds = array<i64: 1, 1, 32>}, {transform_indices = @transform_9, window_bounds = array<i64: 1, 1, 32>}, {transform_indices = @transform_10, window_bounds = array<i64: 1, 1, 32>}, {transform_indices = @transform_11, window_bounds = array<i64: 1, 1, 32>}, {transform_indices = @transform_12, window_bounds = array<i64: 1, 1, 32>}, {transform_indices = @transform_13, window_bounds = array<i64: 1, 9, 32>}]} {
    %c0_i32 = arith.constant 0 : i32
    %0 = arith.cmpi eq, %arg1, %c0_i32 : i32
    %1 = arith.extui %0 : i1 to i32
    %c0_i32_0 = arith.constant 0 : i32
    %2 = arith.cmpi ne, %1, %c0_i32_0 : i32
    scf.if %2 {
      %c0_76 = arith.constant 0 : index
      %c0_77 = arith.constant 0 : index
      %c0_78 = arith.constant 0 : index
      %172 = vector.load %arg2[%c0_76, %c0_77, %c0_78] : memref<1x9x32xbf16, #tpu.memory_space<vmem>>, vector<1x9x32xbf16>
      %173 = arith.extf %172 : vector<1x9x32xbf16> to vector<1x9x32xf32>
      %c0_79 = arith.constant 0 : index
      %c0_80 = arith.constant 0 : index
      %c0_81 = arith.constant 0 : index
      %174 = vector.load %arg15[%c0_79, %c0_80, %c0_81] : memref<1x9x32xf32, #tpu.memory_space<vmem>>, vector<1x9x32xf32>
      tpu.vector_store %arg15[%c0_79, %c0_80, %c0_81], %173 {strides = array<i32>} : memref<1x9x32xf32, #tpu.memory_space<vmem>>, vector<1x9x32xf32>,
    } else {
    }
    %c0 = arith.constant 0 : index
    %c0_1 = arith.constant 0 : index
    %c0_2 = arith.constant 0 : index
    %3 = vector.load %arg15[%c0, %c0_1, %c0_2] : memref<1x9x32xf32, #tpu.memory_space<vmem>>, vector<1x9x32xf32>
    %4 = vector.shape_cast %3 : vector<1x9x32xf32> to vector<9x32xf32>
    %5 = arith.truncf %4 : vector<9x32xf32> to vector<9x32xbf16>
    %c0_3 = arith.constant 0 : index
    %c0_4 = arith.constant 0 : index
    %c0_5 = arith.constant 0 : index
    %6 = vector.load %arg3[%c0_3, %c0_4, %c0_5] : memref<1x32x96xbf16, #tpu.memory_space<vmem>>, vector<1x32x96xbf16>
    %7 = vector.shape_cast %6 : vector<1x32x96xbf16> to vector<32x96xbf16>
    %cst = arith.constant dense<0.000000e+00> : vector<9x96xf32>
    %8 = tpu.matmul %5, %7, %cst {dimension_numbers = #tpu.dot_dimension_numbers<[1], [0], [0], [1], [0, 0, 1, 1], [], []>} : vector<9x32xbf16>, vector<32x96xbf16>, vector<9x96xf32> -> vector<9x96xf32>
    %c0_6 = arith.constant 0 : index
    %c0_7 = arith.constant 0 : index
    %c0_8 = arith.constant 0 : index
    %9 = vector.load %arg4[%c0_6, %c0_7, %c0_8] : memref<1x1x96xf32, #tpu.memory_space<vmem>>, vector<1x1x96xf32>
    %10 = vector.shape_cast %9 : vector<1x1x96xf32> to vector<1x96xf32>
    %11 = vector.broadcast %10 : vector<1x96xf32> to vector<9x96xf32>
    %12 = arith.addf %8, %11 : vector<9x96xf32>
    %13 = vector.extract_strided_slice %12 {offsets = [0, 0], sizes = [9, 8], strides = [1, 1]} : vector<9x96xf32> to vector<9x8xf32>
    %14 = vector.extract_strided_slice %12 {offsets = [0, 8], sizes = [9, 8], strides = [1, 1]} : vector<9x96xf32> to vector<9x8xf32>
    %15 = vector.extract_strided_slice %12 {offsets = [0, 16], sizes = [9, 8], strides = [1, 1]} : vector<9x96xf32> to vector<9x8xf32>
    %16 = vector.extract_strided_slice %12 {offsets = [0, 24], sizes = [9, 8], strides = [1, 1]} : vector<9x96xf32> to vector<9x8xf32>
    %17 = vector.shape_cast %13 : vector<9x8xf32> to vector<1x9x8xf32>
    %18 = vector.shape_cast %14 : vector<9x8xf32> to vector<1x9x8xf32>
    %19 = vector.shape_cast %15 : vector<9x8xf32> to vector<1x9x8xf32>
    %20 = vector.shape_cast %16 : vector<9x8xf32> to vector<1x9x8xf32>
    %21 = tpu.concatenate %17, %18, %19, %20 in 0 : vector<1x9x8xf32>, vector<1x9x8xf32>, vector<1x9x8xf32>, vector<1x9x8xf32> -> vector<4x9x8xf32>
    %22 = arith.truncf %21 : vector<4x9x8xf32> to vector<4x9x8xbf16>
    %23 = vector.extract_strided_slice %12 {offsets = [0, 32], sizes = [9, 8], strides = [1, 1]} : vector<9x96xf32> to vector<9x8xf32>
    %24 = vector.extract_strided_slice %12 {offsets = [0, 40], sizes = [9, 8], strides = [1, 1]} : vector<9x96xf32> to vector<9x8xf32>
    %25 = vector.extract_strided_slice %12 {offsets = [0, 48], sizes = [9, 8], strides = [1, 1]} : vector<9x96xf32> to vector<9x8xf32>
    %26 = vector.extract_strided_slice %12 {offsets = [0, 56], sizes = [9, 8], strides = [1, 1]} : vector<9x96xf32> to vector<9x8xf32>
    %27 = vector.shape_cast %23 : vector<9x8xf32> to vector<1x9x8xf32>
    %28 = vector.shape_cast %24 : vector<9x8xf32> to vector<1x9x8xf32>
    %29 = vector.shape_cast %25 : vector<9x8xf32> to vector<1x9x8xf32>
    %30 = vector.shape_cast %26 : vector<9x8xf32> to vector<1x9x8xf32>
    %31 = tpu.concatenate %27, %28, %29, %30 in 0 : vector<1x9x8xf32>, vector<1x9x8xf32>, vector<1x9x8xf32>, vector<1x9x8xf32> -> vector<4x9x8xf32>
    %32 = arith.truncf %31 : vector<4x9x8xf32> to vector<4x9x8xbf16>
    %33 = vector.extract_strided_slice %12 {offsets = [0, 64], sizes = [9, 8], strides = [1, 1]} : vector<9x96xf32> to vector<9x8xf32>
    %34 = vector.extract_strided_slice %12 {offsets = [0, 72], sizes = [9, 8], strides = [1, 1]} : vector<9x96xf32> to vector<9x8xf32>
    %35 = vector.extract_strided_slice %12 {offsets = [0, 80], sizes = [9, 8], strides = [1, 1]} : vector<9x96xf32> to vector<9x8xf32>
    %36 = vector.extract_strided_slice %12 {offsets = [0, 88], sizes = [9, 8], strides = [1, 1]} : vector<9x96xf32> to vector<9x8xf32>
    %37 = vector.shape_cast %33 : vector<9x8xf32> to vector<1x9x8xf32>
    %38 = vector.shape_cast %34 : vector<9x8xf32> to vector<1x9x8xf32>
    %39 = vector.shape_cast %35 : vector<9x8xf32> to vector<1x9x8xf32>
    %40 = vector.shape_cast %36 : vector<9x8xf32> to vector<1x9x8xf32>
    %41 = tpu.concatenate %37, %38, %39, %40 in 0 : vector<1x9x8xf32>, vector<1x9x8xf32>, vector<1x9x8xf32>, vector<1x9x8xf32> -> vector<4x9x8xf32>
    %42 = arith.truncf %41 : vector<4x9x8xf32> to vector<4x9x8xbf16>
    "tpu.trace_start"() <{level = 10 : i32, message = "gqd,gkd->gqk"}> : () -> ()
    %cst_9 = arith.constant dense<0.000000e+00> : vector<4x9x9xf32>
    %43 = tpu.matmul %22, %32, %cst_9 {dimension_numbers = #tpu.dot_dimension_numbers<[2], [2], [1], [1], [0, 0, 0, 1, 1, 1], [0], [0]>} : vector<4x9x8xbf16>, vector<4x9x8xbf16>, vector<4x9x9xf32> -> vector<4x9x9xf32>
    "tpu.trace_stop"() : () -> ()
    %cst_10 = arith.constant dense<0xFF800000> : vector<4x9xf32>
    %44 = vector.multi_reduction <maximumf>, %43, %cst_10 [2] : vector<4x9x9xf32> to vector<4x9xf32>
    %45 = vector.shape_cast %44 : vector<4x9xf32> to vector<4x9x1xf32>
    %46 = vector.broadcast %45 : vector<4x9x1xf32> to vector<4x9x9xf32>
    %47 = arith.subf %43, %46 : vector<4x9x9xf32>
    %48 = math.exp %47 : vector<4x9x9xf32>
    %cst_11 = arith.constant dense<0.000000e+00> : vector<4x9xf32>
    %49 = vector.multi_reduction <add>, %48, %cst_11 [2] : vector<4x9x9xf32> to vector<4x9xf32>
    %50 = vector.shape_cast %49 : vector<4x9xf32> to vector<4x9x1xf32>
    %51 = tpu.reciprocal %50 {approx = true} : vector<4x9x1xf32> -> vector<4x9x1xf32>
    %52 = vector.broadcast %51 : vector<4x9x1xf32> to vector<4x9x9xf32>
    %53 = arith.mulf %48, %52 : vector<4x9x9xf32>
    %54 = arith.truncf %53 : vector<4x9x9xf32> to vector<4x9x9xbf16>
    "tpu.trace_start"() <{level = 10 : i32, message = "gqk,gkd->gqd"}> : () -> ()
    %cst_12 = arith.constant dense<0.000000e+00> : vector<4x9x8xf32>
    %55 = tpu.matmul %54, %42, %cst_12 {dimension_numbers = #tpu.dot_dimension_numbers<[2], [1], [1], [2], [0, 0, 0, 1, 1, 2], [0], [0]>} : vector<4x9x9xbf16>, vector<4x9x8xbf16>, vector<4x9x8xf32> -> vector<4x9x8xf32>
    "tpu.trace_stop"() : () -> ()
    %56 = vector.extract_strided_slice %55 {offsets = [0, 0, 0], sizes = [1, 9, 8], strides = [1, 1, 1]} : vector<4x9x8xf32> to vector<1x9x8xf32>
    %57 = vector.shape_cast %56 : vector<1x9x8xf32> to vector<9x8xf32>
    %58 = arith.truncf %57 : vector<9x8xf32> to vector<9x8xbf16>
    %c0_13 = arith.constant 0 : index
    %c0_14 = arith.constant 0 : index
    %c0_15 = arith.constant 0 : index
    %c0_16 = arith.constant 0 : index
    %59 = vector.load %arg5[%c0_13, %c0_14, %c0_15, %c0_16] : memref<1x4x8x32xbf16, #tpu.memory_space<vmem>>, vector<1x1x8x32xbf16>
    %60 = vector.shape_cast %59 : vector<1x1x8x32xbf16> to vector<8x32xbf16>
    %cst_17 = arith.constant dense<0.000000e+00> : vector<9x32xf32>
    %61 = tpu.matmul %58, %60, %cst_17 {dimension_numbers = #tpu.dot_dimension_numbers<[1], [0], [0], [1], [0, 0, 1, 1], [], []>} : vector<9x8xbf16>, vector<8x32xbf16>, vector<9x32xf32> -> vector<9x32xf32>
    %62 = vector.extract_strided_slice %55 {offsets = [1, 0, 0], sizes = [1, 9, 8], strides = [1, 1, 1]} : vector<4x9x8xf32> to vector<1x9x8xf32>
    %63 = vector.shape_cast %62 : vector<1x9x8xf32> to vector<9x8xf32>
    %64 = arith.truncf %63 : vector<9x8xf32> to vector<9x8xbf16>
    %c0_18 = arith.constant 0 : index
    %c1 = arith.constant 1 : index
    %c0_19 = arith.constant 0 : index
    %c0_20 = arith.constant 0 : index
    %65 = vector.load %arg5[%c0_18, %c1, %c0_19, %c0_20] : memref<1x4x8x32xbf16, #tpu.memory_space<vmem>>, vector<1x1x8x32xbf16>
    %66 = vector.shape_cast %65 : vector<1x1x8x32xbf16> to vector<8x32xbf16>
    %cst_21 = arith.constant dense<0.000000e+00> : vector<9x32xf32>
    %67 = tpu.matmul %64, %66, %cst_21 {dimension_numbers = #tpu.dot_dimension_numbers<[1], [0], [0], [1], [0, 0, 1, 1], [], []>} : vector<9x8xbf16>, vector<8x32xbf16>, vector<9x32xf32> -> vector<9x32xf32>
    %68 = arith.addf %61, %67 : vector<9x32xf32>
    %69 = vector.extract_strided_slice %55 {offsets = [2, 0, 0], sizes = [1, 9, 8], strides = [1, 1, 1]} : vector<4x9x8xf32> to vector<1x9x8xf32>
    %70 = vector.shape_cast %69 : vector<1x9x8xf32> to vector<9x8xf32>
    %71 = arith.truncf %70 : vector<9x8xf32> to vector<9x8xbf16>
    %c0_22 = arith.constant 0 : index
    %c2 = arith.constant 2 : index
    %c0_23 = arith.constant 0 : index
    %c0_24 = arith.constant 0 : index
    %72 = vector.load %arg5[%c0_22, %c2, %c0_23, %c0_24] : memref<1x4x8x32xbf16, #tpu.memory_space<vmem>>, vector<1x1x8x32xbf16>
    %73 = vector.shape_cast %72 : vector<1x1x8x32xbf16> to vector<8x32xbf16>
    %cst_25 = arith.constant dense<0.000000e+00> : vector<9x32xf32>
    %74 = tpu.matmul %71, %73, %cst_25 {dimension_numbers = #tpu.dot_dimension_numbers<[1], [0], [0], [1], [0, 0, 1, 1], [], []>} : vector<9x8xbf16>, vector<8x32xbf16>, vector<9x32xf32> -> vector<9x32xf32>
    %75 = arith.addf %68, %74 : vector<9x32xf32>
    %76 = vector.extract_strided_slice %55 {offsets = [3, 0, 0], sizes = [1, 9, 8], strides = [1, 1, 1]} : vector<4x9x8xf32> to vector<1x9x8xf32>
    %77 = vector.shape_cast %76 : vector<1x9x8xf32> to vector<9x8xf32>
    %78 = arith.truncf %77 : vector<9x8xf32> to vector<9x8xbf16>
    %c0_26 = arith.constant 0 : index
    %c3 = arith.constant 3 : index
    %c0_27 = arith.constant 0 : index
    %c0_28 = arith.constant 0 : index
    %79 = vector.load %arg5[%c0_26, %c3, %c0_27, %c0_28] : memref<1x4x8x32xbf16, #tpu.memory_space<vmem>>, vector<1x1x8x32xbf16>
    %80 = vector.shape_cast %79 : vector<1x1x8x32xbf16> to vector<8x32xbf16>
    %cst_29 = arith.constant dense<0.000000e+00> : vector<9x32xf32>
    %81 = tpu.matmul %78, %80, %cst_29 {dimension_numbers = #tpu.dot_dimension_numbers<[1], [0], [0], [1], [0, 0, 1, 1], [], []>} : vector<9x8xbf16>, vector<8x32xbf16>, vector<9x32xf32> -> vector<9x32xf32>
    %82 = arith.addf %75, %81 : vector<9x32xf32>
    %c0_30 = arith.constant 0 : index
    %c0_31 = arith.constant 0 : index
    %c0_32 = arith.constant 0 : index
    %83 = vector.load %arg6[%c0_30, %c0_31, %c0_32] : memref<1x1x32xf32, #tpu.memory_space<vmem>>, vector<1x1x32xf32>
    %84 = vector.shape_cast %83 : vector<1x1x32xf32> to vector<1x32xf32>
    %85 = vector.broadcast %84 : vector<1x32xf32> to vector<9x32xf32>
    %86 = arith.addf %82, %85 : vector<9x32xf32>
    %87 = arith.addf %4, %86 : vector<9x32xf32>
    %c0_33 = arith.constant 0 : index
    %c0_34 = arith.constant 0 : index
    %c0_35 = arith.constant 0 : index
    %88 = vector.load %arg11[%c0_33, %c0_34, %c0_35] : memref<1x1x32xf32, #tpu.memory_space<vmem>>, vector<1x1x32xf32>
    %89 = vector.shape_cast %88 : vector<1x1x32xf32> to vector<1x32xf32>
    %c0_36 = arith.constant 0 : index
    %c0_37 = arith.constant 0 : index
    %c0_38 = arith.constant 0 : index
    %90 = vector.load %arg12[%c0_36, %c0_37, %c0_38] : memref<1x1x32xf32, #tpu.memory_space<vmem>>, vector<1x1x32xf32>
    %91 = vector.shape_cast %90 : vector<1x1x32xf32> to vector<1x32xf32>
    %cst_39 = arith.constant dense<0.000000e+00> : vector<9xf32>
    %92 = vector.multi_reduction <add>, %87, %cst_39 [1] : vector<9x32xf32> to vector<9xf32>
    %93 = vector.shape_cast %92 : vector<9xf32> to vector<9x1xf32>
    %cst_40 = arith.constant 3.200000e+01 : f32
    %94 = vector.broadcast %cst_40 : f32 to vector<9x1xf32>
    %95 = arith.divf %93, %94 : vector<9x1xf32>
    %96 = vector.broadcast %95 : vector<9x1xf32> to vector<9x32xf32>
    %97 = arith.subf %87, %96 : vector<9x32xf32>
    %98 = arith.mulf %97, %97 : vector<9x32xf32>
    %cst_41 = arith.constant dense<0.000000e+00> : vector<9xf32>
    %99 = vector.multi_reduction <add>, %98, %cst_41 [1] : vector<9x32xf32> to vector<9xf32>
    %100 = vector.shape_cast %99 : vector<9xf32> to vector<9x1xf32>
    %cst_42 = arith.constant 3.200000e+01 : f32
    %101 = vector.broadcast %cst_42 : f32 to vector<9x1xf32>
    %102 = arith.divf %100, %101 : vector<9x1xf32>
    %103 = vector.broadcast %95 : vector<9x1xf32> to vector<9x32xf32>
    %104 = arith.subf %87, %103 : vector<9x32xf32>
    %cst_43 = arith.constant 9.99999974E-6 : f32
    %105 = vector.broadcast %cst_43 : f32 to vector<9x1xf32>
    %106 = arith.addf %102, %105 : vector<9x1xf32>
    %107 = math.rsqrt %106 : vector<9x1xf32>
    %108 = vector.broadcast %107 : vector<9x1xf32> to vector<9x32xf32>
    %109 = arith.mulf %104, %108 : vector<9x32xf32>
    %110 = vector.broadcast %89 : vector<1x32xf32> to vector<9x32xf32>
    %111 = arith.mulf %109, %110 : vector<9x32xf32>
    %112 = vector.broadcast %91 : vector<1x32xf32> to vector<9x32xf32>
    %113 = arith.addf %111, %112 : vector<9x32xf32>
    %114 = arith.truncf %113 : vector<9x32xf32> to vector<9x32xbf16>
    %c0_44 = arith.constant 0 : index
    %c0_45 = arith.constant 0 : index
    %c0_46 = arith.constant 0 : index
    %115 = vector.load %arg7[%c0_44, %c0_45, %c0_46] : memref<1x32x64xbf16, #tpu.memory_space<vmem>>, vector<1x32x64xbf16>
    %116 = vector.shape_cast %115 : vector<1x32x64xbf16> to vector<32x64xbf16>
    %cst_47 = arith.constant dense<0.000000e+00> : vector<9x64xf32>
    %117 = tpu.matmul %114, %116, %cst_47 {dimension_numbers = #tpu.dot_dimension_numbers<[1], [0], [0], [1], [0, 0, 1, 1], [], []>} : vector<9x32xbf16>, vector<32x64xbf16>, vector<9x64xf32> -> vector<9x64xf32>
    %c0_48 = arith.constant 0 : index
    %c0_49 = arith.constant 0 : index
    %c0_50 = arith.constant 0 : index
    %118 = vector.load %arg8[%c0_48, %c0_49, %c0_50] : memref<1x1x64xf32, #tpu.memory_space<vmem>>, vector<1x1x64xf32>
    %119 = vector.shape_cast %118 : vector<1x1x64xf32> to vector<1x64xf32>
    %120 = vector.broadcast %119 : vector<1x64xf32> to vector<9x64xf32>
    %121 = arith.addf %117, %120 : vector<9x64xf32>
    %122 = arith.mulf %121, %121 : vector<9x64xf32>
    %123 = arith.mulf %121, %122 : vector<9x64xf32>
    %cst_51 = arith.constant 4.471500e-02 : f32
    %124 = vector.broadcast %cst_51 : f32 to vector<9x64xf32>
    %125 = arith.mulf %124, %123 : vector<9x64xf32>
    %126 = arith.addf %121, %125 : vector<9x64xf32>
    %cst_52 = arith.constant 0.797884583 : f32
    %127 = vector.broadcast %cst_52 : f32 to vector<9x64xf32>
    %128 = arith.mulf %127, %126 : vector<9x64xf32>
    %129 = math.tanh %128 : vector<9x64xf32>
    %cst_53 = arith.constant 1.000000e+00 : f32
    %130 = vector.broadcast %cst_53 : f32 to vector<9x64xf32>
    %131 = arith.addf %130, %129 : vector<9x64xf32>
    %cst_54 = arith.constant 5.000000e-01 : f32
    %132 = vector.broadcast %cst_54 : f32 to vector<9x64xf32>
    %133 = arith.mulf %132, %131 : vector<9x64xf32>
    %134 = arith.mulf %121, %133 : vector<9x64xf32>
    %135 = arith.truncf %134 : vector<9x64xf32> to vector<9x64xbf16>
    %c0_55 = arith.constant 0 : index
    %c0_56 = arith.constant 0 : index
    %c0_57 = arith.constant 0 : index
    %136 = vector.load %arg9[%c0_55, %c0_56, %c0_57] : memref<1x64x32xbf16, #tpu.memory_space<vmem>>, vector<1x64x32xbf16>
    %137 = vector.shape_cast %136 : vector<1x64x32xbf16> to vector<64x32xbf16>
    %cst_58 = arith.constant dense<0.000000e+00> : vector<9x32xf32>
    %138 = tpu.matmul %135, %137, %cst_58 {dimension_numbers = #tpu.dot_dimension_numbers<[1], [0], [0], [1], [0, 0, 1, 1], [], []>} : vector<9x64xbf16>, vector<64x32xbf16>, vector<9x32xf32> -> vector<9x32xf32>
    %c0_59 = arith.constant 0 : index
    %c0_60 = arith.constant 0 : index
    %c0_61 = arith.constant 0 : index
    %139 = vector.load %arg10[%c0_59, %c0_60, %c0_61] : memref<1x1x32xf32, #tpu.memory_space<vmem>>, vector<1x1x32xf32>
    %140 = vector.shape_cast %139 : vector<1x1x32xf32> to vector<1x32xf32>
    %141 = vector.broadcast %140 : vector<1x32xf32> to vector<9x32xf32>
    %142 = arith.addf %138, %141 : vector<9x32xf32>
    %143 = arith.addf %113, %142 : vector<9x32xf32>
    %c0_62 = arith.constant 0 : index
    %c0_63 = arith.constant 0 : index
    %c0_64 = arith.constant 0 : index
    %144 = vector.load %arg13[%c0_62, %c0_63, %c0_64] : memref<1x1x32xf32, #tpu.memory_space<vmem>>, vector<1x1x32xf32>
    %145 = vector.shape_cast %144 : vector<1x1x32xf32> to vector<1x32xf32>
    %c0_65 = arith.constant 0 : index
    %c0_66 = arith.constant 0 : index
    %c0_67 = arith.constant 0 : index
    %146 = vector.load %arg14[%c0_65, %c0_66, %c0_67] : memref<1x1x32xf32, #tpu.memory_space<vmem>>, vector<1x1x32xf32>
    %147 = vector.shape_cast %146 : vector<1x1x32xf32> to vector<1x32xf32>
    %cst_68 = arith.constant dense<0.000000e+00> : vector<9xf32>
    %148 = vector.multi_reduction <add>, %143, %cst_68 [1] : vector<9x32xf32> to vector<9xf32>
    %149 = vector.shape_cast %148 : vector<9xf32> to vector<9x1xf32>
    %cst_69 = arith.constant 3.200000e+01 : f32
    %150 = vector.broadcast %cst_69 : f32 to vector<9x1xf32>
    %151 = arith.divf %149, %150 : vector<9x1xf32>
    %152 = vector.broadcast %151 : vector<9x1xf32> to vector<9x32xf32>
    %153 = arith.subf %143, %152 : vector<9x32xf32>
    %154 = arith.mulf %153, %153 : vector<9x32xf32>
    %cst_70 = arith.constant dense<0.000000e+00> : vector<9xf32>
    %155 = vector.multi_reduction <add>, %154, %cst_70 [1] : vector<9x32xf32> to vector<9xf32>
    %156 = vector.shape_cast %155 : vector<9xf32> to vector<9x1xf32>
    %cst_71 = arith.constant 3.200000e+01 : f32
    %157 = vector.broadcast %cst_71 : f32 to vector<9x1xf32>
    %158 = arith.divf %156, %157 : vector<9x1xf32>
    %159 = vector.broadcast %151 : vector<9x1xf32> to vector<9x32xf32>
    %160 = arith.subf %143, %159 : vector<9x32xf32>
    %cst_72 = arith.constant 9.99999974E-6 : f32
    %161 = vector.broadcast %cst_72 : f32 to vector<9x1xf32>
    %162 = arith.addf %158, %161 : vector<9x1xf32>
    %163 = math.rsqrt %162 : vector<9x1xf32>
    %164 = vector.broadcast %163 : vector<9x1xf32> to vector<9x32xf32>
    %165 = arith.mulf %160, %164 : vector<9x32xf32>
    %166 = vector.broadcast %145 : vector<1x32xf32> to vector<9x32xf32>
    %167 = arith.mulf %165, %166 : vector<9x32xf32>
    %168 = vector.broadcast %147 : vector<1x32xf32> to vector<9x32xf32>
    %169 = arith.addf %167, %168 : vector<9x32xf32>
    %170 = vector.shape_cast %169 : vector<9x32xf32> to vector<1x9x32xf32>
    %c0_73 = arith.constant 0 : index
    %c0_74 = arith.constant 0 : index
    %c0_75 = arith.constant 0 : index
    %171 = vector.load %arg15[%c0_73, %c0_74, %c0_75] : memref<1x9x32xf32, #tpu.memory_space<vmem>>, vector<1x9x32xf32>
    tpu.vector_store %arg15[%c0_73, %c0_74, %c0_75], %170 {strides = array<i32>} : memref<1x9x32xf32, #tpu.memory_space<vmem>>, vector<1x9x32xf32>,
    return
  }
  func.func @transform_0(%arg0: i32, %arg1: i32) -> (i32, i32, i32) {
    %c0_i32 = arith.constant 0 : i32
    %c0_i32_0 = arith.constant 0 : i32
    %c0_i32_1 = arith.constant 0 : i32
    return %arg0, %c0_i32, %c0_i32_0 : i32, i32, i32
  }
  func.func @transform_1(%arg0: i32, %arg1: i32) -> (i32, i32, i32) {
    %c0_i32 = arith.constant 0 : i32
    %c0_i32_0 = arith.constant 0 : i32
    %c0_i32_1 = arith.constant 0 : i32
    return %arg1, %c0_i32, %c0_i32_0 : i32, i32, i32
  }
  func.func @transform_2(%arg0: i32, %arg1: i32) -> (i32, i32, i32) {
    %c0_i32 = arith.constant 0 : i32
    %c0_i32_0 = arith.constant 0 : i32
    %c0_i32_1 = arith.constant 0 : i32
    return %arg1, %c0_i32, %c0_i32_0 : i32, i32, i32
  }
  func.func @transform_3(%arg0: i32, %arg1: i32) -> (i32, i32, i32, i32) {
    %c0_i32 = arith.constant 0 : i32
    %c0_i32_0 = arith.constant 0 : i32
    %c0_i32_1 = arith.constant 0 : i32
    %c0_i32_2 = arith.constant 0 : i32
    return %arg1, %c0_i32, %c0_i32_0, %c0_i32_1 : i32, i32, i32, i32
  }
  func.func @transform_4(%arg0: i32, %arg1: i32) -> (i32, i32, i32) {
    %c0_i32 = arith.constant 0 : i32
    %c0_i32_0 = arith.constant 0 : i32
    %c0_i32_1 = arith.constant 0 : i32
    return %arg1, %c0_i32, %c0_i32_0 : i32, i32, i32
  }
  func.func @transform_5(%arg0: i32, %arg1: i32) -> (i32, i32, i32) {
    %c0_i32 = arith.constant 0 : i32
    %c0_i32_0 = arith.constant 0 : i32
    %c0_i32_1 = arith.constant 0 : i32
    return %arg1, %c0_i32, %c0_i32_0 : i32, i32, i32
  }
  func.func @transform_6(%arg0: i32, %arg1: i32) -> (i32, i32, i32) {
    %c0_i32 = arith.constant 0 : i32
    %c0_i32_0 = arith.constant 0 : i32
    %c0_i32_1 = arith.constant 0 : i32
    return %arg1, %c0_i32, %c0_i32_0 : i32, i32, i32
  }
  func.func @transform_7(%arg0: i32, %arg1: i32) -> (i32, i32, i32) {
    %c0_i32 = arith.constant 0 : i32
    %c0_i32_0 = arith.constant 0 : i32
    %c0_i32_1 = arith.constant 0 : i32
    return %arg1, %c0_i32, %c0_i32_0 : i32, i32, i32
  }
  func.func @transform_8(%arg0: i32, %arg1: i32) -> (i32, i32, i32) {
    %c0_i32 = arith.constant 0 : i32
    %c0_i32_0 = arith.constant 0 : i32
    %c0_i32_1 = arith.constant 0 : i32
    return %arg1, %c0_i32, %c0_i32_0 : i32, i32, i32
  }
  func.func @transform_9(%arg0: i32, %arg1: i32) -> (i32, i32, i32) {
    %c0_i32 = arith.constant 0 : i32
    %c0_i32_0 = arith.constant 0 : i32
    %c0_i32_1 = arith.constant 0 : i32
    return %arg1, %c0_i32, %c0_i32_0 : i32, i32, i32
  }
  func.func @transform_10(%arg0: i32, %arg1: i32) -> (i32, i32, i32) {
    %c0_i32 = arith.constant 0 : i32
    %c0_i32_0 = arith.constant 0 : i32
    %c0_i32_1 = arith.constant 0 : i32
    return %arg1, %c0_i32, %c0_i32_0 : i32, i32, i32
  }
  func.func @transform_11(%arg0: i32, %arg1: i32) -> (i32, i32, i32) {
    %c0_i32 = arith.constant 0 : i32
    %c0_i32_0 = arith.constant 0 : i32
    %c0_i32_1 = arith.constant 0 : i32
    return %arg1, %c0_i32, %c0_i32_0 : i32, i32, i32
  }
  func.func @transform_12(%arg0: i32, %arg1: i32) -> (i32, i32, i32) {
    %c0_i32 = arith.constant 0 : i32
    %c0_i32_0 = arith.constant 0 : i32
    %c0_i32_1 = arith.constant 0 : i32
    return %arg1, %c0_i32, %c0_i32_0 : i32, i32, i32
  }
  func.func @transform_13(%arg0: i32, %arg1: i32) -> (i32, i32, i32) {
    %c0_i32 = arith.constant 0 : i32
    %c0_i32_0 = arith.constant 0 : i32
    %c0_i32_1 = arith.constant 0 : i32
    return %arg0, %c0_i32, %c0_i32_0 : i32, i32, i32
  }
}

</mosaic_0001>

<llo_original>
// kernel: null_cond_encoder_m2mdm_forward.7
$region0: #{null_cond_encoder_m2mdm_forward.7}
  #allocation0 [shape = 'u32[]', space=smem, size = 0x4, offset = 0x4, fixed_abs, tag = 'smem constant byte address 0x4 - core index']
  #allocation1 [shape = 'u32[72,128]{1,0:T(1,128)}', space=vmem, size = 0x9000, scoped, tag = 'internal scratch']
  %s0 = inlined_call_operand.vmem [shape: f32[16,12], index: 0, kind: input, shape index: {}]
  %s1 = inlined_call_operand.vmem [shape: bf16[12,128], index: 1, kind: input, shape index: {}]
  %s2 = inlined_call_operand.vmem [shape: f32[1,128], index: 2, kind: input, shape index: {}]
  %s3 = inlined_call_operand.vmem [shape: bf16[16,128], index: 3, kind: output, shape index: {}]
  %s4 = sld [smem:[#allocation0]]
  $region22: #{null_cond_encoder_m2mdm_forward.7} parent=0
    _
  %s6 = ssub.s32 1, %s4
  %s7 = scalar_select 0, %s6, %s4
  // Predicated region
  $region2: #{null_cond_encoder_m2mdm_forward.7} parent=0 // pred_check
    _
  $region3: #{null_cond_encoder_m2mdm_forward.7} parent=0 // pred_check_branch
    %9 = sbr.rel (0) target = $region5
  $region4: #{null_cond_encoder_m2mdm_forward.7} parent=0 // pred_region
    _
  $region5: #{null_cond_encoder_m2mdm_forward.7} parent=0 // pred_fallthru
    _
  // Predicated region
  $region6: #{null_cond_encoder_m2mdm_forward.7} parent=0 // pred_check
    _
  $region7: #{null_cond_encoder_m2mdm_forward.7} parent=0 // pred_check_branch
    %11 = sbr.rel (0) target = $region9
  $region8: #{null_cond_encoder_m2mdm_forward.7} parent=0 // pred_region
    _
  $region9: #{null_cond_encoder_m2mdm_forward.7} parent=0 // pred_fallthru
    _
  // Predicated region
  $region10: #{null_cond_encoder_m2mdm_forward.7} parent=0 // pred_check
    _
  $region11: #{null_cond_encoder_m2mdm_forward.7} parent=0 // pred_check_branch
    %13 = sbr.rel (0) target = $region13
  $region12: #{null_cond_encoder_m2mdm_forward.7} parent=0 // pred_region
    _
  $region13: #{null_cond_encoder_m2mdm_forward.7} parent=0 // pred_fallthru
    _
  %v15 = vld [vmem:[%s0] sm:$0xff]
  %v16 = vld [vmem:[%s0 + $0x8] sm:$0xff]
  %v17 = vpack.c.bf16 %v16, %v15
  %v18 = vld [vmem:[%s1] sm:$0xf]
  %v19 = vld [vmem:[%s1 + $0x4] sm:$0x3]
  %v20 = vld [vmem:[%s2] sm:$0x1]
  %v22 = vperm.slane %v20, 0
  %v26 = vunpack.c.l.b16 %v18
  %v27 = vunpack.c.l.b16 %v19
  %v28 = vpack.c.b16 %v27, %v26
  %vm29 = vcmask 97280
  %v31 = vsel %vm29, %v17, 0
  %vm33 = vcmask 1045504
  %v35 = vsel %vm33, %v28, 0
  %37 = vmatpush.bf16.msra.mxu0 0
  %38 = vmatpush.bf16.msra.mxu0 0
  %39 = vmatpush.bf16.msra.mxu0 0
  %40 = vmatpush.bf16.msra.mxu0 0
  %41 = vmatpush.bf16.msra.mxu0 0
  %42 = vmatpush.bf16.msra.mxu0 0
  %43 = vmatpush.bf16.msra.mxu0 0
  %44 = vmatpush.bf16.msra.mxu0 %v35
  %45 = vmatmul.bf16.gmra.mxu0 %v31
  %v46 = vpop.f32.mrf.mxu0
  %v47 = vadd.f32 %v22, %v46
  %v48 = vpop.f32.mrf.mxu0
  %v49 = vadd.f32 %v22, %v48
  %50 = vdwg.mxu0
  %v51 = vpack.c.bf16 %v47, %v47
  %v52 = vpack.c.bf16 %v49, %v49
  %53 = vst [vmem:[%s3] sm:$0xf] %v51
  %54 = vst [vmem:[%s3 + $0x4] sm:$0xf] %v52
  // Predicated region
  $region14: #{null_cond_encoder_m2mdm_forward.7} parent=0 // pred_check
    _
  $region15: #{null_cond_encoder_m2mdm_forward.7} parent=0 // pred_check_branch
    %56 = sbr.rel (0) target = $region17
  $region16: #{null_cond_encoder_m2mdm_forward.7} parent=0 // pred_region
    _
  $region17: #{null_cond_encoder_m2mdm_forward.7} parent=0 // pred_fallthru
    _
  // Predicated region
  $region18: #{null_cond_encoder_m2mdm_forward.7} parent=0 // pred_check
    _
  $region19: #{null_cond_encoder_m2mdm_forward.7} parent=0 // pred_check_branch
    %58 = sbr.rel (0) target = $region21
  $region20: #{null_cond_encoder_m2mdm_forward.7} parent=0 // pred_region
    _
  $region21: #{null_cond_encoder_m2mdm_forward.7} parent=0 // pred_fallthru
    _

// kernel: null_cond_encoder_m2mdm_forward.9
$region0: #{null_cond_encoder_m2mdm_forward.9}
  #allocation0 [shape = 'u32[]', space=smem, size = 0x4, offset = 0x4, fixed_abs, tag = 'smem constant byte address 0x4 - core index']
  #allocation1 [shape = 'u32[72,128]{1,0:T(1,128)}', space=vmem, size = 0x9000, scoped, tag = 'internal scratch']
  %s0 = inlined_call_operand.vmem [shape: f32[16,32], index: 0, kind: input, shape index: {}]
  %s1 = inlined_call_operand.vmem [shape: bf16[32,128], index: 1, kind: input, shape index: {}]
  %s2 = inlined_call_operand.vmem [shape: f32[1,128], index: 2, kind: input, shape index: {}]
  %s3 = inlined_call_operand.vmem [shape: f32[16,128], index: 3, kind: output, shape index: {}]
  %s4 = sld [smem:[#allocation0]]
  $region22: #{null_cond_encoder_m2mdm_forward.9} parent=0
    _
  %s6 = ssub.s32 1, %s4
  %s7 = scalar_select 0, %s6, %s4
  // Predicated region
  $region2: #{null_cond_encoder_m2mdm_forward.9} parent=0 // pred_check
    _
  $region3: #{null_cond_encoder_m2mdm_forward.9} parent=0 // pred_check_branch
    %9 = sbr.rel (0) target = $region5
  $region4: #{null_cond_encoder_m2mdm_forward.9} parent=0 // pred_region
    _
  $region5: #{null_cond_encoder_m2mdm_forward.9} parent=0 // pred_fallthru
    _
  // Predicated region
  $region6: #{null_cond_encoder_m2mdm_forward.9} parent=0 // pred_check
    _
  $region7: #{null_cond_encoder_m2mdm_forward.9} parent=0 // pred_check_branch
    %11 = sbr.rel (0) target = $region9
  $region8: #{null_cond_encoder_m2mdm_forward.9} parent=0 // pred_region
    _
  $region9: #{null_cond_encoder_m2mdm_forward.9} parent=0 // pred_fallthru
    _
  // Predicated region
  $region10: #{null_cond_encoder_m2mdm_forward.9} parent=0 // pred_check
    _
  $region11: #{null_cond_encoder_m2mdm_forward.9} parent=0 // pred_check_branch
    %13 = sbr.rel (0) target = $region13
  $region12: #{null_cond_encoder_m2mdm_forward.9} parent=0 // pred_region
    _
  $region13: #{null_cond_encoder_m2mdm_forward.9} parent=0 // pred_fallthru
    _
  %v15 = vld [vmem:[%s0] sm:$0xff]
  %v16 = vld [vmem:[%s0 + $0x8] sm:$0xff]
  %v17 = vpack.c.bf16 %v16, %v15
  %v18 = vld [vmem:[%s1] sm:$0xf]
  %v19 = vld [vmem:[%s1 + $0x4] sm:$0xf]
  %v20 = vld [vmem:[%s1 + $0x8] sm:$0xf]
  %v21 = vld [vmem:[%s1 + $0xc] sm:$0xf]
  %v22 = vld [vmem:[%s2] sm:$0x1]
  %v24 = vperm.slane %v22, 0
  %v30 = vunpack.c.l.b16 %v18
  %v31 = vunpack.c.l.b16 %v19
  %v32 = vunpack.c.l.b16 %v20
  %v33 = vunpack.c.l.b16 %v21
  %v34 = vpack.c.b16 %v31, %v30
  %v35 = vpack.c.b16 %v33, %v32
  %vm38 = vcmask 261120
  %v40 = vsel %vm38, %v17, 0
  %42 = vmatpush.bf16.msra.mxu0 0
  %43 = vmatpush.bf16.msra.mxu0 0
  %44 = vmatpush.bf16.msra.mxu0 0
  %45 = vmatpush.bf16.msra.mxu0 0
  %46 = vmatpush.bf16.msra.mxu0 0
  %47 = vmatpush.bf16.msra.mxu0 0
  %48 = vmatpush.bf16.msra.mxu0 %v35
  %49 = vmatpush.bf16.msra.mxu0 %v34
  %50 = vmatmul.bf16.gmra.mxu0 %v40
  %v51 = vpop.f32.mrf.mxu0
  %v52 = vadd.f32 %v24, %v51
  %v53 = vpop.f32.mrf.mxu0
  %v54 = vadd.f32 %v24, %v53
  %55 = vdwg.mxu0
  %56 = vst [vmem:[%s3] sm:$0xff] %v52
  %57 = vst [vmem:[%s3 + $0x8] sm:$0xff] %v54
  // Predicated region
  $region14: #{null_cond_encoder_m2mdm_forward.9} parent=0 // pred_check
    _
  $region15: #{null_cond_encoder_m2mdm_forward.9} parent=0 // pred_check_branch
    %59 = sbr.rel (0) target = $region17
  $region16: #{null_cond_encoder_m2mdm_forward.9} parent=0 // pred_region
    _
  $region17: #{null_cond_encoder_m2mdm_forward.9} parent=0 // pred_fallthru
    _
  // Predicated region
  $region18: #{null_cond_encoder_m2mdm_forward.9} parent=0 // pred_check
    _
  $region19: #{null_cond_encoder_m2mdm_forward.9} parent=0 // pred_check_branch
    %61 = sbr.rel (0) target = $region21
  $region20: #{null_cond_encoder_m2mdm_forward.9} parent=0 // pred_region
    _
  $region21: #{null_cond_encoder_m2mdm_forward.9} parent=0 // pred_fallthru
    _

// kernel: null_cond_encoder_m2mdm_forward.6
$region0: #{null_cond_encoder_m2mdm_forward.6}
  #allocation0 [shape = 'u32[]', space=smem, size = 0x4, offset = 0x4, fixed_abs, tag = 'smem constant byte address 0x4 - core index']
  #allocation1 [shape = 'u32[72,128]{1,0:T(1,128)}', space=vmem, size = 0x9000, scoped, tag = 'internal scratch']
  %s0 = inlined_call_operand.vmem [shape: bf16[2,8,32], index: 0, kind: input, shape index: {}]
  %s1 = inlined_call_operand.vmem [shape: bf16[2,32,96], index: 1, kind: input, shape index: {}]
  %s2 = inlined_call_operand.vmem [shape: f32[2,1,96], index: 2, kind: input, shape index: {}]
  %s3 = inlined_call_operand.vmem [shape: bf16[2,4,8,32], index: 3, kind: input, shape index: {}]
  %s4 = inlined_call_operand.vmem [shape: f32[2,1,32], index: 4, kind: input, shape index: {}]
  %s5 = inlined_call_operand.vmem [shape: bf16[2,32,64], index: 5, kind: input, shape index: {}]
  %s6 = inlined_call_operand.vmem [shape: f32[2,1,64], index: 6, kind: input, shape index: {}]
  %s7 = inlined_call_operand.vmem [shape: bf16[2,64,32], index: 7, kind: input, shape index: {}]
  %s8 = inlined_call_operand.vmem [shape: f32[2,1,32], index: 8, kind: input, shape index: {}]
  %s9 = inlined_call_operand.vmem [shape: f32[2,1,32], index: 9, kind: input, shape index: {}]
  %s10 = inlined_call_operand.vmem [shape: f32[2,1,32], index: 10, kind: input, shape index: {}]
  %s11 = inlined_call_operand.vmem [shape: f32[2,1,32], index: 11, kind: input, shape index: {}]
  %s12 = inlined_call_operand.vmem [shape: f32[2,1,32], index: 12, kind: input, shape index: {}]
  %s13 = inlined_call_operand.vmem [shape: f32[2,8,32], index: 13, kind: output, shape index: {}]
  %s14 = sld [smem:[#allocation0]]
  $region89: #{null_cond_encoder_m2mdm_forward.6} parent=0
    _
  %s16 = ssub.s32 1, %s14
  %s17 = scalar_select 0, %s16, %s14
  loop: start=0, step=1, limit=6
  $region2: #{null_cond_encoder_m2mdm_forward.6} parent=0 // loop_pre_header
    _
  $region3: #{null_cond_encoder_m2mdm_forward.6} parent=0 // loop_header
    %s19 = sphi 0, %s23
    %p20 = scmp.ge.s32.totalorder %s19, 6
    %s26 = sphi 0, %s38
    %s27 = sphi 0, %s34
    %s28 = sphi 0, %s26
    %s29 = sphi 0, %s27
    %s30 = sphi 0, %s28
    %s31 = sphi 0, %s29
    %s41 = sphi 0, %s43
    %s44 = sphi 0, %s41
    %s45 = sphi 0, %s44
    %s61 = sphi 0, %s45
    %s67 = sphi 0, %s69
    %s70 = sphi 0, %s67
    %s71 = sphi 0, %s70
    %s87 = sphi 0, %s71
    %s93 = sphi 0, %s95
    %s96 = sphi 0, %s93
    %s97 = sphi 0, %s96
    %s113 = sphi 0, %s97
    %s119 = sphi 0, %s121
    %s122 = sphi 0, %s119
    %s123 = sphi 0, %s122
    %s139 = sphi 0, %s123
    %s145 = sphi 0, %s147
    %s148 = sphi 0, %s145
    %s149 = sphi 0, %s148
    %s165 = sphi 0, %s149
    %s171 = sphi 0, %s173
    %s174 = sphi 0, %s171
    %s175 = sphi 0, %s174
    %s191 = sphi 0, %s175
    %s197 = sphi 0, %s199
    %s200 = sphi 0, %s197
    %s201 = sphi 0, %s200
    %s217 = sphi 0, %s201
    %s223 = sphi 0, %s225
    %s226 = sphi 0, %s223
    %s227 = sphi 0, %s226
    %s243 = sphi 0, %s227
    %s249 = sphi 0, %s251
    %s252 = sphi 0, %s249
    %s253 = sphi 0, %s252
    %s269 = sphi 0, %s253
    %s275 = sphi 0, %s277
    %s278 = sphi 0, %s275
    %s279 = sphi 0, %s278
    %s295 = sphi 0, %s279
    %s301 = sphi 0, %s303
    %s304 = sphi 0, %s301
    %s305 = sphi 0, %s304
    %s321 = sphi 0, %s305
    %s327 = sphi 0, %s329
    %s330 = sphi 0, %s327
    %s331 = sphi 0, %s330
    %s347 = sphi 0, %s331
    %s353 = sphi 0, %s355
    %s356 = sphi 0, %s353
    %s357 = sphi 0, %s356
    %s373 = sphi 0, %s357
    %s379 = sphi 0, %s381
    %s382 = sphi 0, %s379
    %s383 = sphi 0, %s382
    %s399 = sphi 0, %s383
  $region4: #{null_cond_encoder_m2mdm_forward.6} parent=0 // loop_header_branch
    %22 = sbr.rel (%p20) target = $region8
  $region5: #{null_cond_encoder_m2mdm_forward.6} parent=0 // loop_body
    %s24 = ssub.s32 %s19, 1
    %s25 = ssub.s32 %s19, 2
    %s32 = sadd.s32 1, %s27
    %p33 = scmp.ge.s32.totalorder %s32, 2
    %s34 = scalar_select %p33, 0, %s32
    %s35 = sadd.s32 1, %s26
    %s36 = scalar_select %p33, %s35, %s26
    %p37 = scmp.ge.s32.totalorder %s36, 2
    %s38 = scalar_select %p37, 0, %s36
    %s39 = ssub.s32 %s26, %s38
    %p40 = scmp.eq.s32.totalorder %s39, 0
    %s42 = sadd.s32 %s41, 1
    %s43 = scalar_select %p40, %s41, %s42
    %p46 = pneg %p40
    %p47 = scmp.eq.s32.totalorder %s19, 3
    %p48 = por %p46, %p47
    %p49 = scmp.ne.s32.totalorder %s41, %s44
    %p50 = scmp.eq.s32.totalorder %s19, 0
    %p51 = por %p49, %p50
    %p52 = scmp.ne.s32.totalorder %s41, %s44
    %p53 = scmp.eq.s32.totalorder %s24, 3
    %p54 = por %p52, %p53
    %p55 = scmp.ne.s32.totalorder %s44, %s45
    %p56 = scmp.eq.s32.totalorder %s24, 0
    %p57 = por %p55, %p56
    %p58 = scmp.ne.s32.totalorder %s44, %s45
    %p59 = scmp.eq.s32.totalorder %s25, 3
    %p60 = por %p58, %p59
    %p62 = scmp.ne.s32.totalorder %s45, %s61
    %p63 = scmp.eq.s32.totalorder %s25, 0
    %p64 = por %p62, %p63
    %s65 = ssub.s32 %s27, %s34
    %p66 = scmp.eq.s32.totalorder %s65, 0
    %s68 = sadd.s32 %s67, 1
    %s69 = scalar_select %p66, %s67, %s68
    %p72 = pneg %p66
    %p73 = scmp.eq.s32.totalorder %s19, 3
    %p74 = por %p72, %p73
    %p75 = scmp.ne.s32.totalorder %s67, %s70
    %p76 = scmp.eq.s32.totalorder %s19, 0
    %p77 = por %p75, %p76
    %p78 = scmp.ne.s32.totalorder %s67, %s70
    %p79 = scmp.eq.s32.totalorder %s24, 3
    %p80 = por %p78, %p79
    %p81 = scmp.ne.s32.totalorder %s70, %s71
    %p82 = scmp.eq.s32.totalorder %s24, 0
    %p83 = por %p81, %p82
    %p84 = scmp.ne.s32.totalorder %s70, %s71
    %p85 = scmp.eq.s32.totalorder %s25, 3
    %p86 = por %p84, %p85
    %p88 = scmp.ne.s32.totalorder %s71, %s87
    %p89 = scmp.eq.s32.totalorder %s25, 0
    %p90 = por %p88, %p89
    %s91 = ssub.s32 %s27, %s34
    %p92 = scmp.eq.s32.totalorder %s91, 0
    %s94 = sadd.s32 %s93, 1
    %s95 = scalar_select %p92, %s93, %s94
    %p98 = pneg %p92
    %p99 = scmp.eq.s32.totalorder %s19, 3
    %p100 = por %p98, %p99
    %p101 = scmp.ne.s32.totalorder %s93, %s96
    %p102 = scmp.eq.s32.totalorder %s19, 0
    %p103 = por %p101, %p102
    %p104 = scmp.ne.s32.totalorder %s93, %s96
    %p105 = scmp.eq.s32.totalorder %s24, 3
    %p106 = por %p104, %p105
    %p107 = scmp.ne.s32.totalorder %s96, %s97
    %p108 = scmp.eq.s32.totalorder %s24, 0
    %p109 = por %p107, %p108
    %p110 = scmp.ne.s32.totalorder %s96, %s97
    %p111 = scmp.eq.s32.totalorder %s25, 3
    %p112 = por %p110, %p111
    %p114 = scmp.ne.s32.totalorder %s97, %s113
    %p115 = scmp.eq.s32.totalorder %s25, 0
    %p116 = por %p114, %p115
    %s117 = ssub.s32 %s27, %s34
    %p118 = scmp.eq.s32.totalorder %s117, 0
    %s120 = sadd.s32 %s119, 1
    %s121 = scalar_select %p118, %s119, %s120
    %p124 = pneg %p118
    %p125 = scmp.eq.s32.totalorder %s19, 3
    %p126 = por %p124, %p125
    %p127 = scmp.ne.s32.totalorder %s119, %s122
    %p128 = scmp.eq.s32.totalorder %s19, 0
    %p129 = por %p127, %p128
    %p130 = scmp.ne.s32.totalorder %s119, %s122
    %p131 = scmp.eq.s32.totalorder %s24, 3
    %p132 = por %p130, %p131
    %p133 = scmp.ne.s32.totalorder %s122, %s123
    %p134 = scmp.eq.s32.totalorder %s24, 0
    %p135 = por %p133, %p134
    %p136 = scmp.ne.s32.totalorder %s122, %s123
    %p137 = scmp.eq.s32.totalorder %s25, 3
    %p138 = por %p136, %p137
    %p140 = scmp.ne.s32.totalorder %s123, %s139
    %p141 = scmp.eq.s32.totalorder %s25, 0
    %p142 = por %p140, %p141
    %s143 = ssub.s32 %s27, %s34
    %p144 = scmp.eq.s32.totalorder %s143, 0
    %s146 = sadd.s32 %s145, 1
    %s147 = scalar_select %p144, %s145, %s146
    %p150 = pneg %p144
    %p151 = scmp.eq.s32.totalorder %s19, 3
    %p152 = por %p150, %p151
    %p153 = scmp.ne.s32.totalorder %s145, %s148
    %p154 = scmp.eq.s32.totalorder %s19, 0
    %p155 = por %p153, %p154
    %p156 = scmp.ne.s32.totalorder %s145, %s148
    %p157 = scmp.eq.s32.totalorder %s24, 3
    %p158 = por %p156, %p157
    %p159 = scmp.ne.s32.totalorder %s148, %s149
    %p160 = scmp.eq.s32.totalorder %s24, 0
    %p161 = por %p159, %p160
    %p162 = scmp.ne.s32.totalorder %s148, %s149
    %p163 = scmp.eq.s32.totalorder %s25, 3
    %p164 = por %p162, %p163
    %p166 = scmp.ne.s32.totalorder %s149, %s165
    %p167 = scmp.eq.s32.totalorder %s25, 0
    %p168 = por %p166, %p167
    %s169 = ssub.s32 %s27, %s34
    %p170 = scmp.eq.s32.totalorder %s169, 0
    %s172 = sadd.s32 %s171, 1
    %s173 = scalar_select %p170, %s171, %s172
    %p176 = pneg %p170
    %p177 = scmp.eq.s32.totalorder %s19, 3
    %p178 = por %p176, %p177
    %p179 = scmp.ne.s32.totalorder %s171, %s174
    %p180 = scmp.eq.s32.totalorder %s19, 0
    %p181 = por %p179, %p180
    %p182 = scmp.ne.s32.totalorder %s171, %s174
    %p183 = scmp.eq.s32.totalorder %s24, 3
    %p184 = por %p182, %p183
    %p185 = scmp.ne.s32.totalorder %s174, %s175
    %p186 = scmp.eq.s32.totalorder %s24, 0
    %p187 = por %p185, %p186
    %p188 = scmp.ne.s32.totalorder %s174, %s175
    %p189 = scmp.eq.s32.totalorder %s25, 3
    %p190 = por %p188, %p189
    %p192 = scmp.ne.s32.totalorder %s175, %s191
    %p193 = scmp.eq.s32.totalorder %s25, 0
    %p194 = por %p192, %p193
    %s195 = ssub.s32 %s27, %s34
    %p196 = scmp.eq.s32.totalorder %s195, 0
    %s198 = sadd.s32 %s197, 1
    %s199 = scalar_select %p196, %s197, %s198
    %p202 = pneg %p196
    %p203 = scmp.eq.s32.totalorder %s19, 3
    %p204 = por %p202, %p203
    %p205 = scmp.ne.s32.totalorder %s197, %s200
    %p206 = scmp.eq.s32.totalorder %s19, 0
    %p207 = por %p205, %p206
    %p208 = scmp.ne.s32.totalorder %s197, %s200
    %p209 = scmp.eq.s32.totalorder %s24, 3
    %p210 = por %p208, %p209
    %p211 = scmp.ne.s32.totalorder %s200, %s201
    %p212 = scmp.eq.s32.totalorder %s24, 0
    %p213 = por %p211, %p212
    %p214 = scmp.ne.s32.totalorder %s200, %s201
    %p215 = scmp.eq.s32.totalorder %s25, 3
    %p216 = por %p214, %p215
    %p218 = scmp.ne.s32.totalorder %s201, %s217
    %p219 = scmp.eq.s32.totalorder %s25, 0
    %p220 = por %p218, %p219
    %s221 = ssub.s32 %s27, %s34
    %p222 = scmp.eq.s32.totalorder %s221, 0
    %s224 = sadd.s32 %s223, 1
    %s225 = scalar_select %p222, %s223, %s224
    %p228 = pneg %p222
    %p229 = scmp.eq.s32.totalorder %s19, 3
    %p230 = por %p228, %p229
    %p231 = scmp.ne.s32.totalorder %s223, %s226
    %p232 = scmp.eq.s32.totalorder %s19, 0
    %p233 = por %p231, %p232
    %p234 = scmp.ne.s32.totalorder %s223, %s226
    %p235 = scmp.eq.s32.totalorder %s24, 3
    %p236 = por %p234, %p235
    %p237 = scmp.ne.s32.totalorder %s226, %s227
    %p238 = scmp.eq.s32.totalorder %s24, 0
    %p239 = por %p237, %p238
    %p240 = scmp.ne.s32.totalorder %s226, %s227
    %p241 = scmp.eq.s32.totalorder %s25, 3
    %p242 = por %p240, %p241
    %p244 = scmp.ne.s32.totalorder %s227, %s243
    %p245 = scmp.eq.s32.totalorder %s25, 0
    %p246 = por %p244, %p245
    %s247 = ssub.s32 %s27, %s34
    %p248 = scmp.eq.s32.totalorder %s247, 0
    %s250 = sadd.s32 %s249, 1
    %s251 = scalar_select %p248, %s249, %s250
    %p254 = pneg %p248
    %p255 = scmp.eq.s32.totalorder %s19, 3
    %p256 = por %p254, %p255
    %p257 = scmp.ne.s32.totalorder %s249, %s252
    %p258 = scmp.eq.s32.totalorder %s19, 0
    %p259 = por %p257, %p258
    %p260 = scmp.ne.s32.totalorder %s249, %s252
    %p261 = scmp.eq.s32.totalorder %s24, 3
    %p262 = por %p260, %p261
    %p263 = scmp.ne.s32.totalorder %s252, %s253
    %p264 = scmp.eq.s32.totalorder %s24, 0
    %p265 = por %p263, %p264
    %p266 = scmp.ne.s32.totalorder %s252, %s253
    %p267 = scmp.eq.s32.totalorder %s25, 3
    %p268 = por %p266, %p267
    %p270 = scmp.ne.s32.totalorder %s253, %s269
    %p271 = scmp.eq.s32.totalorder %s25, 0
    %p272 = por %p270, %p271
    %s273 = ssub.s32 %s27, %s34
    %p274 = scmp.eq.s32.totalorder %s273, 0
    %s276 = sadd.s32 %s275, 1
    %s277 = scalar_select %p274, %s275, %s276
    %p280 = pneg %p274
    %p281 = scmp.eq.s32.totalorder %s19, 3
    %p282 = por %p280, %p281
    %p283 = scmp.ne.s32.totalorder %s275, %s278
    %p284 = scmp.eq.s32.totalorder %s19, 0
    %p285 = por %p283, %p284
    %p286 = scmp.ne.s32.totalorder %s275, %s278
    %p287 = scmp.eq.s32.totalorder %s24, 3
    %p288 = por %p286, %p287
    %p289 = scmp.ne.s32.totalorder %s278, %s279
    %p290 = scmp.eq.s32.totalorder %s24, 0
    %p291 = por %p289, %p290
    %p292 = scmp.ne.s32.totalorder %s278, %s279
    %p293 = scmp.eq.s32.totalorder %s25, 3
    %p294 = por %p292, %p293
    %p296 = scmp.ne.s32.totalorder %s279, %s295
    %p297 = scmp.eq.s32.totalorder %s25, 0
    %p298 = por %p296, %p297
    %s299 = ssub.s32 %s27, %s34
    %p300 = scmp.eq.s32.totalorder %s299, 0
    %s302 = sadd.s32 %s301, 1
    %s303 = scalar_select %p300, %s301, %s302
    %p306 = pneg %p300
    %p307 = scmp.eq.s32.totalorder %s19, 3
    %p308 = por %p306, %p307
    %p309 = scmp.ne.s32.totalorder %s301, %s304
    %p310 = scmp.eq.s32.totalorder %s19, 0
    %p311 = por %p309, %p310
    %p312 = scmp.ne.s32.totalorder %s301, %s304
    %p313 = scmp.eq.s32.totalorder %s24, 3
    %p314 = por %p312, %p313
    %p315 = scmp.ne.s32.totalorder %s304, %s305
    %p316 = scmp.eq.s32.totalorder %s24, 0
    %p317 = por %p315, %p316
    %p318 = scmp.ne.s32.totalorder %s304, %s305
    %p319 = scmp.eq.s32.totalorder %s25, 3
    %p320 = por %p318, %p319
    %p322 = scmp.ne.s32.totalorder %s305, %s321
    %p323 = scmp.eq.s32.totalorder %s25, 0
    %p324 = por %p322, %p323
    %s325 = ssub.s32 %s27, %s34
    %p326 = scmp.eq.s32.totalorder %s325, 0
    %s328 = sadd.s32 %s327, 1
    %s329 = scalar_select %p326, %s327, %s328
    %p332 = pneg %p326
    %p333 = scmp.eq.s32.totalorder %s19, 3
    %p334 = por %p332, %p333
    %p335 = scmp.ne.s32.totalorder %s327, %s330
    %p336 = scmp.eq.s32.totalorder %s19, 0
    %p337 = por %p335, %p336
    %p338 = scmp.ne.s32.totalorder %s327, %s330
    %p339 = scmp.eq.s32.totalorder %s24, 3
    %p340 = por %p338, %p339
    %p341 = scmp.ne.s32.totalorder %s330, %s331
    %p342 = scmp.eq.s32.totalorder %s24, 0
    %p343 = por %p341, %p342
    %p344 = scmp.ne.s32.totalorder %s330, %s331
    %p345 = scmp.eq.s32.totalorder %s25, 3
    %p346 = por %p344, %p345
    %p348 = scmp.ne.s32.totalorder %s331, %s347
    %p349 = scmp.eq.s32.totalorder %s25, 0
    %p350 = por %p348, %p349
    %s351 = ssub.s32 %s27, %s34
    %p352 = scmp.eq.s32.totalorder %s351, 0
    %s354 = sadd.s32 %s353, 1
    %s355 = scalar_select %p352, %s353, %s354
    %p358 = pneg %p352
    %p359 = scmp.eq.s32.totalorder %s19, 3
    %p360 = por %p358, %p359
    %p361 = scmp.ne.s32.totalorder %s353, %s356
    %p362 = scmp.eq.s32.totalorder %s19, 0
    %p363 = por %p361, %p362
    %p364 = scmp.ne.s32.totalorder %s353, %s356
    %p365 = scmp.eq.s32.totalorder %s24, 3
    %p366 = por %p364, %p365
    %p367 = scmp.ne.s32.totalorder %s356, %s357
    %p368 = scmp.eq.s32.totalorder %s24, 0
    %p369 = por %p367, %p368
    %p370 = scmp.ne.s32.totalorder %s356, %s357
    %p371 = scmp.eq.s32.totalorder %s25, 3
    %p372 = por %p370, %p371
    %p374 = scmp.ne.s32.totalorder %s357, %s373
    %p375 = scmp.eq.s32.totalorder %s25, 0
    %p376 = por %p374, %p375
    %s377 = ssub.s32 %s26, %s38
    %p378 = scmp.eq.s32.totalorder %s377, 0
    %s380 = sadd.s32 %s379, 1
    %s381 = scalar_select %p378, %s379, %s380
    %p384 = pneg %p378
    %p385 = scmp.eq.s32.totalorder %s19, 3
    %p386 = por %p384, %p385
    %p387 = scmp.ne.s32.totalorder %s379, %s382
    %p388 = scmp.eq.s32.totalorder %s19, 0
    %p389 = por %p387, %p388
    %p390 = scmp.ne.s32.totalorder %s379, %s382
    %p391 = scmp.eq.s32.totalorder %s24, 3
    %p392 = por %p390, %p391
    %p393 = scmp.ne.s32.totalorder %s382, %s383
    %p394 = scmp.eq.s32.totalorder %s24, 0
    %p395 = por %p393, %p394
    %p396 = scmp.ne.s32.totalorder %s382, %s383
    %p397 = scmp.eq.s32.totalorder %s25, 3
    %p398 = por %p396, %p397
    %p400 = scmp.ne.s32.totalorder %s383, %s399
    %p401 = scmp.eq.s32.totalorder %s25, 0
    %p402 = por %p400, %p401
    %p403 = scmp.le.s32.totalorder 1, %s19
    %p404 = scmp.lt.s32.totalorder %s19, 5
    %p405 = pnand %p403, %p404
    %p406 = pneg %p405
    // Predicated region
    $region9: #{null_cond_encoder_m2mdm_forward.6} parent=5 // pred_check
      _
    $region10: #{null_cond_encoder_m2mdm_forward.6} parent=5 // pred_check_branch
      %408 = sbr.rel (%p405) target = $region12
    $region11: #{null_cond_encoder_m2mdm_forward.6} parent=5 // pred_region
      %s409 = ssub.s32 %s19, 1
    $region12: #{null_cond_encoder_m2mdm_forward.6} parent=5 // pred_fallthru
      _
    %p410 = scmp.lt.s32.totalorder %s19, 4
    // Predicated region
    $region13: #{null_cond_encoder_m2mdm_forward.6} parent=5 // pred_check
      %p411 = pneg %p410
    $region14: #{null_cond_encoder_m2mdm_forward.6} parent=5 // pred_check_branch
      %413 = sbr.rel (%p411) target = $region16
    $region15: #{null_cond_encoder_m2mdm_forward.6} parent=5 // pred_region
      // Predicated region
      $region17: #{null_cond_encoder_m2mdm_forward.6} parent=15 // pred_check
        %p414 = pneg %p51
      $region18: #{null_cond_encoder_m2mdm_forward.6} parent=15 // pred_check_branch
        %416 = sbr.rel (%p414) target = $region20
      $region19: #{null_cond_encoder_m2mdm_forward.6} parent=15 // pred_region
        %p417 = scmp.lt.s32.totalorder %s26, 1
        %s418 = scalar_select %p417, %s26, 1
        %s419 = smul.addr %s418, 4
        %s420 = scalar_lea.vmem %s0, %s419
      $region20: #{null_cond_encoder_m2mdm_forward.6} parent=15 // pred_fallthru
        _
      // Predicated region
      $region21: #{null_cond_encoder_m2mdm_forward.6} parent=15 // pred_check
        %p421 = pneg %p77
      $region22: #{null_cond_encoder_m2mdm_forward.6} parent=15 // pred_check_branch
        %423 = sbr.rel (%p421) target = $region24
      $region23: #{null_cond_encoder_m2mdm_forward.6} parent=15 // pred_region
        %p424 = scmp.lt.s32.totalorder %s27, 1
        %s425 = scalar_select %p424, %s27, 1
        %s426 = smul.addr %s425, 4
        %s427 = smul.addr %s426, 4
        %s428 = scalar_lea.vmem %s1, %s427
      $region24: #{null_cond_encoder_m2mdm_forward.6} parent=15 // pred_fallthru
        _
      // Predicated region
      $region25: #{null_cond_encoder_m2mdm_forward.6} parent=15 // pred_check
        %p429 = pneg %p103
      $region26: #{null_cond_encoder_m2mdm_forward.6} parent=15 // pred_check_branch
        %431 = sbr.rel (%p429) target = $region28
      $region27: #{null_cond_encoder_m2mdm_forward.6} parent=15 // pred_region
        %p432 = scmp.lt.s32.totalorder %s27, 1
        %s433 = scalar_select %p432, %s27, 1
        %s434 = scalar_lea.vmem %s2, %s433
      $region28: #{null_cond_encoder_m2mdm_forward.6} parent=15 // pred_fallthru
        _
      // Predicated region
      $region29: #{null_cond_encoder_m2mdm_forward.6} parent=15 // pred_check
        %p435 = pneg %p129
      $region30: #{null_cond_encoder_m2mdm_forward.6} parent=15 // pred_check_branch
        %437 = sbr.rel (%p435) target = $region32
      $region31: #{null_cond_encoder_m2mdm_forward.6} parent=15 // pred_region
        %p438 = scmp.lt.s32.totalorder %s27, 1
        %s439 = scalar_select %p438, %s27, 1
        %s440 = smul.addr %s439, 4
        %s441 = smul.addr %s440, 4
        %s442 = scalar_lea.vmem %s3, %s441
      $region32: #{null_cond_encoder_m2mdm_forward.6} parent=15 // pred_fallthru
        _
      // Predicated region
      $region33: #{null_cond_encoder_m2mdm_forward.6} parent=15 // pred_check
        %p443 = pneg %p155
      $region34: #{null_cond_encoder_m2mdm_forward.6} parent=15 // pred_check_branch
        %445 = sbr.rel (%p443) target = $region36
      $region35: #{null_cond_encoder_m2mdm_forward.6} parent=15 // pred_region
        %p446 = scmp.lt.s32.totalorder %s27, 1
        %s447 = scalar_select %p446, %s27, 1
        %s448 = scalar_lea.vmem %s4, %s447
      $region36: #{null_cond_encoder_m2mdm_forward.6} parent=15 // pred_fallthru
        _
      // Predicated region
      $region37: #{null_cond_encoder_m2mdm_forward.6} parent=15 // pred_check
        %p449 = pneg %p181
      $region38: #{null_cond_encoder_m2mdm_forward.6} parent=15 // pred_check_branch
        %451 = sbr.rel (%p449) target = $region40
      $region39: #{null_cond_encoder_m2mdm_forward.6} parent=15 // pred_region
        %p452 = scmp.lt.s32.totalorder %s27, 1
        %s453 = scalar_select %p452, %s27, 1
        %s454 = smul.addr %s453, 4
        %s455 = smul.addr %s454, 4
        %s456 = scalar_lea.vmem %s5, %s455
      $region40: #{null_cond_encoder_m2mdm_forward.6} parent=15 // pred_fallthru
        _
      // Predicated region
      $region41: #{null_cond_encoder_m2mdm_forward.6} parent=15 // pred_check
        %p457 = pneg %p207
      $region42: #{null_cond_encoder_m2mdm_forward.6} parent=15 // pred_check_branch
        %459 = sbr.rel (%p457) target = $region44
      $region43: #{null_cond_encoder_m2mdm_forward.6} parent=15 // pred_region
        %p460 = scmp.lt.s32.totalorder %s27, 1
        %s461 = scalar_select %p460, %s27, 1
        %s462 = scalar_lea.vmem %s6, %s461
      $region44: #{null_cond_encoder_m2mdm_forward.6} parent=15 // pred_fallthru
        _
      // Predicated region
      $region45: #{null_cond_encoder_m2mdm_forward.6} parent=15 // pred_check
        %p463 = pneg %p233
      $region46: #{null_cond_encoder_m2mdm_forward.6} parent=15 // pred_check_branch
        %465 = sbr.rel (%p463) target = $region48
      $region47: #{null_cond_encoder_m2mdm_forward.6} parent=15 // pred_region
        %p466 = scmp.lt.s32.totalorder %s27, 1
        %s467 = scalar_select %p466, %s27, 1
        %s468 = smul.addr %s467, 8
        %s469 = smul.addr %s468, 4
        %s470 = scalar_lea.vmem %s7, %s469
      $region48: #{null_cond_encoder_m2mdm_forward.6} parent=15 // pred_fallthru
        _
      // Predicated region
      $region49: #{null_cond_encoder_m2mdm_forward.6} parent=15 // pred_check
        %p471 = pneg %p259
      $region50: #{null_cond_encoder_m2mdm_forward.6} parent=15 // pred_check_branch
        %473 = sbr.rel (%p471) target = $region52
      $region51: #{null_cond_encoder_m2mdm_forward.6} parent=15 // pred_region
        %p474 = scmp.lt.s32.totalorder %s27, 1
        %s475 = scalar_select %p474, %s27, 1
        %s476 = scalar_lea.vmem %s8, %s475
      $region52: #{null_cond_encoder_m2mdm_forward.6} parent=15 // pred_fallthru
        _
      // Predicated region
      $region53: #{null_cond_encoder_m2mdm_forward.6} parent=15 // pred_check
        %p477 = pneg %p285
      $region54: #{null_cond_encoder_m2mdm_forward.6} parent=15 // pred_check_branch
        %479 = sbr.rel (%p477) target = $region56
      $region55: #{null_cond_encoder_m2mdm_forward.6} parent=15 // pred_region
        %p480 = scmp.lt.s32.totalorder %s27, 1
        %s481 = scalar_select %p480, %s27, 1
        %s482 = scalar_lea.vmem %s9, %s481
      $region56: #{null_cond_encoder_m2mdm_forward.6} parent=15 // pred_fallthru
        _
      // Predicated region
      $region57: #{null_cond_encoder_m2mdm_forward.6} parent=15 // pred_check
        %p483 = pneg %p311
      $region58: #{null_cond_encoder_m2mdm_forward.6} parent=15 // pred_check_branch
        %485 = sbr.rel (%p483) target = $region60
      $region59: #{null_cond_encoder_m2mdm_forward.6} parent=15 // pred_region
        %p486 = scmp.lt.s32.totalorder %s27, 1
        %s487 = scalar_select %p486, %s27, 1
        %s488 = scalar_lea.vmem %s10, %s487
      $region60: #{null_cond_encoder_m2mdm_forward.6} parent=15 // pred_fallthru
        _
      // Predicated region
      $region61: #{null_cond_encoder_m2mdm_forward.6} parent=15 // pred_check
        %p489 = pneg %p337
      $region62: #{null_cond_encoder_m2mdm_forward.6} parent=15 // pred_check_branch
        %491 = sbr.rel (%p489) target = $region64
      $region63: #{null_cond_encoder_m2mdm_forward.6} parent=15 // pred_region
        %p492 = scmp.lt.s32.totalorder %s27, 1
        %s493 = scalar_select %p492, %s27, 1
        %s494 = scalar_lea.vmem %s11, %s493
      $region64: #{null_cond_encoder_m2mdm_forward.6} parent=15 // pred_fallthru
        _
      // Predicated region
      $region65: #{null_cond_encoder_m2mdm_forward.6} parent=15 // pred_check
        %p495 = pneg %p363
      $region66: #{null_cond_encoder_m2mdm_forward.6} parent=15 // pred_check_branch
        %497 = sbr.rel (%p495) target = $region68
      $region67: #{null_cond_encoder_m2mdm_forward.6} parent=15 // pred_region
        %p498 = scmp.lt.s32.totalorder %s27, 1
        %s499 = scalar_select %p498, %s27, 1
        %s500 = scalar_lea.vmem %s12, %s499
      $region68: #{null_cond_encoder_m2mdm_forward.6} parent=15 // pred_fallthru
        _
    $region16: #{null_cond_encoder_m2mdm_forward.6} parent=5 // pred_fallthru
      _
    %p501 = scmp.le.s32.totalorder 1, %s19
    %p502 = scmp.lt.s32.totalorder %s19, 5
    %p503 = pnand %p501, %p502
    %p504 = pneg %p503
    // Predicated region
    $region69: #{null_cond_encoder_m2mdm_forward.6} parent=5 // pred_check
      _
    $region70: #{null_cond_encoder_m2mdm_forward.6} parent=5 // pred_check_branch
      %506 = sbr.rel (%p503) target = $region72
    $region71: #{null_cond_encoder_m2mdm_forward.6} parent=5 // pred_region
      %s507 = ssub.s32 %s19, 1
      %p508 = scmp.lt.s32.totalorder %s28, 1
      %s509 = scalar_select %p508, %s28, 1
      %s510 = smul.addr %s509, 4
      %s511 = scalar_lea.vmem %s0, %s510
      %p512 = pneg %p57
      %p513 = pneg %p54
      %p514 = scmp.lt.s32.totalorder %s29, 1
      %s515 = scalar_select %p514, %s29, 1
      %s516 = smul.addr %s515, 4
      %s517 = smul.addr %s516, 4
      %s518 = scalar_lea.vmem %s1, %s517
      %p519 = pneg %p83
      %p520 = pneg %p80
      %p521 = scmp.lt.s32.totalorder %s29, 1
      %s522 = scalar_select %p521, %s29, 1
      %s523 = scalar_lea.vmem %s2, %s522
      %p524 = pneg %p109
      %p525 = pneg %p106
      %p526 = scmp.lt.s32.totalorder %s29, 1
      %s527 = scalar_select %p526, %s29, 1
      %s528 = smul.addr %s527, 4
      %s529 = smul.addr %s528, 4
      %s530 = scalar_lea.vmem %s3, %s529
      %p531 = pneg %p135
      %p532 = pneg %p132
      %p533 = scmp.lt.s32.totalorder %s29, 1
      %s534 = scalar_select %p533, %s29, 1
      %s535 = scalar_lea.vmem %s4, %s534
      %p536 = pneg %p161
      %p537 = pneg %p158
      %p538 = scmp.lt.s32.totalorder %s29, 1
      %s539 = scalar_select %p538, %s29, 1
      %s540 = smul.addr %s539, 4
      %s541 = smul.addr %s540, 4
      %s542 = scalar_lea.vmem %s5, %s541
      %p543 = pneg %p187
      %p544 = pneg %p184
      %p545 = scmp.lt.s32.totalorder %s29, 1
      %s546 = scalar_select %p545, %s29, 1
      %s547 = scalar_lea.vmem %s6, %s546
      %p548 = pneg %p213
      %p549 = pneg %p210
      %p550 = scmp.lt.s32.totalorder %s29, 1
      %s551 = scalar_select %p550, %s29, 1
      %s552 = smul.addr %s551, 8
      %s553 = smul.addr %s552, 4
      %s554 = scalar_lea.vmem %s7, %s553
      %p555 = pneg %p239
      %p556 = pneg %p236
      %p557 = scmp.lt.s32.totalorder %s29, 1
      %s558 = scalar_select %p557, %s29, 1
      %s559 = scalar_lea.vmem %s8, %s558
      %p560 = pneg %p265
      %p561 = pneg %p262
      %p562 = scmp.lt.s32.totalorder %s29, 1
      %s563 = scalar_select %p562, %s29, 1
      %s564 = scalar_lea.vmem %s9, %s563
      %p565 = pneg %p291
      %p566 = pneg %p288
      %p567 = scmp.lt.s32.totalorder %s29, 1
      %s568 = scalar_select %p567, %s29, 1
      %s569 = scalar_lea.vmem %s10, %s568
      %p570 = pneg %p317
      %p571 = pneg %p314
      %p572 = scmp.lt.s32.totalorder %s29, 1
      %s573 = scalar_select %p572, %s29, 1
      %s574 = scalar_lea.vmem %s11, %s573
      %p575 = pneg %p343
      %p576 = pneg %p340
      %p577 = scmp.lt.s32.totalorder %s29, 1
      %s578 = scalar_select %p577, %s29, 1
      %s579 = scalar_lea.vmem %s12, %s578
      %p580 = pneg %p369
      %p581 = pneg %p366
      %p582 = pneg %p395
      %p583 = pneg %p392
      %p584 = scmp.lt.s32.totalorder %s28, 1
      %s585 = scalar_select %p584, %s28, 1
      %s586 = smul.addr %s585, 8
      %s587 = scalar_lea.vmem %s13, %s586
      %p588 = scmp.lt.s32.totalorder %s28, 1
      %s589 = scalar_select %p588, %s28, 1
      %s590 = smul.addr %s589, 4
      %s591 = scalar_lea.vmem %s0, %s590
      %p592 = scmp.lt.s32.totalorder %s29, 1
      %s593 = scalar_select %p592, %s29, 1
      %s594 = smul.addr %s593, 4
      %s595 = smul.addr %s594, 4
      %s596 = scalar_lea.vmem %s1, %s595
      %p597 = scmp.lt.s32.totalorder %s29, 1
      %s598 = scalar_select %p597, %s29, 1
      %s599 = scalar_lea.vmem %s2, %s598
      %p600 = scmp.lt.s32.totalorder %s29, 1
      %s601 = scalar_select %p600, %s29, 1
      %s602 = smul.addr %s601, 4
      %s603 = smul.addr %s602, 4
      %s604 = scalar_lea.vmem %s3, %s603
      %p605 = scmp.lt.s32.totalorder %s29, 1
      %s606 = scalar_select %p605, %s29, 1
      %s607 = scalar_lea.vmem %s4, %s606
      %p608 = scmp.lt.s32.totalorder %s29, 1
      %s609 = scalar_select %p608, %s29, 1
      %s610 = smul.addr %s609, 4
      %s611 = smul.addr %s610, 4
      %s612 = scalar_lea.vmem %s5, %s611
      %p613 = scmp.lt.s32.totalorder %s29, 1
      %s614 = scalar_select %p613, %s29, 1
      %s615 = scalar_lea.vmem %s6, %s614
      %p616 = scmp.lt.s32.totalorder %s29, 1
      %s617 = scalar_select %p616, %s29, 1
      %s618 = smul.addr %s617, 8
      %s619 = smul.addr %s618, 4
      %s620 = scalar_lea.vmem %s7, %s619
      %p621 = scmp.lt.s32.totalorder %s29, 1
      %s622 = scalar_select %p621, %s29, 1
      %s623 = scalar_lea.vmem %s8, %s622
      %p624 = scmp.lt.s32.totalorder %s29, 1
      %s625 = scalar_select %p624, %s29, 1
      %s626 = scalar_lea.vmem %s9, %s625
      %p627 = scmp.lt.s32.totalorder %s29, 1
      %s628 = scalar_select %p627, %s29, 1
      %s629 = scalar_lea.vmem %s10, %s628
      %p630 = scmp.lt.s32.totalorder %s29, 1
      %s631 = scalar_select %p630, %s29, 1
      %s632 = scalar_lea.vmem %s11, %s631
      %p633 = scmp.lt.s32.totalorder %s29, 1
      %s634 = scalar_select %p633, %s29, 1
      %s635 = scalar_lea.vmem %s12, %s634
      %p636 = scmp.lt.s32.totalorder %s28, 1
      %s637 = scalar_select %p636, %s28, 1
      %s638 = smul.addr %s637, 8
      %s639 = scalar_lea.vmem %s13, %s638
      %p641 = scmp.eq.s32.totalorder %s29, 0
      // Predicated region
      $region73: #{null_cond_encoder_m2mdm_forward.6} parent=71 // pred_check
        %p642 = pneg %p641
      $region74: #{null_cond_encoder_m2mdm_forward.6} parent=71 // pred_check_branch
        %644 = sbr.rel (%p642) target = $region76
      $region75: #{null_cond_encoder_m2mdm_forward.6} parent=71 // pred_region
        %v645 = vld [vmem:[%s591] sm:$0xf]
        %v646 = vunpack.c.l.bf16 %v645
        %vm647 = vcmask 261120
        %648 = vst.msk [vmem:[%s639] sm:$0xff] %vm647, %v646
      $region76: #{null_cond_encoder_m2mdm_forward.6} parent=71 // pred_fallthru
        _
      %v649 = vld [vmem:[%s639] sm:$0xff]
      %v650 = vpack.c.bf16 %v649, %v649
      %v651 = vld [vmem:[%s596] sm:$0xf]
      %v652 = vld [vmem:[%s596 + $0x4] sm:$0xf]
      %v653 = vld [vmem:[%s596 + $0x8] sm:$0xf]
      %v654 = vld [vmem:[%s596 + $0xc] sm:$0xf]
      %v655 = vld [vmem:[%s599] sm:$0x1]
      %v657 = vperm.slane %v655, 0
      %v663 = vunpack.c.l.b16 %v651
      %v664 = vunpack.c.l.b16 %v652
      %v665 = vunpack.c.l.b16 %v653
      %v666 = vunpack.c.l.b16 %v654
      %v667 = vpack.c.b16 %v664, %v663
      %v668 = vpack.c.b16 %v666, %v665
      %vm671 = vcmask 261120
      %v673 = vsel %vm671, %v650, 0
      %675 = vmatpush.bf16.msra.mxu0 0
      %676 = vmatpush.bf16.msra.mxu0 0
      %677 = vmatpush.bf16.msra.mxu0 0
      %678 = vmatpush.bf16.msra.mxu0 0
      %679 = vmatpush.bf16.msra.mxu0 0
      %680 = vmatpush.bf16.msra.mxu0 0
      %681 = vmatpush.bf16.msra.mxu0 %v668
      %682 = vmatpush.bf16.msra.mxu0 %v667
      %683 = vmatmul.bf16.gmra.mxu0 %v673
      %v684 = vpop.f32.mrf.mxu0
      %v685 = vadd.f32 %v657, %v684
      %v686 = vpop.f32.mrf.mxu0
      %687 = vdwg.mxu0
      %689 = vrot.lane.b32.xlu0 %v685, 120
      %v690 = vpop.permute.xlu0 %689
      %692 = vrot.lane.b32.xlu0 %v685, 112
      %v693 = vpop.permute.xlu0 %692
      %695 = vrot.lane.b32.xlu0 %v685, 104
      %v696 = vpop.permute.xlu0 %695
      %v698 = vpack.c.bf16 %v685, %v685
      %v699 = vpack.c.bf16 %v690, %v690
      %v700 = vpack.c.bf16 %v693, %v693
      %v701 = vpack.c.bf16 %v696, %v696
      %v703 = vunpack.c.l.b16 %v698
      %v704 = vpack.c.b16 %v703, %v703
      %705 = vrot.lane.b32.xlu0 %v704, 96
      %v706 = vpop.permute.xlu0 %705
      %vm707 = vcmask 64512
      %v709 = vsel %vm707, %v698, 0
      %v712 = vsel %vm707, %v706, 0
      %714 = vmatpush.bf16.xpose.msra.mxu0 0
      %715 = vmatpush.bf16.xpose.msra.mxu0 0
      %716 = vmatpush.bf16.xpose.msra.mxu0 0
      %717 = vmatpush.bf16.xpose.msra.mxu0 0
      %718 = vmatpush.bf16.xpose.msra.mxu0 0
      %719 = vmatpush.bf16.xpose.msra.mxu0 0
      %720 = vmatpush.bf16.xpose.msra.mxu0 0
      %721 = vmatpush.bf16.xpose.msra.mxu0 %v712
      %722 = vmatmul.bf16.gmra.mxu0 %v709
      %v723 = vpop.f32.mrf.mxu0
      %v724 = vadd.f32 0.0, %v723
      %v725 = vpop.f32.mrf.mxu0
      %726 = vdwg.mxu0
      %v728 = vunpack.c.l.b16 %v699
      %v729 = vpack.c.b16 %v728, %v728
      %730 = vrot.lane.b32.xlu0 %v729, 96
      %v731 = vpop.permute.xlu0 %730
      %v733 = vsel %vm707, %v699, 0
      %v736 = vsel %vm707, %v731, 0
      %738 = vmatpush.bf16.xpose.msra.mxu0 0
      %739 = vmatpush.bf16.xpose.msra.mxu0 0
      %740 = vmatpush.bf16.xpose.msra.mxu0 0
      %741 = vmatpush.bf16.xpose.msra.mxu0 0
      %742 = vmatpush.bf16.xpose.msra.mxu0 0
      %743 = vmatpush.bf16.xpose.msra.mxu0 0
      %744 = vmatpush.bf16.xpose.msra.mxu0 0
      %745 = vmatpush.bf16.xpose.msra.mxu0 %v736
      %746 = vmatmul.bf16.gmra.mxu0 %v733
      %v747 = vpop.f32.mrf.mxu0
      %v748 = vadd.f32 0.0, %v747
      %v749 = vpop.f32.mrf.mxu0
      %750 = vdwg.mxu0
      %v752 = vunpack.c.l.b16 %v700
      %v753 = vpack.c.b16 %v752, %v752
      %754 = vrot.lane.b32.xlu0 %v753, 96
      %v755 = vpop.permute.xlu0 %754
      %v757 = vsel %vm707, %v700, 0
      %v760 = vsel %vm707, %v755, 0
      %762 = vmatpush.bf16.xpose.msra.mxu0 0
      %763 = vmatpush.bf16.xpose.msra.mxu0 0
      %764 = vmatpush.bf16.xpose.msra.mxu0 0
      %765 = vmatpush.bf16.xpose.msra.mxu0 0
      %766 = vmatpush.bf16.xpose.msra.mxu0 0
      %767 = vmatpush.bf16.xpose.msra.mxu0 0
      %768 = vmatpush.bf16.xpose.msra.mxu0 0
      %769 = vmatpush.bf16.xpose.msra.mxu0 %v760
      %770 = vmatmul.bf16.gmra.mxu0 %v757
      %v771 = vpop.f32.mrf.mxu0
      %v772 = vadd.f32 0.0, %v771
      %v773 = vpop.f32.mrf.mxu0
      %774 = vdwg.mxu0
      %v776 = vunpack.c.l.b16 %v701
      %v777 = vpack.c.b16 %v776, %v776
      %778 = vrot.lane.b32.xlu0 %v777, 96
      %v779 = vpop.permute.xlu0 %778
      %v781 = vsel %vm707, %v701, 0
      %v784 = vsel %vm707, %v779, 0
      %786 = vmatpush.bf16.xpose.msra.mxu0 0
      %787 = vmatpush.bf16.xpose.msra.mxu0 0
      %788 = vmatpush.bf16.xpose.msra.mxu0 0
      %789 = vmatpush.bf16.xpose.msra.mxu0 0
      %790 = vmatpush.bf16.xpose.msra.mxu0 0
      %791 = vmatpush.bf16.xpose.msra.mxu0 0
      %792 = vmatpush.bf16.xpose.msra.mxu0 0
      %793 = vmatpush.bf16.xpose.msra.mxu0 %v784
      %794 = vmatmul.bf16.gmra.mxu0 %v781
      %v795 = vpop.f32.mrf.mxu0
      %v796 = vadd.f32 0.0, %v795
      %v797 = vpop.f32.mrf.mxu0
      %798 = vdwg.mxu0
      %v799 = vsel %vm707, %v724, -inf
      %800 = vmax.xlane.f32.xlu0 %v799
      %v801 = vpop.xlane.xlu0 %800
      %v802 = vsel %vm707, %v748, -inf
      %803 = vmax.xlane.f32.xlu0 %v802
      %v804 = vpop.xlane.xlu0 %803
      %v805 = vsel %vm707, %v772, -inf
      %806 = vmax.xlane.f32.xlu0 %v805
      %v807 = vpop.xlane.xlu0 %806
      %v808 = vsel %vm707, %v796, -inf
      %809 = vmax.xlane.f32.xlu0 %v808
      %v810 = vpop.xlane.xlu0 %809
      %v811 = vsub.f32 %v724, %v801
      %v812 = vsub.f32 %v748, %v804
      %v813 = vsub.f32 %v772, %v807
      %v814 = vsub.f32 %v796, %v810
      %v815 = vmul.f32 %v811, 1.442695
      %v816 = vpow.pop %v815
      %v817 = vmul.f32 %v812, 1.442695
      %v818 = vpow.pop %v817
      %v819 = vmul.f32 %v813, 1.442695
      %v820 = vpow.pop %v819
      %v821 = vmul.f32 %v814, 1.442695
      %v822 = vpow.pop %v821
      %v823 = vsel %vm707, %v816, 0.0
      %824 = vadd.xlane.f32.xlu0 %v823
      %v825 = vpop.xlane.xlu0 %824
      %v826 = vsel %vm707, %v818, 0.0
      %827 = vadd.xlane.f32.xlu0 %v826
      %v828 = vpop.xlane.xlu0 %827
      %v829 = vsel %vm707, %v820, 0.0
      %830 = vadd.xlane.f32.xlu0 %v829
      %v831 = vpop.xlane.xlu0 %830
      %v832 = vsel %vm707, %v822, 0.0
      %833 = vadd.xlane.f32.xlu0 %v832
      %v834 = vpop.xlane.xlu0 %833
      %v835 = vrcp.pop %v825
      %v836 = vrcp.pop %v828
      %v837 = vrcp.pop %v831
      %v838 = vrcp.pop %v834
      %v839 = vmul.f32 %v816, %v835
      %v840 = vmul.f32 %v818, %v836
      %v841 = vmul.f32 %v820, %v837
      %v842 = vmul.f32 %v822, %v838
      %v843 = vpack.c.bf16 %v839, %v839
      %v844 = vpack.c.bf16 %v840, %v840
      %v845 = vpack.c.bf16 %v841, %v841
      %v846 = vpack.c.bf16 %v842, %v842
      %847 = vrot.lane.b32.xlu0 %v704, 64
      %v848 = vpop.permute.xlu0 %847
      %v850 = vsel %vm707, %v843, 0
      %vm852 = vcmask 1043456
      %v854 = vsel %vm852, %v848, 0
      %856 = vmatpush.bf16.msra.mxu0 0
      %857 = vmatpush.bf16.msra.mxu0 0
      %858 = vmatpush.bf16.msra.mxu0 0
      %859 = vmatpush.bf16.msra.mxu0 0
      %860 = vmatpush.bf16.msra.mxu0 0
      %861 = vmatpush.bf16.msra.mxu0 0
      %862 = vmatpush.bf16.msra.mxu0 0
      %863 = vmatpush.bf16.msra.mxu0 %v854
      %864 = vmatmul.bf16.gmra.mxu0 %v850
      %v865 = vpop.f32.mrf.mxu0
      %v866 = vadd.f32 0.0, %v865
      %v867 = vpop.f32.mrf.mxu0
      %868 = vdwg.mxu0
      %869 = vrot.lane.b32.xlu0 %v729, 64
      %v870 = vpop.permute.xlu0 %869
      %v872 = vsel %vm707, %v844, 0
      %v875 = vsel %vm852, %v870, 0
      %877 = vmatpush.bf16.msra.mxu0 0
      %878 = vmatpush.bf16.msra.mxu0 0
      %879 = vmatpush.bf16.msra.mxu0 0
      %880 = vmatpush.bf16.msra.mxu0 0
      %881 = vmatpush.bf16.msra.mxu0 0
      %882 = vmatpush.bf16.msra.mxu0 0
      %883 = vmatpush.bf16.msra.mxu0 0
      %884 = vmatpush.bf16.msra.mxu0 %v875
      %885 = vmatmul.bf16.gmra.mxu0 %v872
      %v886 = vpop.f32.mrf.mxu0
      %v887 = vadd.f32 0.0, %v886
      %v888 = vpop.f32.mrf.mxu0
      %889 = vdwg.mxu0
      %890 = vrot.lane.b32.xlu0 %v753, 64
      %v891 = vpop.permute.xlu0 %890
      %v893 = vsel %vm707, %v845, 0
      %v896 = vsel %vm852, %v891, 0
      %898 = vmatpush.bf16.msra.mxu0 0
      %899 = vmatpush.bf16.msra.mxu0 0
      %900 = vmatpush.bf16.msra.mxu0 0
      %901 = vmatpush.bf16.msra.mxu0 0
      %902 = vmatpush.bf16.msra.mxu0 0
      %903 = vmatpush.bf16.msra.mxu0 0
      %904 = vmatpush.bf16.msra.mxu0 0
      %905 = vmatpush.bf16.msra.mxu0 %v896
      %906 = vmatmul.bf16.gmra.mxu0 %v893
      %v907 = vpop.f32.mrf.mxu0
      %v908 = vadd.f32 0.0, %v907
      %v909 = vpop.f32.mrf.mxu0
      %910 = vdwg.mxu0
      %911 = vrot.lane.b32.xlu0 %v777, 64
      %v912 = vpop.permute.xlu0 %911
      %v914 = vsel %vm707, %v846, 0
      %v917 = vsel %vm852, %v912, 0
      %919 = vmatpush.bf16.msra.mxu0 0
      %920 = vmatpush.bf16.msra.mxu0 0
      %921 = vmatpush.bf16.msra.mxu0 0
      %922 = vmatpush.bf16.msra.mxu0 0
      %923 = vmatpush.bf16.msra.mxu0 0
      %924 = vmatpush.bf16.msra.mxu0 0
      %925 = vmatpush.bf16.msra.mxu0 0
      %926 = vmatpush.bf16.msra.mxu0 %v917
      %927 = vmatmul.bf16.gmra.mxu0 %v914
      %v928 = vpop.f32.mrf.mxu0
      %v929 = vadd.f32 0.0, %v928
      %v930 = vpop.f32.mrf.mxu0
      %931 = vdwg.mxu0
      %v932 = vpack.c.bf16 %v866, %v866
      %v933 = vld [vmem:[%s604] sm:$0xf]
      %v934 = vpack.c.bf16 %v887, %v887
      %s935 = scalar_lea.vmem %s604, 4
      %v936 = vld [vmem:[%s935] sm:$0xf]
      %v938 = vsel %vm707, %v934, 0
      %v941 = vsel %vm852, %v936, 0
      %943 = vmatpush.bf16.msra.mxu0 0
      %944 = vmatpush.bf16.msra.mxu0 0
      %945 = vmatpush.bf16.msra.mxu0 0
      %946 = vmatpush.bf16.msra.mxu0 0
      %947 = vmatpush.bf16.msra.mxu0 0
      %948 = vmatpush.bf16.msra.mxu0 0
      %949 = vmatpush.bf16.msra.mxu0 0
      %950 = vmatpush.bf16.msra.mxu0 %v941
      %951 = vmatmul.bf16.gmra.mxu0 %v938
      %v952 = vpop.f32.mrf.mxu0
      %v953 = vadd.f32 0.0, %v952
      %v954 = vpop.f32.mrf.mxu0
      %955 = vdwg.mxu0
      %v957 = vsel %vm707, %v932, 0
      %v960 = vsel %vm852, %v933, 0
      %962 = vmatpush.bf16.msra.mxu0 0
      %963 = vmatpush.bf16.msra.mxu0 0
      %964 = vmatpush.bf16.msra.mxu0 0
      %965 = vmatpush.bf16.msra.mxu0 0
      %966 = vmatpush.bf16.msra.mxu0 0
      %967 = vmatpush.bf16.msra.mxu0 0
      %968 = vmatpush.bf16.msra.mxu0 0
      %969 = vmatpush.bf16.msra.mxu0 %v960
      %970 = vmatmul.bf16.gmra.mxu0 %v957
      %v971 = vpop.f32.mrf.mxu0
      %v972 = vadd.f32 %v953, %v971
      %v973 = vpop.f32.mrf.mxu0
      %974 = vdwg.mxu0
      %v975 = vpack.c.bf16 %v908, %v908
      %s976 = scalar_lea.vmem %s604, 8
      %v977 = vld [vmem:[%s976] sm:$0xf]
      %v979 = vsel %vm707, %v975, 0
      %v982 = vsel %vm852, %v977, 0
      %984 = vmatpush.bf16.msra.mxu0 0
      %985 = vmatpush.bf16.msra.mxu0 0
      %986 = vmatpush.bf16.msra.mxu0 0
      %987 = vmatpush.bf16.msra.mxu0 0
      %988 = vmatpush.bf16.msra.mxu0 0
      %989 = vmatpush.bf16.msra.mxu0 0
      %990 = vmatpush.bf16.msra.mxu0 0
      %991 = vmatpush.bf16.msra.mxu0 %v982
      %992 = vmatmul.bf16.gmra.mxu0 %v979
      %v993 = vpop.f32.mrf.mxu0
      %v994 = vadd.f32 0.0, %v993
      %v995 = vpop.f32.mrf.mxu0
      %996 = vdwg.mxu0
      %v997 = vadd.f32 %v972, %v994
      %v998 = vpack.c.bf16 %v929, %v929
      %s999 = scalar_lea.vmem %s604, 12
      %v1000 = vld [vmem:[%s999] sm:$0xf]
      %v1002 = vsel %vm707, %v998, 0
      %v1005 = vsel %vm852, %v1000, 0
      %1007 = vmatpush.bf16.msra.mxu0 0
      %1008 = vmatpush.bf16.msra.mxu0 0
      %1009 = vmatpush.bf16.msra.mxu0 0
      %1010 = vmatpush.bf16.msra.mxu0 0
      %1011 = vmatpush.bf16.msra.mxu0 0
      %1012 = vmatpush.bf16.msra.mxu0 0
      %1013 = vmatpush.bf16.msra.mxu0 0
      %1014 = vmatpush.bf16.msra.mxu0 %v1005
      %1015 = vmatmul.bf16.gmra.mxu0 %v1002
      %v1016 = vpop.f32.mrf.mxu0
      %v1017 = vadd.f32 0.0, %v1016
      %v1018 = vpop.f32.mrf.mxu0
      %1019 = vdwg.mxu0
      %v1020 = vadd.f32 %v997, %v1017
      %v1021 = vld [vmem:[%s607] sm:$0x1]
      %v1023 = vperm.slane %v1021, 0
      %v1025 = vadd.f32 %v1020, %v1023
      %v1026 = vadd.f32 %v649, %v1025
      %v1027 = vld [vmem:[%s626] sm:$0x1]
      %v1028 = vld [vmem:[%s629] sm:$0x1]
      %v1029 = vsel %vm671, %v1026, 0.0
      %1030 = vadd.xlane.f32.xlu0 %v1029
      %v1031 = vpop.xlane.xlu0 %1030
      %v1032 = vrcp.pop 32.0
      %v1033 = vmul.f32 32.0, %v1032
      %v1034 = vsub.f32 1.0, %v1033
      %v1035 = vmul.f32 %v1032, %v1034
      %v1036 = vadd.f32 %v1032, %v1035
      %vm1037 = vweird.f32 %v1032
      %v1038 = vsel %vm1037, %v1032, %v1036
      %v1039 = vmul.f32 %v1031, %v1038
      %v1040 = vsub.f32 %v1026, %v1039
      %v1041 = vmul.f32 %v1040, %v1040
      %v1042 = vsel %vm671, %v1041, 0.0
      %1043 = vadd.xlane.f32.xlu0 %v1042
      %v1044 = vpop.xlane.xlu0 %1043
      %v1045 = vmul.f32 %v1044, %v1038
      %v1046 = vadd.f32 %v1045, 1e-05
      %v1047 = vrsqrt.pop %v1046
      %v1048 = vmul.f32 %v1047, %v1046
      %v1049 = vmul.f32 %v1048, %v1047
      %v1050 = vmul.f32 0.5, %v1049
      %v1051 = vsub.f32 1.5, %v1050
      %v1052 = vmul.f32 %v1047, %v1051
      %vm1053 = vweird.f32 %v1046
      %vm1054 = vweird.f32 %v1047
      %vm1055 = vmor %vm1053, %vm1054
      %v1056 = vsel %vm1055, %v1047, %v1052
      %v1057 = vmul.f32 %v1040, %v1056
      %v1059 = vperm.slane %v1027, 0
      %v1061 = vmul.f32 %v1057, %v1059
      %v1063 = vperm.slane %v1028, 0
      %v1065 = vadd.f32 %v1061, %v1063
      %v1066 = vpack.c.bf16 %v1065, %v1065
      %v1067 = vld [vmem:[%s612] sm:$0xf]
      %v1068 = vld [vmem:[%s612 + $0x4] sm:$0xf]
      %v1069 = vld [vmem:[%s612 + $0x8] sm:$0xf]
      %v1070 = vld [vmem:[%s612 + $0xc] sm:$0xf]
      %v1071 = vld [vmem:[%s615] sm:$0x1]
      %v1073 = vperm.slane %v1071, 0
      %v1079 = vunpack.c.l.b16 %v1067
      %v1080 = vunpack.c.l.b16 %v1068
      %v1081 = vunpack.c.l.b16 %v1069
      %v1082 = vunpack.c.l.b16 %v1070
      %v1083 = vpack.c.b16 %v1080, %v1079
      %v1084 = vpack.c.b16 %v1082, %v1081
      %v1088 = vsel %vm671, %v1066, 0
      %1090 = vmatpush.bf16.msra.mxu0 0
      %1091 = vmatpush.bf16.msra.mxu0 0
      %1092 = vmatpush.bf16.msra.mxu0 0
      %1093 = vmatpush.bf16.msra.mxu0 0
      %1094 = vmatpush.bf16.msra.mxu0 0
      %1095 = vmatpush.bf16.msra.mxu0 0
      %1096 = vmatpush.bf16.msra.mxu0 %v1084
      %1097 = vmatpush.bf16.msra.mxu0 %v1083
      %1098 = vmatmul.bf16.gmra.mxu0 %v1088
      %v1099 = vpop.f32.mrf.mxu0
      %v1100 = vadd.f32 %v1073, %v1099
      %v1101 = vpop.f32.mrf.mxu0
      %1102 = vdwg.mxu0
      %v1103 = vmul.f32 %v1100, %v1100
      %v1104 = vmul.f32 %v1100, %v1103
      %v1105 = vmul.f32 %v1104, 0.044715
      %v1106 = vadd.f32 %v1100, %v1105
      %v1107 = vmul.f32 %v1106, 0.7978846
      %v1108 = vtanh.pop %v1107
      %v1109 = vadd.f32 %v1108, 1.0
      %v1110 = vmul.f32 %v1109, 0.5
      %v1111 = vmul.f32 %v1100, %v1110
      %v1112 = vpack.c.bf16 %v1111, %v1111
      %v1113 = vld [vmem:[%s620] sm:$0xf]
      %v1114 = vld [vmem:[%s620 + $0x4] sm:$0xf]
      %v1115 = vld [vmem:[%s620 + $0x8] sm:$0xf]
      %v1116 = vld [vmem:[%s620 + $0xc] sm:$0xf]
      %v1117 = vld [vmem:[%s620 + $0x10] sm:$0xf]
      %v1118 = vld [vmem:[%s620 + $0x14] sm:$0xf]
      %v1119 = vld [vmem:[%s620 + $0x18] sm:$0xf]
      %v1120 = vld [vmem:[%s620 + $0x1c] sm:$0xf]
      %v1121 = vld [vmem:[%s623] sm:$0x1]
      %v1123 = vperm.slane %v1121, 0
      %v1133 = vunpack.c.l.b16 %v1113
      %v1134 = vunpack.c.l.b16 %v1114
      %v1135 = vunpack.c.l.b16 %v1115
      %v1136 = vunpack.c.l.b16 %v1116
      %v1137 = vunpack.c.l.b16 %v1117
      %v1138 = vunpack.c.l.b16 %v1118
      %v1139 = vunpack.c.l.b16 %v1119
      %v1140 = vunpack.c.l.b16 %v1120
      %v1141 = vpack.c.b16 %v1134, %v1133
      %v1142 = vpack.c.b16 %v1136, %v1135
      %v1143 = vpack.c.b16 %v1138, %v1137
      %v1144 = vpack.c.b16 %v1140, %v1139
      %vm1149 = vcmask 523264
      %v1151 = vsel %vm1149, %v1112, 0
      %1153 = vmatpush.bf16.msra.mxu0 0
      %1154 = vmatpush.bf16.msra.mxu0 0
      %1155 = vmatpush.bf16.msra.mxu0 0
      %1156 = vmatpush.bf16.msra.mxu0 0
      %1157 = vmatpush.bf16.msra.mxu0 %v1144
      %1158 = vmatpush.bf16.msra.mxu0 %v1143
      %1159 = vmatpush.bf16.msra.mxu0 %v1142
      %1160 = vmatpush.bf16.msra.mxu0 %v1141
      %1161 = vmatmul.bf16.gmra.mxu0 %v1151
      %v1162 = vpop.f32.mrf.mxu0
      %v1163 = vadd.f32 %v1123, %v1162
      %v1164 = vpop.f32.mrf.mxu0
      %1165 = vdwg.mxu0
      %v1166 = vadd.f32 %v1065, %v1163
      %v1167 = vld [vmem:[%s632] sm:$0x1]
      %v1168 = vld [vmem:[%s635] sm:$0x1]
      %v1169 = vsel %vm671, %v1166, 0.0
      %1170 = vadd.xlane.f32.xlu0 %v1169
      %v1171 = vpop.xlane.xlu0 %1170
      %v1172 = vmul.f32 %v1171, %v1038
      %v1173 = vsub.f32 %v1166, %v1172
      %v1174 = vmul.f32 %v1173, %v1173
      %v1175 = vsel %vm671, %v1174, 0.0
      %1176 = vadd.xlane.f32.xlu0 %v1175
      %v1177 = vpop.xlane.xlu0 %1176
      %v1178 = vmul.f32 %v1177, %v1038
      %v1179 = vadd.f32 %v1178, 1e-05
      %v1180 = vrsqrt.pop %v1179
      %v1181 = vmul.f32 %v1180, %v1179
      %v1182 = vmul.f32 %v1181, %v1180
      %v1183 = vmul.f32 0.5, %v1182
      %v1184 = vsub.f32 1.5, %v1183
      %v1185 = vmul.f32 %v1180, %v1184
      %vm1186 = vweird.f32 %v1179
      %vm1187 = vweird.f32 %v1180
      %vm1188 = vmor %vm1186, %vm1187
      %v1189 = vsel %vm1188, %v1180, %v1185
      %v1190 = vmul.f32 %v1173, %v1189
      %v1192 = vperm.slane %v1167, 0
      %v1194 = vmul.f32 %v1190, %v1192
      %v1196 = vperm.slane %v1168, 0
      %v1198 = vadd.f32 %v1194, %v1196
      %1199 = vst.msk [vmem:[%s639] sm:$0xff] %vm671, %v1198
      %p1200 = scmp.lt.s32.totalorder %s28, 1
      %s1201 = scalar_select %p1200, %s28, 1
      %s1202 = smul.addr %s1201, 8
      %s1203 = scalar_lea.vmem %s13, %s1202
      // Predicated region
      $region77: #{null_cond_encoder_m2mdm_forward.6} parent=71 // pred_check
        %p1204 = pneg %p392
      $region78: #{null_cond_encoder_m2mdm_forward.6} parent=71 // pred_check_branch
        %1206 = sbr.rel (%p1204) target = $region80
      $region79: #{null_cond_encoder_m2mdm_forward.6} parent=71 // pred_region
        _
      $region80: #{null_cond_encoder_m2mdm_forward.6} parent=71 // pred_fallthru
        _
    $region72: #{null_cond_encoder_m2mdm_forward.6} parent=5 // pred_fallthru
      _
    %p1207 = scmp.le.s32.totalorder 2, %s19
    // Predicated region
    $region81: #{null_cond_encoder_m2mdm_forward.6} parent=5 // pred_check
      %p1208 = pneg %p1207
    $region82: #{null_cond_encoder_m2mdm_forward.6} parent=5 // pred_check_branch
      %1210 = sbr.rel (%p1208) target = $region84
    $region83: #{null_cond_encoder_m2mdm_forward.6} parent=5 // pred_region
      %s1211 = ssub.s32 %s19, 2
      // Predicated region
      $region85: #{null_cond_encoder_m2mdm_forward.6} parent=83 // pred_check
        %p1212 = pneg %p398
      $region86: #{null_cond_encoder_m2mdm_forward.6} parent=83 // pred_check_branch
        %1214 = sbr.rel (%p1212) target = $region88
      $region87: #{null_cond_encoder_m2mdm_forward.6} parent=83 // pred_region
        %p1215 = scmp.lt.s32.totalorder %s30, 1
        %s1216 = scalar_select %p1215, %s30, 1
        %s1217 = smul.addr %s1216, 8
        %s1218 = scalar_lea.vmem %s13, %s1217
      $region88: #{null_cond_encoder_m2mdm_forward.6} parent=83 // pred_fallthru
        _
    $region84: #{null_cond_encoder_m2mdm_forward.6} parent=5 // pred_fallthru
      _
  $region6: #{null_cond_encoder_m2mdm_forward.6} parent=0 // loop_footer
    %s23 = sadd.s32 1, %s19
  $region7: #{null_cond_encoder_m2mdm_forward.6} parent=0 // loop_footer_branch
    %18 = sbr.rel target = $region3
  $region8: #{null_cond_encoder_m2mdm_forward.6} parent=0 // loop_exit
    _

// kernel: null_cond_encoder_m2mdm_forward.8
$region0: #{null_cond_encoder_m2mdm_forward.8}
  #allocation0 [shape = 'u32[]', space=smem, size = 0x4, offset = 0x4, fixed_abs, tag = 'smem constant byte address 0x4 - core index']
  #allocation1 [shape = 'u32[72,128]{1,0:T(1,128)}', space=vmem, size = 0x9000, scoped, tag = 'internal scratch']
  %s0 = inlined_call_operand.vmem [shape: bf16[2,9,32], index: 0, kind: input, shape index: {}]
  %s1 = inlined_call_operand.vmem [shape: bf16[2,32,96], index: 1, kind: input, shape index: {}]
  %s2 = inlined_call_operand.vmem [shape: f32[2,1,96], index: 2, kind: input, shape index: {}]
  %s3 = inlined_call_operand.vmem [shape: bf16[2,4,8,32], index: 3, kind: input, shape index: {}]
  %s4 = inlined_call_operand.vmem [shape: f32[2,1,32], index: 4, kind: input, shape index: {}]
  %s5 = inlined_call_operand.vmem [shape: bf16[2,32,64], index: 5, kind: input, shape index: {}]
  %s6 = inlined_call_operand.vmem [shape: f32[2,1,64], index: 6, kind: input, shape index: {}]
  %s7 = inlined_call_operand.vmem [shape: bf16[2,64,32], index: 7, kind: input, shape index: {}]
  %s8 = inlined_call_operand.vmem [shape: f32[2,1,32], index: 8, kind: input, shape index: {}]
  %s9 = inlined_call_operand.vmem [shape: f32[2,1,32], index: 9, kind: input, shape index: {}]
  %s10 = inlined_call_operand.vmem [shape: f32[2,1,32], index: 10, kind: input, shape index: {}]
  %s11 = inlined_call_operand.vmem [shape: f32[2,1,32], index: 11, kind: input, shape index: {}]
  %s12 = inlined_call_operand.vmem [shape: f32[2,1,32], index: 12, kind: input, shape index: {}]
  %s13 = inlined_call_operand.vmem [shape: f32[2,9,32], index: 13, kind: output, shape index: {}]
  %s14 = sld [smem:[#allocation0]]
  $region89: #{null_cond_encoder_m2mdm_forward.8} parent=0
    _
  %s16 = ssub.s32 1, %s14
  %s17 = scalar_select 0, %s16, %s14
  loop: start=0, step=1, limit=6
  $region2: #{null_cond_encoder_m2mdm_forward.8} parent=0 // loop_pre_header
    _
  $region3: #{null_cond_encoder_m2mdm_forward.8} parent=0 // loop_header
    %s19 = sphi 0, %s23
    %p20 = scmp.ge.s32.totalorder %s19, 6
    %s26 = sphi 0, %s38
    %s27 = sphi 0, %s34
    %s28 = sphi 0, %s26
    %s29 = sphi 0, %s27
    %s30 = sphi 0, %s28
    %s31 = sphi 0, %s29
    %s41 = sphi 0, %s43
    %s44 = sphi 0, %s41
    %s45 = sphi 0, %s44
    %s61 = sphi 0, %s45
    %s67 = sphi 0, %s69
    %s70 = sphi 0, %s67
    %s71 = sphi 0, %s70
    %s87 = sphi 0, %s71
    %s93 = sphi 0, %s95
    %s96 = sphi 0, %s93
    %s97 = sphi 0, %s96
    %s113 = sphi 0, %s97
    %s119 = sphi 0, %s121
    %s122 = sphi 0, %s119
    %s123 = sphi 0, %s122
    %s139 = sphi 0, %s123
    %s145 = sphi 0, %s147
    %s148 = sphi 0, %s145
    %s149 = sphi 0, %s148
    %s165 = sphi 0, %s149
    %s171 = sphi 0, %s173
    %s174 = sphi 0, %s171
    %s175 = sphi 0, %s174
    %s191 = sphi 0, %s175
    %s197 = sphi 0, %s199
    %s200 = sphi 0, %s197
    %s201 = sphi 0, %s200
    %s217 = sphi 0, %s201
    %s223 = sphi 0, %s225
    %s226 = sphi 0, %s223
    %s227 = sphi 0, %s226
    %s243 = sphi 0, %s227
    %s249 = sphi 0, %s251
    %s252 = sphi 0, %s249
    %s253 = sphi 0, %s252
    %s269 = sphi 0, %s253
    %s275 = sphi 0, %s277
    %s278 = sphi 0, %s275
    %s279 = sphi 0, %s278
    %s295 = sphi 0, %s279
    %s301 = sphi 0, %s303
    %s304 = sphi 0, %s301
    %s305 = sphi 0, %s304
    %s321 = sphi 0, %s305
    %s327 = sphi 0, %s329
    %s330 = sphi 0, %s327
    %s331 = sphi 0, %s330
    %s347 = sphi 0, %s331
    %s353 = sphi 0, %s355
    %s356 = sphi 0, %s353
    %s357 = sphi 0, %s356
    %s373 = sphi 0, %s357
    %s379 = sphi 0, %s381
    %s382 = sphi 0, %s379
    %s383 = sphi 0, %s382
    %s399 = sphi 0, %s383
  $region4: #{null_cond_encoder_m2mdm_forward.8} parent=0 // loop_header_branch
    %22 = sbr.rel (%p20) target = $region8
  $region5: #{null_cond_encoder_m2mdm_forward.8} parent=0 // loop_body
    %s24 = ssub.s32 %s19, 1
    %s25 = ssub.s32 %s19, 2
    %s32 = sadd.s32 1, %s27
    %p33 = scmp.ge.s32.totalorder %s32, 2
    %s34 = scalar_select %p33, 0, %s32
    %s35 = sadd.s32 1, %s26
    %s36 = scalar_select %p33, %s35, %s26
    %p37 = scmp.ge.s32.totalorder %s36, 2
    %s38 = scalar_select %p37, 0, %s36
    %s39 = ssub.s32 %s26, %s38
    %p40 = scmp.eq.s32.totalorder %s39, 0
    %s42 = sadd.s32 %s41, 1
    %s43 = scalar_select %p40, %s41, %s42
    %p46 = pneg %p40
    %p47 = scmp.eq.s32.totalorder %s19, 3
    %p48 = por %p46, %p47
    %p49 = scmp.ne.s32.totalorder %s41, %s44
    %p50 = scmp.eq.s32.totalorder %s19, 0
    %p51 = por %p49, %p50
    %p52 = scmp.ne.s32.totalorder %s41, %s44
    %p53 = scmp.eq.s32.totalorder %s24, 3
    %p54 = por %p52, %p53
    %p55 = scmp.ne.s32.totalorder %s44, %s45
    %p56 = scmp.eq.s32.totalorder %s24, 0
    %p57 = por %p55, %p56
    %p58 = scmp.ne.s32.totalorder %s44, %s45
    %p59 = scmp.eq.s32.totalorder %s25, 3
    %p60 = por %p58, %p59
    %p62 = scmp.ne.s32.totalorder %s45, %s61
    %p63 = scmp.eq.s32.totalorder %s25, 0
    %p64 = por %p62, %p63
    %s65 = ssub.s32 %s27, %s34
    %p66 = scmp.eq.s32.totalorder %s65, 0
    %s68 = sadd.s32 %s67, 1
    %s69 = scalar_select %p66, %s67, %s68
    %p72 = pneg %p66
    %p73 = scmp.eq.s32.totalorder %s19, 3
    %p74 = por %p72, %p73
    %p75 = scmp.ne.s32.totalorder %s67, %s70
    %p76 = scmp.eq.s32.totalorder %s19, 0
    %p77 = por %p75, %p76
    %p78 = scmp.ne.s32.totalorder %s67, %s70
    %p79 = scmp.eq.s32.totalorder %s24, 3
    %p80 = por %p78, %p79
    %p81 = scmp.ne.s32.totalorder %s70, %s71
    %p82 = scmp.eq.s32.totalorder %s24, 0
    %p83 = por %p81, %p82
    %p84 = scmp.ne.s32.totalorder %s70, %s71
    %p85 = scmp.eq.s32.totalorder %s25, 3
    %p86 = por %p84, %p85
    %p88 = scmp.ne.s32.totalorder %s71, %s87
    %p89 = scmp.eq.s32.totalorder %s25, 0
    %p90 = por %p88, %p89
    %s91 = ssub.s32 %s27, %s34
    %p92 = scmp.eq.s32.totalorder %s91, 0
    %s94 = sadd.s32 %s93, 1
    %s95 = scalar_select %p92, %s93, %s94
    %p98 = pneg %p92
    %p99 = scmp.eq.s32.totalorder %s19, 3
    %p100 = por %p98, %p99
    %p101 = scmp.ne.s32.totalorder %s93, %s96
    %p102 = scmp.eq.s32.totalorder %s19, 0
    %p103 = por %p101, %p102
    %p104 = scmp.ne.s32.totalorder %s93, %s96
    %p105 = scmp.eq.s32.totalorder %s24, 3
    %p106 = por %p104, %p105
    %p107 = scmp.ne.s32.totalorder %s96, %s97
    %p108 = scmp.eq.s32.totalorder %s24, 0
    %p109 = por %p107, %p108
    %p110 = scmp.ne.s32.totalorder %s96, %s97
    %p111 = scmp.eq.s32.totalorder %s25, 3
    %p112 = por %p110, %p111
    %p114 = scmp.ne.s32.totalorder %s97, %s113
    %p115 = scmp.eq.s32.totalorder %s25, 0
    %p116 = por %p114, %p115
    %s117 = ssub.s32 %s27, %s34
    %p118 = scmp.eq.s32.totalorder %s117, 0
    %s120 = sadd.s32 %s119, 1
    %s121 = scalar_select %p118, %s119, %s120
    %p124 = pneg %p118
    %p125 = scmp.eq.s32.totalorder %s19, 3
    %p126 = por %p124, %p125
    %p127 = scmp.ne.s32.totalorder %s119, %s122
    %p128 = scmp.eq.s32.totalorder %s19, 0
    %p129 = por %p127, %p128
    %p130 = scmp.ne.s32.totalorder %s119, %s122
    %p131 = scmp.eq.s32.totalorder %s24, 3
    %p132 = por %p130, %p131
    %p133 = scmp.ne.s32.totalorder %s122, %s123
    %p134 = scmp.eq.s32.totalorder %s24, 0
    %p135 = por %p133, %p134
    %p136 = scmp.ne.s32.totalorder %s122, %s123
    %p137 = scmp.eq.s32.totalorder %s25, 3
    %p138 = por %p136, %p137
    %p140 = scmp.ne.s32.totalorder %s123, %s139
    %p141 = scmp.eq.s32.totalorder %s25, 0
    %p142 = por %p140, %p141
    %s143 = ssub.s32 %s27, %s34
    %p144 = scmp.eq.s32.totalorder %s143, 0
    %s146 = sadd.s32 %s145, 1
    %s147 = scalar_select %p144, %s145, %s146
    %p150 = pneg %p144
    %p151 = scmp.eq.s32.totalorder %s19, 3
    %p152 = por %p150, %p151
    %p153 = scmp.ne.s32.totalorder %s145, %s148
    %p154 = scmp.eq.s32.totalorder %s19, 0
    %p155 = por %p153, %p154
    %p156 = scmp.ne.s32.totalorder %s145, %s148
    %p157 = scmp.eq.s32.totalorder %s24, 3
    %p158 = por %p156, %p157
    %p159 = scmp.ne.s32.totalorder %s148, %s149
    %p160 = scmp.eq.s32.totalorder %s24, 0
    %p161 = por %p159, %p160
    %p162 = scmp.ne.s32.totalorder %s148, %s149
    %p163 = scmp.eq.s32.totalorder %s25, 3
    %p164 = por %p162, %p163
    %p166 = scmp.ne.s32.totalorder %s149, %s165
    %p167 = scmp.eq.s32.totalorder %s25, 0
    %p168 = por %p166, %p167
    %s169 = ssub.s32 %s27, %s34
    %p170 = scmp.eq.s32.totalorder %s169, 0
    %s172 = sadd.s32 %s171, 1
    %s173 = scalar_select %p170, %s171, %s172
    %p176 = pneg %p170
    %p177 = scmp.eq.s32.totalorder %s19, 3
    %p178 = por %p176, %p177
    %p179 = scmp.ne.s32.totalorder %s171, %s174
    %p180 = scmp.eq.s32.totalorder %s19, 0
    %p181 = por %p179, %p180
    %p182 = scmp.ne.s32.totalorder %s171, %s174
    %p183 = scmp.eq.s32.totalorder %s24, 3
    %p184 = por %p182, %p183
    %p185 = scmp.ne.s32.totalorder %s174, %s175
    %p186 = scmp.eq.s32.totalorder %s24, 0
    %p187 = por %p185, %p186
    %p188 = scmp.ne.s32.totalorder %s174, %s175
    %p189 = scmp.eq.s32.totalorder %s25, 3
    %p190 = por %p188, %p189
    %p192 = scmp.ne.s32.totalorder %s175, %s191
    %p193 = scmp.eq.s32.totalorder %s25, 0
    %p194 = por %p192, %p193
    %s195 = ssub.s32 %s27, %s34
    %p196 = scmp.eq.s32.totalorder %s195, 0
    %s198 = sadd.s32 %s197, 1
    %s199 = scalar_select %p196, %s197, %s198
    %p202 = pneg %p196
    %p203 = scmp.eq.s32.totalorder %s19, 3
    %p204 = por %p202, %p203
    %p205 = scmp.ne.s32.totalorder %s197, %s200
    %p206 = scmp.eq.s32.totalorder %s19, 0
    %p207 = por %p205, %p206
    %p208 = scmp.ne.s32.totalorder %s197, %s200
    %p209 = scmp.eq.s32.totalorder %s24, 3
    %p210 = por %p208, %p209
    %p211 = scmp.ne.s32.totalorder %s200, %s201
    %p212 = scmp.eq.s32.totalorder %s24, 0
    %p213 = por %p211, %p212
    %p214 = scmp.ne.s32.totalorder %s200, %s201
    %p215 = scmp.eq.s32.totalorder %s25, 3
    %p216 = por %p214, %p215
    %p218 = scmp.ne.s32.totalorder %s201, %s217
    %p219 = scmp.eq.s32.totalorder %s25, 0
    %p220 = por %p218, %p219
    %s221 = ssub.s32 %s27, %s34
    %p222 = scmp.eq.s32.totalorder %s221, 0
    %s224 = sadd.s32 %s223, 1
    %s225 = scalar_select %p222, %s223, %s224
    %p228 = pneg %p222
    %p229 = scmp.eq.s32.totalorder %s19, 3
    %p230 = por %p228, %p229
    %p231 = scmp.ne.s32.totalorder %s223, %s226
    %p232 = scmp.eq.s32.totalorder %s19, 0
    %p233 = por %p231, %p232
    %p234 = scmp.ne.s32.totalorder %s223, %s226
    %p235 = scmp.eq.s32.totalorder %s24, 3
    %p236 = por %p234, %p235
    %p237 = scmp.ne.s32.totalorder %s226, %s227
    %p238 = scmp.eq.s32.totalorder %s24, 0
    %p239 = por %p237, %p238
    %p240 = scmp.ne.s32.totalorder %s226, %s227
    %p241 = scmp.eq.s32.totalorder %s25, 3
    %p242 = por %p240, %p241
    %p244 = scmp.ne.s32.totalorder %s227, %s243
    %p245 = scmp.eq.s32.totalorder %s25, 0
    %p246 = por %p244, %p245
    %s247 = ssub.s32 %s27, %s34
    %p248 = scmp.eq.s32.totalorder %s247, 0
    %s250 = sadd.s32 %s249, 1
    %s251 = scalar_select %p248, %s249, %s250
    %p254 = pneg %p248
    %p255 = scmp.eq.s32.totalorder %s19, 3
    %p256 = por %p254, %p255
    %p257 = scmp.ne.s32.totalorder %s249, %s252
    %p258 = scmp.eq.s32.totalorder %s19, 0
    %p259 = por %p257, %p258
    %p260 = scmp.ne.s32.totalorder %s249, %s252
    %p261 = scmp.eq.s32.totalorder %s24, 3
    %p262 = por %p260, %p261
    %p263 = scmp.ne.s32.totalorder %s252, %s253
    %p264 = scmp.eq.s32.totalorder %s24, 0
    %p265 = por %p263, %p264
    %p266 = scmp.ne.s32.totalorder %s252, %s253
    %p267 = scmp.eq.s32.totalorder %s25, 3
    %p268 = por %p266, %p267
    %p270 = scmp.ne.s32.totalorder %s253, %s269
    %p271 = scmp.eq.s32.totalorder %s25, 0
    %p272 = por %p270, %p271
    %s273 = ssub.s32 %s27, %s34
    %p274 = scmp.eq.s32.totalorder %s273, 0
    %s276 = sadd.s32 %s275, 1
    %s277 = scalar_select %p274, %s275, %s276
    %p280 = pneg %p274
    %p281 = scmp.eq.s32.totalorder %s19, 3
    %p282 = por %p280, %p281
    %p283 = scmp.ne.s32.totalorder %s275, %s278
    %p284 = scmp.eq.s32.totalorder %s19, 0
    %p285 = por %p283, %p284
    %p286 = scmp.ne.s32.totalorder %s275, %s278
    %p287 = scmp.eq.s32.totalorder %s24, 3
    %p288 = por %p286, %p287
    %p289 = scmp.ne.s32.totalorder %s278, %s279
    %p290 = scmp.eq.s32.totalorder %s24, 0
    %p291 = por %p289, %p290
    %p292 = scmp.ne.s32.totalorder %s278, %s279
    %p293 = scmp.eq.s32.totalorder %s25, 3
    %p294 = por %p292, %p293
    %p296 = scmp.ne.s32.totalorder %s279, %s295
    %p297 = scmp.eq.s32.totalorder %s25, 0
    %p298 = por %p296, %p297
    %s299 = ssub.s32 %s27, %s34
    %p300 = scmp.eq.s32.totalorder %s299, 0
    %s302 = sadd.s32 %s301, 1
    %s303 = scalar_select %p300, %s301, %s302
    %p306 = pneg %p300
    %p307 = scmp.eq.s32.totalorder %s19, 3
    %p308 = por %p306, %p307
    %p309 = scmp.ne.s32.totalorder %s301, %s304
    %p310 = scmp.eq.s32.totalorder %s19, 0
    %p311 = por %p309, %p310
    %p312 = scmp.ne.s32.totalorder %s301, %s304
    %p313 = scmp.eq.s32.totalorder %s24, 3
    %p314 = por %p312, %p313
    %p315 = scmp.ne.s32.totalorder %s304, %s305
    %p316 = scmp.eq.s32.totalorder %s24, 0
    %p317 = por %p315, %p316
    %p318 = scmp.ne.s32.totalorder %s304, %s305
    %p319 = scmp.eq.s32.totalorder %s25, 3
    %p320 = por %p318, %p319
    %p322 = scmp.ne.s32.totalorder %s305, %s321
    %p323 = scmp.eq.s32.totalorder %s25, 0
    %p324 = por %p322, %p323
    %s325 = ssub.s32 %s27, %s34
    %p326 = scmp.eq.s32.totalorder %s325, 0
    %s328 = sadd.s32 %s327, 1
    %s329 = scalar_select %p326, %s327, %s328
    %p332 = pneg %p326
    %p333 = scmp.eq.s32.totalorder %s19, 3
    %p334 = por %p332, %p333
    %p335 = scmp.ne.s32.totalorder %s327, %s330
    %p336 = scmp.eq.s32.totalorder %s19, 0
    %p337 = por %p335, %p336
    %p338 = scmp.ne.s32.totalorder %s327, %s330
    %p339 = scmp.eq.s32.totalorder %s24, 3
    %p340 = por %p338, %p339
    %p341 = scmp.ne.s32.totalorder %s330, %s331
    %p342 = scmp.eq.s32.totalorder %s24, 0
    %p343 = por %p341, %p342
    %p344 = scmp.ne.s32.totalorder %s330, %s331
    %p345 = scmp.eq.s32.totalorder %s25, 3
    %p346 = por %p344, %p345
    %p348 = scmp.ne.s32.totalorder %s331, %s347
    %p349 = scmp.eq.s32.totalorder %s25, 0
    %p350 = por %p348, %p349
    %s351 = ssub.s32 %s27, %s34
    %p352 = scmp.eq.s32.totalorder %s351, 0
    %s354 = sadd.s32 %s353, 1
    %s355 = scalar_select %p352, %s353, %s354
    %p358 = pneg %p352
    %p359 = scmp.eq.s32.totalorder %s19, 3
    %p360 = por %p358, %p359
    %p361 = scmp.ne.s32.totalorder %s353, %s356
    %p362 = scmp.eq.s32.totalorder %s19, 0
    %p363 = por %p361, %p362
    %p364 = scmp.ne.s32.totalorder %s353, %s356
    %p365 = scmp.eq.s32.totalorder %s24, 3
    %p366 = por %p364, %p365
    %p367 = scmp.ne.s32.totalorder %s356, %s357
    %p368 = scmp.eq.s32.totalorder %s24, 0
    %p369 = por %p367, %p368
    %p370 = scmp.ne.s32.totalorder %s356, %s357
    %p371 = scmp.eq.s32.totalorder %s25, 3
    %p372 = por %p370, %p371
    %p374 = scmp.ne.s32.totalorder %s357, %s373
    %p375 = scmp.eq.s32.totalorder %s25, 0
    %p376 = por %p374, %p375
    %s377 = ssub.s32 %s26, %s38
    %p378 = scmp.eq.s32.totalorder %s377, 0
    %s380 = sadd.s32 %s379, 1
    %s381 = scalar_select %p378, %s379, %s380
    %p384 = pneg %p378
    %p385 = scmp.eq.s32.totalorder %s19, 3
    %p386 = por %p384, %p385
    %p387 = scmp.ne.s32.totalorder %s379, %s382
    %p388 = scmp.eq.s32.totalorder %s19, 0
    %p389 = por %p387, %p388
    %p390 = scmp.ne.s32.totalorder %s379, %s382
    %p391 = scmp.eq.s32.totalorder %s24, 3
    %p392 = por %p390, %p391
    %p393 = scmp.ne.s32.totalorder %s382, %s383
    %p394 = scmp.eq.s32.totalorder %s24, 0
    %p395 = por %p393, %p394
    %p396 = scmp.ne.s32.totalorder %s382, %s383
    %p397 = scmp.eq.s32.totalorder %s25, 3
    %p398 = por %p396, %p397
    %p400 = scmp.ne.s32.totalorder %s383, %s399
    %p401 = scmp.eq.s32.totalorder %s25, 0
    %p402 = por %p400, %p401
    %p403 = scmp.le.s32.totalorder 1, %s19
    %p404 = scmp.lt.s32.totalorder %s19, 5
    %p405 = pnand %p403, %p404
    %p406 = pneg %p405
    // Predicated region
    $region9: #{null_cond_encoder_m2mdm_forward.8} parent=5 // pred_check
      _
    $region10: #{null_cond_encoder_m2mdm_forward.8} parent=5 // pred_check_branch
      %408 = sbr.rel (%p405) target = $region12
    $region11: #{null_cond_encoder_m2mdm_forward.8} parent=5 // pred_region
      %s409 = ssub.s32 %s19, 1
    $region12: #{null_cond_encoder_m2mdm_forward.8} parent=5 // pred_fallthru
      _
    %p410 = scmp.lt.s32.totalorder %s19, 4
    // Predicated region
    $region13: #{null_cond_encoder_m2mdm_forward.8} parent=5 // pred_check
      %p411 = pneg %p410
    $region14: #{null_cond_encoder_m2mdm_forward.8} parent=5 // pred_check_branch
      %413 = sbr.rel (%p411) target = $region16
    $region15: #{null_cond_encoder_m2mdm_forward.8} parent=5 // pred_region
      // Predicated region
      $region17: #{null_cond_encoder_m2mdm_forward.8} parent=15 // pred_check
        %p414 = pneg %p51
      $region18: #{null_cond_encoder_m2mdm_forward.8} parent=15 // pred_check_branch
        %416 = sbr.rel (%p414) target = $region20
      $region19: #{null_cond_encoder_m2mdm_forward.8} parent=15 // pred_region
        %p417 = scmp.lt.s32.totalorder %s26, 1
        %s418 = scalar_select %p417, %s26, 1
        %s419 = smul.addr %s418, 2
        %s420 = smul.addr %s419, 4
        %s421 = scalar_lea.vmem %s0, %s420
      $region20: #{null_cond_encoder_m2mdm_forward.8} parent=15 // pred_fallthru
        _
      // Predicated region
      $region21: #{null_cond_encoder_m2mdm_forward.8} parent=15 // pred_check
        %p422 = pneg %p77
      $region22: #{null_cond_encoder_m2mdm_forward.8} parent=15 // pred_check_branch
        %424 = sbr.rel (%p422) target = $region24
      $region23: #{null_cond_encoder_m2mdm_forward.8} parent=15 // pred_region
        %p425 = scmp.lt.s32.totalorder %s27, 1
        %s426 = scalar_select %p425, %s27, 1
        %s427 = smul.addr %s426, 4
        %s428 = smul.addr %s427, 4
        %s429 = scalar_lea.vmem %s1, %s428
      $region24: #{null_cond_encoder_m2mdm_forward.8} parent=15 // pred_fallthru
        _
      // Predicated region
      $region25: #{null_cond_encoder_m2mdm_forward.8} parent=15 // pred_check
        %p430 = pneg %p103
      $region26: #{null_cond_encoder_m2mdm_forward.8} parent=15 // pred_check_branch
        %432 = sbr.rel (%p430) target = $region28
      $region27: #{null_cond_encoder_m2mdm_forward.8} parent=15 // pred_region
        %p433 = scmp.lt.s32.totalorder %s27, 1
        %s434 = scalar_select %p433, %s27, 1
        %s435 = scalar_lea.vmem %s2, %s434
      $region28: #{null_cond_encoder_m2mdm_forward.8} parent=15 // pred_fallthru
        _
      // Predicated region
      $region29: #{null_cond_encoder_m2mdm_forward.8} parent=15 // pred_check
        %p436 = pneg %p129
      $region30: #{null_cond_encoder_m2mdm_forward.8} parent=15 // pred_check_branch
        %438 = sbr.rel (%p436) target = $region32
      $region31: #{null_cond_encoder_m2mdm_forward.8} parent=15 // pred_region
        %p439 = scmp.lt.s32.totalorder %s27, 1
        %s440 = scalar_select %p439, %s27, 1
        %s441 = smul.addr %s440, 4
        %s442 = smul.addr %s441, 4
        %s443 = scalar_lea.vmem %s3, %s442
      $region32: #{null_cond_encoder_m2mdm_forward.8} parent=15 // pred_fallthru
        _
      // Predicated region
      $region33: #{null_cond_encoder_m2mdm_forward.8} parent=15 // pred_check
        %p444 = pneg %p155
      $region34: #{null_cond_encoder_m2mdm_forward.8} parent=15 // pred_check_branch
        %446 = sbr.rel (%p444) target = $region36
      $region35: #{null_cond_encoder_m2mdm_forward.8} parent=15 // pred_region
        %p447 = scmp.lt.s32.totalorder %s27, 1
        %s448 = scalar_select %p447, %s27, 1
        %s449 = scalar_lea.vmem %s4, %s448
      $region36: #{null_cond_encoder_m2mdm_forward.8} parent=15 // pred_fallthru
        _
      // Predicated region
      $region37: #{null_cond_encoder_m2mdm_forward.8} parent=15 // pred_check
        %p450 = pneg %p181
      $region38: #{null_cond_encoder_m2mdm_forward.8} parent=15 // pred_check_branch
        %452 = sbr.rel (%p450) target = $region40
      $region39: #{null_cond_encoder_m2mdm_forward.8} parent=15 // pred_region
        %p453 = scmp.lt.s32.totalorder %s27, 1
        %s454 = scalar_select %p453, %s27, 1
        %s455 = smul.addr %s454, 4
        %s456 = smul.addr %s455, 4
        %s457 = scalar_lea.vmem %s5, %s456
      $region40: #{null_cond_encoder_m2mdm_forward.8} parent=15 // pred_fallthru
        _
      // Predicated region
      $region41: #{null_cond_encoder_m2mdm_forward.8} parent=15 // pred_check
        %p458 = pneg %p207
      $region42: #{null_cond_encoder_m2mdm_forward.8} parent=15 // pred_check_branch
        %460 = sbr.rel (%p458) target = $region44
      $region43: #{null_cond_encoder_m2mdm_forward.8} parent=15 // pred_region
        %p461 = scmp.lt.s32.totalorder %s27, 1
        %s462 = scalar_select %p461, %s27, 1
        %s463 = scalar_lea.vmem %s6, %s462
      $region44: #{null_cond_encoder_m2mdm_forward.8} parent=15 // pred_fallthru
        _
      // Predicated region
      $region45: #{null_cond_encoder_m2mdm_forward.8} parent=15 // pred_check
        %p464 = pneg %p233
      $region46: #{null_cond_encoder_m2mdm_forward.8} parent=15 // pred_check_branch
        %466 = sbr.rel (%p464) target = $region48
      $region47: #{null_cond_encoder_m2mdm_forward.8} parent=15 // pred_region
        %p467 = scmp.lt.s32.totalorder %s27, 1
        %s468 = scalar_select %p467, %s27, 1
        %s469 = smul.addr %s468, 8
        %s470 = smul.addr %s469, 4
        %s471 = scalar_lea.vmem %s7, %s470
      $region48: #{null_cond_encoder_m2mdm_forward.8} parent=15 // pred_fallthru
        _
      // Predicated region
      $region49: #{null_cond_encoder_m2mdm_forward.8} parent=15 // pred_check
        %p472 = pneg %p259
      $region50: #{null_cond_encoder_m2mdm_forward.8} parent=15 // pred_check_branch
        %474 = sbr.rel (%p472) target = $region52
      $region51: #{null_cond_encoder_m2mdm_forward.8} parent=15 // pred_region
        %p475 = scmp.lt.s32.totalorder %s27, 1
        %s476 = scalar_select %p475, %s27, 1
        %s477 = scalar_lea.vmem %s8, %s476
      $region52: #{null_cond_encoder_m2mdm_forward.8} parent=15 // pred_fallthru
        _
      // Predicated region
      $region53: #{null_cond_encoder_m2mdm_forward.8} parent=15 // pred_check
        %p478 = pneg %p285
      $region54: #{null_cond_encoder_m2mdm_forward.8} parent=15 // pred_check_branch
        %480 = sbr.rel (%p478) target = $region56
      $region55: #{null_cond_encoder_m2mdm_forward.8} parent=15 // pred_region
        %p481 = scmp.lt.s32.totalorder %s27, 1
        %s482 = scalar_select %p481, %s27, 1
        %s483 = scalar_lea.vmem %s9, %s482
      $region56: #{null_cond_encoder_m2mdm_forward.8} parent=15 // pred_fallthru
        _
      // Predicated region
      $region57: #{null_cond_encoder_m2mdm_forward.8} parent=15 // pred_check
        %p484 = pneg %p311
      $region58: #{null_cond_encoder_m2mdm_forward.8} parent=15 // pred_check_branch
        %486 = sbr.rel (%p484) target = $region60
      $region59: #{null_cond_encoder_m2mdm_forward.8} parent=15 // pred_region
        %p487 = scmp.lt.s32.totalorder %s27, 1
        %s488 = scalar_select %p487, %s27, 1
        %s489 = scalar_lea.vmem %s10, %s488
      $region60: #{null_cond_encoder_m2mdm_forward.8} parent=15 // pred_fallthru
        _
      // Predicated region
      $region61: #{null_cond_encoder_m2mdm_forward.8} parent=15 // pred_check
        %p490 = pneg %p337
      $region62: #{null_cond_encoder_m2mdm_forward.8} parent=15 // pred_check_branch
        %492 = sbr.rel (%p490) target = $region64
      $region63: #{null_cond_encoder_m2mdm_forward.8} parent=15 // pred_region
        %p493 = scmp.lt.s32.totalorder %s27, 1
        %s494 = scalar_select %p493, %s27, 1
        %s495 = scalar_lea.vmem %s11, %s494
      $region64: #{null_cond_encoder_m2mdm_forward.8} parent=15 // pred_fallthru
        _
      // Predicated region
      $region65: #{null_cond_encoder_m2mdm_forward.8} parent=15 // pred_check
        %p496 = pneg %p363
      $region66: #{null_cond_encoder_m2mdm_forward.8} parent=15 // pred_check_branch
        %498 = sbr.rel (%p496) target = $region68
      $region67: #{null_cond_encoder_m2mdm_forward.8} parent=15 // pred_region
        %p499 = scmp.lt.s32.totalorder %s27, 1
        %s500 = scalar_select %p499, %s27, 1
        %s501 = scalar_lea.vmem %s12, %s500
      $region68: #{null_cond_encoder_m2mdm_forward.8} parent=15 // pred_fallthru
        _
    $region16: #{null_cond_encoder_m2mdm_forward.8} parent=5 // pred_fallthru
      _
    %p502 = scmp.le.s32.totalorder 1, %s19
    %p503 = scmp.lt.s32.totalorder %s19, 5
    %p504 = pnand %p502, %p503
    %p505 = pneg %p504
    // Predicated region
    $region69: #{null_cond_encoder_m2mdm_forward.8} parent=5 // pred_check
      _
    $region70: #{null_cond_encoder_m2mdm_forward.8} parent=5 // pred_check_branch
      %507 = sbr.rel (%p504) target = $region72
    $region71: #{null_cond_encoder_m2mdm_forward.8} parent=5 // pred_region
      %s508 = ssub.s32 %s19, 1
      %p509 = scmp.lt.s32.totalorder %s28, 1
      %s510 = scalar_select %p509, %s28, 1
      %s511 = smul.addr %s510, 2
      %s512 = smul.addr %s511, 4
      %s513 = scalar_lea.vmem %s0, %s512
      %p514 = pneg %p57
      %p515 = pneg %p54
      %p516 = scmp.lt.s32.totalorder %s29, 1
      %s517 = scalar_select %p516, %s29, 1
      %s518 = smul.addr %s517, 4
      %s519 = smul.addr %s518, 4
      %s520 = scalar_lea.vmem %s1, %s519
      %p521 = pneg %p83
      %p522 = pneg %p80
      %p523 = scmp.lt.s32.totalorder %s29, 1
      %s524 = scalar_select %p523, %s29, 1
      %s525 = scalar_lea.vmem %s2, %s524
      %p526 = pneg %p109
      %p527 = pneg %p106
      %p528 = scmp.lt.s32.totalorder %s29, 1
      %s529 = scalar_select %p528, %s29, 1
      %s530 = smul.addr %s529, 4
      %s531 = smul.addr %s530, 4
      %s532 = scalar_lea.vmem %s3, %s531
      %p533 = pneg %p135
      %p534 = pneg %p132
      %p535 = scmp.lt.s32.totalorder %s29, 1
      %s536 = scalar_select %p535, %s29, 1
      %s537 = scalar_lea.vmem %s4, %s536
      %p538 = pneg %p161
      %p539 = pneg %p158
      %p540 = scmp.lt.s32.totalorder %s29, 1
      %s541 = scalar_select %p540, %s29, 1
      %s542 = smul.addr %s541, 4
      %s543 = smul.addr %s542, 4
      %s544 = scalar_lea.vmem %s5, %s543
      %p545 = pneg %p187
      %p546 = pneg %p184
      %p547 = scmp.lt.s32.totalorder %s29, 1
      %s548 = scalar_select %p547, %s29, 1
      %s549 = scalar_lea.vmem %s6, %s548
      %p550 = pneg %p213
      %p551 = pneg %p210
      %p552 = scmp.lt.s32.totalorder %s29, 1
      %s553 = scalar_select %p552, %s29, 1
      %s554 = smul.addr %s553, 8
      %s555 = smul.addr %s554, 4
      %s556 = scalar_lea.vmem %s7, %s555
      %p557 = pneg %p239
      %p558 = pneg %p236
      %p559 = scmp.lt.s32.totalorder %s29, 1
      %s560 = scalar_select %p559, %s29, 1
      %s561 = scalar_lea.vmem %s8, %s560
      %p562 = pneg %p265
      %p563 = pneg %p262
      %p564 = scmp.lt.s32.totalorder %s29, 1
      %s565 = scalar_select %p564, %s29, 1
      %s566 = scalar_lea.vmem %s9, %s565
      %p567 = pneg %p291
      %p568 = pneg %p288
      %p569 = scmp.lt.s32.totalorder %s29, 1
      %s570 = scalar_select %p569, %s29, 1
      %s571 = scalar_lea.vmem %s10, %s570
      %p572 = pneg %p317
      %p573 = pneg %p314
      %p574 = scmp.lt.s32.totalorder %s29, 1
      %s575 = scalar_select %p574, %s29, 1
      %s576 = scalar_lea.vmem %s11, %s575
      %p577 = pneg %p343
      %p578 = pneg %p340
      %p579 = scmp.lt.s32.totalorder %s29, 1
      %s580 = scalar_select %p579, %s29, 1
      %s581 = scalar_lea.vmem %s12, %s580
      %p582 = pneg %p369
      %p583 = pneg %p366
      %p584 = pneg %p395
      %p585 = pneg %p392
      %p586 = scmp.lt.s32.totalorder %s28, 1
      %s587 = scalar_select %p586, %s28, 1
      %s588 = smul.addr %s587, 2
      %s589 = smul.addr %s588, 8
      %s590 = scalar_lea.vmem %s13, %s589
      %p591 = scmp.lt.s32.totalorder %s28, 1
      %s592 = scalar_select %p591, %s28, 1
      %s593 = smul.addr %s592, 2
      %s594 = smul.addr %s593, 4
      %s595 = scalar_lea.vmem %s0, %s594
      %p596 = scmp.lt.s32.totalorder %s29, 1
      %s597 = scalar_select %p596, %s29, 1
      %s598 = smul.addr %s597, 4
      %s599 = smul.addr %s598, 4
      %s600 = scalar_lea.vmem %s1, %s599
      %p601 = scmp.lt.s32.totalorder %s29, 1
      %s602 = scalar_select %p601, %s29, 1
      %s603 = scalar_lea.vmem %s2, %s602
      %p604 = scmp.lt.s32.totalorder %s29, 1
      %s605 = scalar_select %p604, %s29, 1
      %s606 = smul.addr %s605, 4
      %s607 = smul.addr %s606, 4
      %s608 = scalar_lea.vmem %s3, %s607
      %p609 = scmp.lt.s32.totalorder %s29, 1
      %s610 = scalar_select %p609, %s29, 1
      %s611 = scalar_lea.vmem %s4, %s610
      %p612 = scmp.lt.s32.totalorder %s29, 1
      %s613 = scalar_select %p612, %s29, 1
      %s614 = smul.addr %s613, 4
      %s615 = smul.addr %s614, 4
      %s616 = scalar_lea.vmem %s5, %s615
      %p617 = scmp.lt.s32.totalorder %s29, 1
      %s618 = scalar_select %p617, %s29, 1
      %s619 = scalar_lea.vmem %s6, %s618
      %p620 = scmp.lt.s32.totalorder %s29, 1
      %s621 = scalar_select %p620, %s29, 1
      %s622 = smul.addr %s621, 8
      %s623 = smul.addr %s622, 4
      %s624 = scalar_lea.vmem %s7, %s623
      %p625 = scmp.lt.s32.totalorder %s29, 1
      %s626 = scalar_select %p625, %s29, 1
      %s627 = scalar_lea.vmem %s8, %s626
      %p628 = scmp.lt.s32.totalorder %s29, 1
      %s629 = scalar_select %p628, %s29, 1
      %s630 = scalar_lea.vmem %s9, %s629
      %p631 = scmp.lt.s32.totalorder %s29, 1
      %s632 = scalar_select %p631, %s29, 1
      %s633 = scalar_lea.vmem %s10, %s632
      %p634 = scmp.lt.s32.totalorder %s29, 1
      %s635 = scalar_select %p634, %s29, 1
      %s636 = scalar_lea.vmem %s11, %s635
      %p637 = scmp.lt.s32.totalorder %s29, 1
      %s638 = scalar_select %p637, %s29, 1
      %s639 = scalar_lea.vmem %s12, %s638
      %p640 = scmp.lt.s32.totalorder %s28, 1
      %s641 = scalar_select %p640, %s28, 1
      %s642 = smul.addr %s641, 2
      %s643 = smul.addr %s642, 8
      %s644 = scalar_lea.vmem %s13, %s643
      %p646 = scmp.eq.s32.totalorder %s29, 0
      // Predicated region
      $region73: #{null_cond_encoder_m2mdm_forward.8} parent=71 // pred_check
        %p647 = pneg %p646
      $region74: #{null_cond_encoder_m2mdm_forward.8} parent=71 // pred_check_branch
        %649 = sbr.rel (%p647) target = $region76
      $region75: #{null_cond_encoder_m2mdm_forward.8} parent=71 // pred_region
        %v650 = vld [vmem:[%s595] sm:$0xf]
        %v651 = vld [vmem:[%s595 + $0x4] sm:$0x1]
        %v652 = vunpack.c.l.bf16 %v650
        %v653 = vunpack.c.l.bf16 %v651
        %vm654 = vcmask 261120
        %655 = vst.msk [vmem:[%s644] sm:$0xff] %vm654, %v652
        %vm656 = vcmask 253952
        %657 = vst.msk [vmem:[%s644 + $0x8] sm:$0x1] %vm656, %v653
      $region76: #{null_cond_encoder_m2mdm_forward.8} parent=71 // pred_fallthru
        _
      %v658 = vld [vmem:[%s644] sm:$0xff]
      %v659 = vld [vmem:[%s644 + $0x8] sm:$0x1]
      %v660 = vpack.c.bf16 %v659, %v658
      %v661 = vld [vmem:[%s600] sm:$0xf]
      %v662 = vld [vmem:[%s600 + $0x4] sm:$0xf]
      %v663 = vld [vmem:[%s600 + $0x8] sm:$0xf]
      %v664 = vld [vmem:[%s600 + $0xc] sm:$0xf]
      %v665 = vld [vmem:[%s603] sm:$0x1]
      %v667 = vperm.slane %v665, 0
      %v673 = vunpack.c.l.b16 %v661
      %v674 = vunpack.c.l.b16 %v662
      %v675 = vunpack.c.l.b16 %v663
      %v676 = vunpack.c.l.b16 %v664
      %v677 = vpack.c.b16 %v674, %v673
      %v678 = vpack.c.b16 %v676, %v675
      %vm681 = vcmask 261120
      %v683 = vsel %vm681, %v660, 0
      %685 = vmatpush.bf16.msra.mxu0 0
      %686 = vmatpush.bf16.msra.mxu0 0
      %687 = vmatpush.bf16.msra.mxu0 0
      %688 = vmatpush.bf16.msra.mxu0 0
      %689 = vmatpush.bf16.msra.mxu0 0
      %690 = vmatpush.bf16.msra.mxu0 0
      %691 = vmatpush.bf16.msra.mxu0 %v678
      %692 = vmatpush.bf16.msra.mxu0 %v677
      %693 = vmatmul.bf16.gmra.mxu0 %v683
      %v694 = vpop.f32.mrf.mxu0
      %v695 = vadd.f32 %v667, %v694
      %v696 = vpop.f32.mrf.mxu0
      %v697 = vadd.f32 %v667, %v696
      %698 = vdwg.mxu0
      %701 = vrot.lane.b32.xlu0 %v695, 120
      %v702 = vpop.permute.xlu0 %701
      %703 = vrot.lane.b32.xlu0 %v697, 120
      %v704 = vpop.permute.xlu0 %703
      %707 = vrot.lane.b32.xlu0 %v695, 112
      %v708 = vpop.permute.xlu0 %707
      %709 = vrot.lane.b32.xlu0 %v697, 112
      %v710 = vpop.permute.xlu0 %709
      %713 = vrot.lane.b32.xlu0 %v695, 104
      %v714 = vpop.permute.xlu0 %713
      %715 = vrot.lane.b32.xlu0 %v697, 104
      %v716 = vpop.permute.xlu0 %715
      %v719 = vpack.c.bf16 %v695, %v695
      %v720 = vpack.c.bf16 %v697, %v697
      %v721 = vpack.c.bf16 %v702, %v702
      %v722 = vpack.c.bf16 %v704, %v704
      %v723 = vpack.c.bf16 %v708, %v708
      %v724 = vpack.c.bf16 %v710, %v710
      %v725 = vpack.c.bf16 %v714, %v714
      %v726 = vpack.c.bf16 %v716, %v716
      %v729 = vunpack.c.l.b16 %v719
      %v730 = vunpack.c.l.b16 %v720
      %v731 = vpack.c.b16 %v730, %v729
      %732 = vrot.lane.b32.xlu0 %v731, 96
      %v733 = vpop.permute.xlu0 %732
      %vm734 = vcmask 64512
      %v736 = vsel %vm734, %v731, 0
      %v739 = vsel %vm734, %v733, 0
      %741 = vmatpush.bf16.xpose.msra.mxu0 0
      %742 = vmatpush.bf16.xpose.msra.mxu0 0
      %743 = vmatpush.bf16.xpose.msra.mxu0 0
      %744 = vmatpush.bf16.xpose.msra.mxu0 0
      %745 = vmatpush.bf16.xpose.msra.mxu0 0
      %746 = vmatpush.bf16.xpose.msra.mxu0 0
      %747 = vmatpush.bf16.xpose.msra.mxu0 0
      %748 = vmatpush.bf16.xpose.msra.mxu0 %v739
      %749 = vmatmul.bf16.gmra.mxu0 %v736
      %v750 = vpop.f32.mrf.mxu0
      %v751 = vadd.f32 0.0, %v750
      %v752 = vpop.f32.mrf.mxu0
      %v753 = vadd.f32 0.0, %v752
      %754 = vdwg.mxu0
      %v757 = vunpack.c.l.b16 %v721
      %v758 = vunpack.c.l.b16 %v722
      %v759 = vpack.c.b16 %v758, %v757
      %760 = vrot.lane.b32.xlu0 %v759, 96
      %v761 = vpop.permute.xlu0 %760
      %v763 = vsel %vm734, %v759, 0
      %v766 = vsel %vm734, %v761, 0
      %768 = vmatpush.bf16.xpose.msra.mxu0 0
      %769 = vmatpush.bf16.xpose.msra.mxu0 0
      %770 = vmatpush.bf16.xpose.msra.mxu0 0
      %771 = vmatpush.bf16.xpose.msra.mxu0 0
      %772 = vmatpush.bf16.xpose.msra.mxu0 0
      %773 = vmatpush.bf16.xpose.msra.mxu0 0
      %774 = vmatpush.bf16.xpose.msra.mxu0 0
      %775 = vmatpush.bf16.xpose.msra.mxu0 %v766
      %776 = vmatmul.bf16.gmra.mxu0 %v763
      %v777 = vpop.f32.mrf.mxu0
      %v778 = vadd.f32 0.0, %v777
      %v779 = vpop.f32.mrf.mxu0
      %v780 = vadd.f32 0.0, %v779
      %781 = vdwg.mxu0
      %v784 = vunpack.c.l.b16 %v723
      %v785 = vunpack.c.l.b16 %v724
      %v786 = vpack.c.b16 %v785, %v784
      %787 = vrot.lane.b32.xlu0 %v786, 96
      %v788 = vpop.permute.xlu0 %787
      %v790 = vsel %vm734, %v786, 0
      %v793 = vsel %vm734, %v788, 0
      %795 = vmatpush.bf16.xpose.msra.mxu0 0
      %796 = vmatpush.bf16.xpose.msra.mxu0 0
      %797 = vmatpush.bf16.xpose.msra.mxu0 0
      %798 = vmatpush.bf16.xpose.msra.mxu0 0
      %799 = vmatpush.bf16.xpose.msra.mxu0 0
      %800 = vmatpush.bf16.xpose.msra.mxu0 0
      %801 = vmatpush.bf16.xpose.msra.mxu0 0
      %802 = vmatpush.bf16.xpose.msra.mxu0 %v793
      %803 = vmatmul.bf16.gmra.mxu0 %v790
      %v804 = vpop.f32.mrf.mxu0
      %v805 = vadd.f32 0.0, %v804
      %v806 = vpop.f32.mrf.mxu0
      %v807 = vadd.f32 0.0, %v806
      %808 = vdwg.mxu0
      %v811 = vunpack.c.l.b16 %v725
      %v812 = vunpack.c.l.b16 %v726
      %v813 = vpack.c.b16 %v812, %v811
      %814 = vrot.lane.b32.xlu0 %v813, 96
      %v815 = vpop.permute.xlu0 %814
      %v817 = vsel %vm734, %v813, 0
      %v820 = vsel %vm734, %v815, 0
      %822 = vmatpush.bf16.xpose.msra.mxu0 0
      %823 = vmatpush.bf16.xpose.msra.mxu0 0
      %824 = vmatpush.bf16.xpose.msra.mxu0 0
      %825 = vmatpush.bf16.xpose.msra.mxu0 0
      %826 = vmatpush.bf16.xpose.msra.mxu0 0
      %827 = vmatpush.bf16.xpose.msra.mxu0 0
      %828 = vmatpush.bf16.xpose.msra.mxu0 0
      %829 = vmatpush.bf16.xpose.msra.mxu0 %v820
      %830 = vmatmul.bf16.gmra.mxu0 %v817
      %v831 = vpop.f32.mrf.mxu0
      %v832 = vadd.f32 0.0, %v831
      %v833 = vpop.f32.mrf.mxu0
      %v834 = vadd.f32 0.0, %v833
      %835 = vdwg.mxu0
      %vm836 = vcmask 72704
      %v837 = vsel %vm836, %v751, -inf
      %838 = vmax.xlane.f32.xlu0 %v837
      %v839 = vpop.xlane.xlu0 %838
      %vm840 = vcmask 65536
      %v841 = vsel %vm840, %v753, -inf
      %842 = vmax.xlane.f32.xlu0 %v841
      %v843 = vpop.xlane.xlu0 %842
      %v844 = vsel %vm836, %v778, -inf
      %845 = vmax.xlane.f32.xlu0 %v844
      %v846 = vpop.xlane.xlu0 %845
      %v847 = vsel %vm840, %v780, -inf
      %848 = vmax.xlane.f32.xlu0 %v847
      %v849 = vpop.xlane.xlu0 %848
      %v850 = vsel %vm836, %v805, -inf
      %851 = vmax.xlane.f32.xlu0 %v850
      %v852 = vpop.xlane.xlu0 %851
      %v853 = vsel %vm840, %v807, -inf
      %854 = vmax.xlane.f32.xlu0 %v853
      %v855 = vpop.xlane.xlu0 %854
      %v856 = vsel %vm836, %v832, -inf
      %857 = vmax.xlane.f32.xlu0 %v856
      %v858 = vpop.xlane.xlu0 %857
      %v859 = vsel %vm840, %v834, -inf
      %860 = vmax.xlane.f32.xlu0 %v859
      %v861 = vpop.xlane.xlu0 %860
      %v862 = vsub.f32 %v751, %v839
      %v863 = vsub.f32 %v753, %v843
      %v864 = vsub.f32 %v778, %v846
      %v865 = vsub.f32 %v780, %v849
      %v866 = vsub.f32 %v805, %v852
      %v867 = vsub.f32 %v807, %v855
      %v868 = vsub.f32 %v832, %v858
      %v869 = vsub.f32 %v834, %v861
      %v870 = vmul.f32 %v862, 1.442695
      %v871 = vpow.pop %v870
      %v872 = vmul.f32 %v863, 1.442695
      %v873 = vpow.pop %v872
      %v874 = vmul.f32 %v864, 1.442695
      %v875 = vpow.pop %v874
      %v876 = vmul.f32 %v865, 1.442695
      %v877 = vpow.pop %v876
      %v878 = vmul.f32 %v866, 1.442695
      %v879 = vpow.pop %v878
      %v880 = vmul.f32 %v867, 1.442695
      %v881 = vpow.pop %v880
      %v882 = vmul.f32 %v868, 1.442695
      %v883 = vpow.pop %v882
      %v884 = vmul.f32 %v869, 1.442695
      %v885 = vpow.pop %v884
      %v886 = vsel %vm836, %v871, 0.0
      %887 = vadd.xlane.f32.xlu0 %v886
      %v888 = vpop.xlane.xlu0 %887
      %v889 = vsel %vm840, %v873, 0.0
      %890 = vadd.xlane.f32.xlu0 %v889
      %v891 = vpop.xlane.xlu0 %890
      %v892 = vsel %vm836, %v875, 0.0
      %893 = vadd.xlane.f32.xlu0 %v892
      %v894 = vpop.xlane.xlu0 %893
      %v895 = vsel %vm840, %v877, 0.0
      %896 = vadd.xlane.f32.xlu0 %v895
      %v897 = vpop.xlane.xlu0 %896
      %v898 = vsel %vm836, %v879, 0.0
      %899 = vadd.xlane.f32.xlu0 %v898
      %v900 = vpop.xlane.xlu0 %899
      %v901 = vsel %vm840, %v881, 0.0
      %902 = vadd.xlane.f32.xlu0 %v901
      %v903 = vpop.xlane.xlu0 %902
      %v904 = vsel %vm836, %v883, 0.0
      %905 = vadd.xlane.f32.xlu0 %v904
      %v906 = vpop.xlane.xlu0 %905
      %v907 = vsel %vm840, %v885, 0.0
      %908 = vadd.xlane.f32.xlu0 %v907
      %v909 = vpop.xlane.xlu0 %908
      %v910 = vrcp.pop %v888
      %v911 = vrcp.pop %v891
      %v912 = vrcp.pop %v894
      %v913 = vrcp.pop %v897
      %v914 = vrcp.pop %v900
      %v915 = vrcp.pop %v903
      %v916 = vrcp.pop %v906
      %v917 = vrcp.pop %v909
      %v918 = vmul.f32 %v871, %v910
      %v919 = vmul.f32 %v873, %v911
      %v920 = vmul.f32 %v875, %v912
      %v921 = vmul.f32 %v877, %v913
      %v922 = vmul.f32 %v879, %v914
      %v923 = vmul.f32 %v881, %v915
      %v924 = vmul.f32 %v883, %v916
      %v925 = vmul.f32 %v885, %v917
      %v926 = vpack.c.bf16 %v918, %v918
      %v927 = vpack.c.bf16 %v919, %v919
      %v928 = vpack.c.bf16 %v920, %v920
      %v929 = vpack.c.bf16 %v921, %v921
      %v930 = vpack.c.bf16 %v922, %v922
      %v931 = vpack.c.bf16 %v923, %v923
      %v932 = vpack.c.bf16 %v924, %v924
      %v933 = vpack.c.bf16 %v925, %v925
      %v936 = vunpack.c.l.b16 %v926
      %v937 = vunpack.c.l.b16 %v927
      %v938 = vpack.c.b16 %v937, %v936
      %939 = vrot.lane.b32.xlu0 %v731, 64
      %v940 = vpop.permute.xlu0 %939
      %v942 = vsel %vm836, %v938, 0
      %vm944 = vcmask 1043456
      %vm945 = vcmask 1044480
      %v946 = vsel %vm944, 4294967295, 65535
      %v947 = vsel %vm945, %v946, 0
      %v949 = vand.u32 %v940, %v947
      %951 = vmatpush.bf16.msra.mxu0 0
      %952 = vmatpush.bf16.msra.mxu0 0
      %953 = vmatpush.bf16.msra.mxu0 0
      %954 = vmatpush.bf16.msra.mxu0 0
      %955 = vmatpush.bf16.msra.mxu0 0
      %956 = vmatpush.bf16.msra.mxu0 0
      %957 = vmatpush.bf16.msra.mxu0 0
      %958 = vmatpush.bf16.msra.mxu0 %v949
      %959 = vmatmul.bf16.gmra.mxu0 %v942
      %v960 = vpop.f32.mrf.mxu0
      %v961 = vadd.f32 0.0, %v960
      %v962 = vpop.f32.mrf.mxu0
      %v963 = vadd.f32 0.0, %v962
      %964 = vdwg.mxu0
      %v967 = vunpack.c.l.b16 %v928
      %v968 = vunpack.c.l.b16 %v929
      %v969 = vpack.c.b16 %v968, %v967
      %970 = vrot.lane.b32.xlu0 %v759, 64
      %v971 = vpop.permute.xlu0 %970
      %v973 = vsel %vm836, %v969, 0
      %v976 = vand.u32 %v971, %v947
      %978 = vmatpush.bf16.msra.mxu0 0
      %979 = vmatpush.bf16.msra.mxu0 0
      %980 = vmatpush.bf16.msra.mxu0 0
      %981 = vmatpush.bf16.msra.mxu0 0
      %982 = vmatpush.bf16.msra.mxu0 0
      %983 = vmatpush.bf16.msra.mxu0 0
      %984 = vmatpush.bf16.msra.mxu0 0
      %985 = vmatpush.bf16.msra.mxu0 %v976
      %986 = vmatmul.bf16.gmra.mxu0 %v973
      %v987 = vpop.f32.mrf.mxu0
      %v988 = vadd.f32 0.0, %v987
      %v989 = vpop.f32.mrf.mxu0
      %v990 = vadd.f32 0.0, %v989
      %991 = vdwg.mxu0
      %v994 = vunpack.c.l.b16 %v930
      %v995 = vunpack.c.l.b16 %v931
      %v996 = vpack.c.b16 %v995, %v994
      %997 = vrot.lane.b32.xlu0 %v786, 64
      %v998 = vpop.permute.xlu0 %997
      %v1000 = vsel %vm836, %v996, 0
      %v1003 = vand.u32 %v998, %v947
      %1005 = vmatpush.bf16.msra.mxu0 0
      %1006 = vmatpush.bf16.msra.mxu0 0
      %1007 = vmatpush.bf16.msra.mxu0 0
      %1008 = vmatpush.bf16.msra.mxu0 0
      %1009 = vmatpush.bf16.msra.mxu0 0
      %1010 = vmatpush.bf16.msra.mxu0 0
      %1011 = vmatpush.bf16.msra.mxu0 0
      %1012 = vmatpush.bf16.msra.mxu0 %v1003
      %1013 = vmatmul.bf16.gmra.mxu0 %v1000
      %v1014 = vpop.f32.mrf.mxu0
      %v1015 = vadd.f32 0.0, %v1014
      %v1016 = vpop.f32.mrf.mxu0
      %v1017 = vadd.f32 0.0, %v1016
      %1018 = vdwg.mxu0
      %v1021 = vunpack.c.l.b16 %v932
      %v1022 = vunpack.c.l.b16 %v933
      %v1023 = vpack.c.b16 %v1022, %v1021
      %1024 = vrot.lane.b32.xlu0 %v813, 64
      %v1025 = vpop.permute.xlu0 %1024
      %v1027 = vsel %vm836, %v1023, 0
      %v1030 = vand.u32 %v1025, %v947
      %1032 = vmatpush.bf16.msra.mxu0 0
      %1033 = vmatpush.bf16.msra.mxu0 0
      %1034 = vmatpush.bf16.msra.mxu0 0
      %1035 = vmatpush.bf16.msra.mxu0 0
      %1036 = vmatpush.bf16.msra.mxu0 0
      %1037 = vmatpush.bf16.msra.mxu0 0
      %1038 = vmatpush.bf16.msra.mxu0 0
      %1039 = vmatpush.bf16.msra.mxu0 %v1030
      %1040 = vmatmul.bf16.gmra.mxu0 %v1027
      %v1041 = vpop.f32.mrf.mxu0
      %v1042 = vadd.f32 0.0, %v1041
      %v1043 = vpop.f32.mrf.mxu0
      %v1044 = vadd.f32 0.0, %v1043
      %1045 = vdwg.mxu0
      %v1046 = vpack.c.bf16 %v963, %v961
      %v1047 = vld [vmem:[%s608] sm:$0xf]
      %v1048 = vpack.c.bf16 %v990, %v988
      %s1049 = scalar_lea.vmem %s608, 4
      %v1050 = vld [vmem:[%s1049] sm:$0xf]
      %v1052 = vsel %vm734, %v1048, 0
      %v1055 = vsel %vm944, %v1050, 0
      %1057 = vmatpush.bf16.msra.mxu0 0
      %1058 = vmatpush.bf16.msra.mxu0 0
      %1059 = vmatpush.bf16.msra.mxu0 0
      %1060 = vmatpush.bf16.msra.mxu0 0
      %1061 = vmatpush.bf16.msra.mxu0 0
      %1062 = vmatpush.bf16.msra.mxu0 0
      %1063 = vmatpush.bf16.msra.mxu0 0
      %1064 = vmatpush.bf16.msra.mxu0 %v1055
      %1065 = vmatmul.bf16.gmra.mxu0 %v1052
      %v1066 = vpop.f32.mrf.mxu0
      %v1067 = vadd.f32 0.0, %v1066
      %v1068 = vpop.f32.mrf.mxu0
      %v1069 = vadd.f32 0.0, %v1068
      %1070 = vdwg.mxu0
      %v1072 = vsel %vm734, %v1046, 0
      %v1075 = vsel %vm944, %v1047, 0
      %1077 = vmatpush.bf16.msra.mxu0 0
      %1078 = vmatpush.bf16.msra.mxu0 0
      %1079 = vmatpush.bf16.msra.mxu0 0
      %1080 = vmatpush.bf16.msra.mxu0 0
      %1081 = vmatpush.bf16.msra.mxu0 0
      %1082 = vmatpush.bf16.msra.mxu0 0
      %1083 = vmatpush.bf16.msra.mxu0 0
      %1084 = vmatpush.bf16.msra.mxu0 %v1075
      %1085 = vmatmul.bf16.gmra.mxu0 %v1072
      %v1086 = vpop.f32.mrf.mxu0
      %v1087 = vadd.f32 %v1067, %v1086
      %v1088 = vpop.f32.mrf.mxu0
      %v1089 = vadd.f32 %v1069, %v1088
      %1090 = vdwg.mxu0
      %v1091 = vpack.c.bf16 %v1017, %v1015
      %s1092 = scalar_lea.vmem %s608, 8
      %v1093 = vld [vmem:[%s1092] sm:$0xf]
      %v1095 = vsel %vm734, %v1091, 0
      %v1098 = vsel %vm944, %v1093, 0
      %1100 = vmatpush.bf16.msra.mxu0 0
      %1101 = vmatpush.bf16.msra.mxu0 0
      %1102 = vmatpush.bf16.msra.mxu0 0
      %1103 = vmatpush.bf16.msra.mxu0 0
      %1104 = vmatpush.bf16.msra.mxu0 0
      %1105 = vmatpush.bf16.msra.mxu0 0
      %1106 = vmatpush.bf16.msra.mxu0 0
      %1107 = vmatpush.bf16.msra.mxu0 %v1098
      %1108 = vmatmul.bf16.gmra.mxu0 %v1095
      %v1109 = vpop.f32.mrf.mxu0
      %v1110 = vadd.f32 0.0, %v1109
      %v1111 = vpop.f32.mrf.mxu0
      %v1112 = vadd.f32 0.0, %v1111
      %1113 = vdwg.mxu0
      %v1114 = vadd.f32 %v1087, %v1110
      %v1115 = vadd.f32 %v1089, %v1112
      %v1116 = vpack.c.bf16 %v1044, %v1042
      %s1117 = scalar_lea.vmem %s608, 12
      %v1118 = vld [vmem:[%s1117] sm:$0xf]
      %v1120 = vsel %vm734, %v1116, 0
      %v1123 = vsel %vm944, %v1118, 0
      %1125 = vmatpush.bf16.msra.mxu0 0
      %1126 = vmatpush.bf16.msra.mxu0 0
      %1127 = vmatpush.bf16.msra.mxu0 0
      %1128 = vmatpush.bf16.msra.mxu0 0
      %1129 = vmatpush.bf16.msra.mxu0 0
      %1130 = vmatpush.bf16.msra.mxu0 0
      %1131 = vmatpush.bf16.msra.mxu0 0
      %1132 = vmatpush.bf16.msra.mxu0 %v1123
      %1133 = vmatmul.bf16.gmra.mxu0 %v1120
      %v1134 = vpop.f32.mrf.mxu0
      %v1135 = vadd.f32 0.0, %v1134
      %v1136 = vpop.f32.mrf.mxu0
      %v1137 = vadd.f32 0.0, %v1136
      %1138 = vdwg.mxu0
      %v1139 = vadd.f32 %v1114, %v1135
      %v1140 = vadd.f32 %v1115, %v1137
      %v1141 = vld [vmem:[%s611] sm:$0x1]
      %v1143 = vperm.slane %v1141, 0
      %v1145 = vadd.f32 %v1139, %v1143
      %v1146 = vadd.f32 %v1140, %v1143
      %v1147 = vadd.f32 %v658, %v1145
      %v1148 = vadd.f32 %v659, %v1146
      %v1149 = vld [vmem:[%s630] sm:$0x1]
      %v1150 = vld [vmem:[%s633] sm:$0x1]
      %v1151 = vsel %vm681, %v1147, 0.0
      %1152 = vadd.xlane.f32.xlu0 %v1151
      %v1153 = vpop.xlane.xlu0 %1152
      %vm1154 = vcmask 253952
      %v1155 = vsel %vm1154, %v1148, 0.0
      %1156 = vadd.xlane.f32.xlu0 %v1155
      %v1157 = vpop.xlane.xlu0 %1156
      %v1158 = vrcp.pop 32.0
      %v1159 = vmul.f32 32.0, %v1158
      %v1160 = vsub.f32 1.0, %v1159
      %v1161 = vmul.f32 %v1158, %v1160
      %v1162 = vadd.f32 %v1158, %v1161
      %vm1163 = vweird.f32 %v1158
      %v1164 = vsel %vm1163, %v1158, %v1162
      %v1165 = vmul.f32 %v1153, %v1164
      %v1166 = vmul.f32 %v1157, %v1164
      %v1167 = vsub.f32 %v1147, %v1165
      %v1168 = vsub.f32 %v1148, %v1166
      %v1169 = vmul.f32 %v1167, %v1167
      %v1170 = vmul.f32 %v1168, %v1168
      %v1171 = vsel %vm681, %v1169, 0.0
      %1172 = vadd.xlane.f32.xlu0 %v1171
      %v1173 = vpop.xlane.xlu0 %1172
      %v1174 = vsel %vm1154, %v1170, 0.0
      %1175 = vadd.xlane.f32.xlu0 %v1174
      %v1176 = vpop.xlane.xlu0 %1175
      %v1177 = vmul.f32 %v1173, %v1164
      %v1178 = vmul.f32 %v1176, %v1164
      %v1179 = vadd.f32 %v1177, 1e-05
      %v1180 = vadd.f32 %v1178, 1e-05
      %v1181 = vrsqrt.pop %v1179
      %v1182 = vmul.f32 %v1181, %v1179
      %v1183 = vmul.f32 %v1182, %v1181
      %v1184 = vmul.f32 0.5, %v1183
      %v1185 = vsub.f32 1.5, %v1184
      %v1186 = vmul.f32 %v1181, %v1185
      %vm1187 = vweird.f32 %v1179
      %vm1188 = vweird.f32 %v1181
      %vm1189 = vmor %vm1187, %vm1188
      %v1190 = vsel %vm1189, %v1181, %v1186
      %v1191 = vrsqrt.pop %v1180
      %v1192 = vmul.f32 %v1191, %v1180
      %v1193 = vmul.f32 %v1192, %v1191
      %v1194 = vmul.f32 0.5, %v1193
      %v1195 = vsub.f32 1.5, %v1194
      %v1196 = vmul.f32 %v1191, %v1195
      %vm1197 = vweird.f32 %v1180
      %vm1198 = vweird.f32 %v1191
      %vm1199 = vmor %vm1197, %vm1198
      %v1200 = vsel %vm1199, %v1191, %v1196
      %v1201 = vmul.f32 %v1167, %v1190
      %v1202 = vmul.f32 %v1168, %v1200
      %v1204 = vperm.slane %v1149, 0
      %v1206 = vmul.f32 %v1201, %v1204
      %v1207 = vmul.f32 %v1202, %v1204
      %v1209 = vperm.slane %v1150, 0
      %v1211 = vadd.f32 %v1206, %v1209
      %v1212 = vadd.f32 %v1207, %v1209
      %v1213 = vpack.c.bf16 %v1212, %v1211
      %v1214 = vld [vmem:[%s616] sm:$0xf]
      %v1215 = vld [vmem:[%s616 + $0x4] sm:$0xf]
      %v1216 = vld [vmem:[%s616 + $0x8] sm:$0xf]
      %v1217 = vld [vmem:[%s616 + $0xc] sm:$0xf]
      %v1218 = vld [vmem:[%s619] sm:$0x1]
      %v1220 = vperm.slane %v1218, 0
      %v1226 = vunpack.c.l.b16 %v1214
      %v1227 = vunpack.c.l.b16 %v1215
      %v1228 = vunpack.c.l.b16 %v1216
      %v1229 = vunpack.c.l.b16 %v1217
      %v1230 = vpack.c.b16 %v1227, %v1226
      %v1231 = vpack.c.b16 %v1229, %v1228
      %v1235 = vsel %vm681, %v1213, 0
      %1237 = vmatpush.bf16.msra.mxu0 0
      %1238 = vmatpush.bf16.msra.mxu0 0
      %1239 = vmatpush.bf16.msra.mxu0 0
      %1240 = vmatpush.bf16.msra.mxu0 0
      %1241 = vmatpush.bf16.msra.mxu0 0
      %1242 = vmatpush.bf16.msra.mxu0 0
      %1243 = vmatpush.bf16.msra.mxu0 %v1231
      %1244 = vmatpush.bf16.msra.mxu0 %v1230
      %1245 = vmatmul.bf16.gmra.mxu0 %v1235
      %v1246 = vpop.f32.mrf.mxu0
      %v1247 = vadd.f32 %v1220, %v1246
      %v1248 = vpop.f32.mrf.mxu0
      %v1249 = vadd.f32 %v1220, %v1248
      %1250 = vdwg.mxu0
      %v1251 = vmul.f32 %v1247, %v1247
      %v1252 = vmul.f32 %v1249, %v1249
      %v1253 = vmul.f32 %v1247, %v1251
      %v1254 = vmul.f32 %v1249, %v1252
      %v1255 = vmul.f32 %v1253, 0.044715
      %v1256 = vmul.f32 %v1254, 0.044715
      %v1257 = vadd.f32 %v1247, %v1255
      %v1258 = vadd.f32 %v1249, %v1256
      %v1259 = vmul.f32 %v1257, 0.7978846
      %v1260 = vmul.f32 %v1258, 0.7978846
      %v1261 = vtanh.pop %v1259
      %v1262 = vtanh.pop %v1260
      %v1263 = vadd.f32 %v1261, 1.0
      %v1264 = vadd.f32 %v1262, 1.0
      %v1265 = vmul.f32 %v1263, 0.5
      %v1266 = vmul.f32 %v1264, 0.5
      %v1267 = vmul.f32 %v1247, %v1265
      %v1268 = vmul.f32 %v1249, %v1266
      %v1269 = vpack.c.bf16 %v1268, %v1267
      %v1270 = vld [vmem:[%s624] sm:$0xf]
      %v1271 = vld [vmem:[%s624 + $0x4] sm:$0xf]
      %v1272 = vld [vmem:[%s624 + $0x8] sm:$0xf]
      %v1273 = vld [vmem:[%s624 + $0xc] sm:$0xf]
      %v1274 = vld [vmem:[%s624 + $0x10] sm:$0xf]
      %v1275 = vld [vmem:[%s624 + $0x14] sm:$0xf]
      %v1276 = vld [vmem:[%s624 + $0x18] sm:$0xf]
      %v1277 = vld [vmem:[%s624 + $0x1c] sm:$0xf]
      %v1278 = vld [vmem:[%s627] sm:$0x1]
      %v1280 = vperm.slane %v1278, 0
      %v1290 = vunpack.c.l.b16 %v1270
      %v1291 = vunpack.c.l.b16 %v1271
      %v1292 = vunpack.c.l.b16 %v1272
      %v1293 = vunpack.c.l.b16 %v1273
      %v1294 = vunpack.c.l.b16 %v1274
      %v1295 = vunpack.c.l.b16 %v1275
      %v1296 = vunpack.c.l.b16 %v1276
      %v1297 = vunpack.c.l.b16 %v1277
      %v1298 = vpack.c.b16 %v1291, %v1290
      %v1299 = vpack.c.b16 %v1293, %v1292
      %v1300 = vpack.c.b16 %v1295, %v1294
      %v1301 = vpack.c.b16 %v1297, %v1296
      %vm1306 = vcmask 523264
      %v1308 = vsel %vm1306, %v1269, 0
      %1310 = vmatpush.bf16.msra.mxu0 0
      %1311 = vmatpush.bf16.msra.mxu0 0
      %1312 = vmatpush.bf16.msra.mxu0 0
      %1313 = vmatpush.bf16.msra.mxu0 0
      %1314 = vmatpush.bf16.msra.mxu0 %v1301
      %1315 = vmatpush.bf16.msra.mxu0 %v1300
      %1316 = vmatpush.bf16.msra.mxu0 %v1299
      %1317 = vmatpush.bf16.msra.mxu0 %v1298
      %1318 = vmatmul.bf16.gmra.mxu0 %v1308
      %v1319 = vpop.f32.mrf.mxu0
      %v1320 = vadd.f32 %v1280, %v1319
      %v1321 = vpop.f32.mrf.mxu0
      %v1322 = vadd.f32 %v1280, %v1321
      %1323 = vdwg.mxu0
      %v1324 = vadd.f32 %v1211, %v1320
      %v1325 = vadd.f32 %v1212, %v1322
      %v1326 = vld [vmem:[%s636] sm:$0x1]
      %v1327 = vld [vmem:[%s639] sm:$0x1]
      %v1328 = vsel %vm681, %v1324, 0.0
      %1329 = vadd.xlane.f32.xlu0 %v1328
      %v1330 = vpop.xlane.xlu0 %1329
      %v1331 = vsel %vm1154, %v1325, 0.0
      %1332 = vadd.xlane.f32.xlu0 %v1331
      %v1333 = vpop.xlane.xlu0 %1332
      %v1334 = vmul.f32 %v1330, %v1164
      %v1335 = vmul.f32 %v1333, %v1164
      %v1336 = vsub.f32 %v1324, %v1334
      %v1337 = vsub.f32 %v1325, %v1335
      %v1338 = vmul.f32 %v1336, %v1336
      %v1339 = vmul.f32 %v1337, %v1337
      %v1340 = vsel %vm681, %v1338, 0.0
      %1341 = vadd.xlane.f32.xlu0 %v1340
      %v1342 = vpop.xlane.xlu0 %1341
      %v1343 = vsel %vm1154, %v1339, 0.0
      %1344 = vadd.xlane.f32.xlu0 %v1343
      %v1345 = vpop.xlane.xlu0 %1344
      %v1346 = vmul.f32 %v1342, %v1164
      %v1347 = vmul.f32 %v1345, %v1164
      %v1348 = vadd.f32 %v1346, 1e-05
      %v1349 = vadd.f32 %v1347, 1e-05
      %v1350 = vrsqrt.pop %v1348
      %v1351 = vmul.f32 %v1350, %v1348
      %v1352 = vmul.f32 %v1351, %v1350
      %v1353 = vmul.f32 0.5, %v1352
      %v1354 = vsub.f32 1.5, %v1353
      %v1355 = vmul.f32 %v1350, %v1354
      %vm1356 = vweird.f32 %v1348
      %vm1357 = vweird.f32 %v1350
      %vm1358 = vmor %vm1356, %vm1357
      %v1359 = vsel %vm1358, %v1350, %v1355
      %v1360 = vrsqrt.pop %v1349
      %v1361 = vmul.f32 %v1360, %v1349
      %v1362 = vmul.f32 %v1361, %v1360
      %v1363 = vmul.f32 0.5, %v1362
      %v1364 = vsub.f32 1.5, %v1363
      %v1365 = vmul.f32 %v1360, %v1364
      %vm1366 = vweird.f32 %v1349
      %vm1367 = vweird.f32 %v1360
      %vm1368 = vmor %vm1366, %vm1367
      %v1369 = vsel %vm1368, %v1360, %v1365
      %v1370 = vmul.f32 %v1336, %v1359
      %v1371 = vmul.f32 %v1337, %v1369
      %v1373 = vperm.slane %v1326, 0
      %v1375 = vmul.f32 %v1370, %v1373
      %v1376 = vmul.f32 %v1371, %v1373
      %v1378 = vperm.slane %v1327, 0
      %v1380 = vadd.f32 %v1375, %v1378
      %v1381 = vadd.f32 %v1376, %v1378
      %1382 = vst.msk [vmem:[%s644] sm:$0xff] %vm681, %v1380
      %1383 = vst.msk [vmem:[%s644 + $0x8] sm:$0x1] %vm1154, %v1381
      %p1384 = scmp.lt.s32.totalorder %s28, 1
      %s1385 = scalar_select %p1384, %s28, 1
      %s1386 = smul.addr %s1385, 2
      %s1387 = smul.addr %s1386, 8
      %s1388 = scalar_lea.vmem %s13, %s1387
      // Predicated region
      $region77: #{null_cond_encoder_m2mdm_forward.8} parent=71 // pred_check
        %p1389 = pneg %p392
      $region78: #{null_cond_encoder_m2mdm_forward.8} parent=71 // pred_check_branch
        %1391 = sbr.rel (%p1389) target = $region80
      $region79: #{null_cond_encoder_m2mdm_forward.8} parent=71 // pred_region
        _
      $region80: #{null_cond_encoder_m2mdm_forward.8} parent=71 // pred_fallthru
        _
    $region72: #{null_cond_encoder_m2mdm_forward.8} parent=5 // pred_fallthru
      _
    %p1392 = scmp.le.s32.totalorder 2, %s19
    // Predicated region
    $region81: #{null_cond_encoder_m2mdm_forward.8} parent=5 // pred_check
      %p1393 = pneg %p1392
    $region82: #{null_cond_encoder_m2mdm_forward.8} parent=5 // pred_check_branch
      %1395 = sbr.rel (%p1393) target = $region84
    $region83: #{null_cond_encoder_m2mdm_forward.8} parent=5 // pred_region
      %s1396 = ssub.s32 %s19, 2
      // Predicated region
      $region85: #{null_cond_encoder_m2mdm_forward.8} parent=83 // pred_check
        %p1397 = pneg %p398
      $region86: #{null_cond_encoder_m2mdm_forward.8} parent=83 // pred_check_branch
        %1399 = sbr.rel (%p1397) target = $region88
      $region87: #{null_cond_encoder_m2mdm_forward.8} parent=83 // pred_region
        %p1400 = scmp.lt.s32.totalorder %s30, 1
        %s1401 = scalar_select %p1400, %s30, 1
        %s1402 = smul.addr %s1401, 2
        %s1403 = smul.addr %s1402, 8
        %s1404 = scalar_lea.vmem %s13, %s1403
      $region88: #{null_cond_encoder_m2mdm_forward.8} parent=83 // pred_fallthru
        _
    $region84: #{null_cond_encoder_m2mdm_forward.8} parent=5 // pred_fallthru
      _
  $region6: #{null_cond_encoder_m2mdm_forward.8} parent=0 // loop_footer
    %s23 = sadd.s32 1, %s19
  $region7: #{null_cond_encoder_m2mdm_forward.8} parent=0 // loop_footer_branch
    %18 = sbr.rel target = $region3
  $region8: #{null_cond_encoder_m2mdm_forward.8} parent=0 // loop_exit
    _

</llo_original>
